<compile_context>
chip_gen: v6e
topology: v6e:2x2x1
jax: 0.10.0
libtpu: 0.0.40
codegen_flags: <defaults>
</compile_context>

<pallas_src>
import functools
import math

import jax
import jax.numpy as jnp
from jax.experimental import pallas as pl
from jax.experimental.pallas import tpu as pltpu


_VMEM_LIMIT = 32 * 1024 * 1024   # safe scoped-VMEM cap on v5e/v6e/v7x
_NEG_INF = -1e9


def _round_up(x, m):
    return ((x + m - 1) // m) * m


# ------------------------- fused whole-forward kernel ------------------------

def _encoder_kernel(
    # batch-indexed inputs
    x_ref, bias_ref,
    # constants
    pe_ref, in_w_ref, in_b_ref,
    # per-layer stacked params (leading size-1 layer axis in each block)
    ln1g_ref, ln1b_ref, wq_ref, wk_ref, wv_ref, bq_ref, bk_ref, bv_ref,
    wo_ref, bo_ref, ln2g_ref, ln2b_ref, convw_ref, convb_ref, w2_ref, b2_ref,
    # final-LN / query-attention / out_linear constants
    lng_ref, lnb_ref, qemb_ref, wqq_ref, bqq_ref, wkq_ref, bkq_ref,
    wvq_ref, bvq_ref, woq_ref, boq_ref, outw_ref, outb_ref,
    # outputs
    spk_ref, xout_ref,
    # scratch
    h_state, im2col,
    *, num_heads, num_heads_q, kernel_size, eps,
):
    l = pl.program_id(1)
    n_layers = pl.num_programs(1)
    T, d = h_state.shape
    pad = kernel_size // 2
    hp = wq_ref.shape[2] // num_heads        # per-head padded width (multiple of 128)
    hpq = wqq_ref.shape[1] // num_heads_q

    def layer_norm(v, g, b):
        mu = jnp.mean(v, axis=-1, keepdims=True)
        var = jnp.mean(jnp.square(v - mu), axis=-1, keepdims=True)
        return (v - mu) * jax.lax.rsqrt(var + eps) * g + b

    def bdot(a, w):
        # bf16 MXU operands, f32 accumulation
        return jnp.dot(a.astype(jnp.bfloat16), w,
                       preferred_element_type=jnp.float32)

    def mha(q, k, v, wo_pad, nh, hpad):
        # q: (N, nh*hpad) with the 1/sqrt(dh) scale folded in; k, v: (T, nh*hpad).
        # Per-head chunks are padded to 128-lane boundaries with zero padding
        # lanes, so every slice below starts at a lane multiple of 128.
        n_rows = q.shape[0]
        dout = wo_pad.shape[-1]
        key_bias = bias_ref[0]                              # (1, T): 0 valid / -1e9 pad
        qb = q.astype(jnp.bfloat16)
        kb = k.astype(jnp.bfloat16)
        vb = v.astype(jnp.bfloat16)
        acc = jnp.zeros((n_rows, dout), jnp.float32)
        for h in range(nh):
            sl = slice(h * hpad, (h + 1) * hpad)
            s = jax.lax.dot_general(                        # q_h @ k_h^T on the MXU
                qb[:, sl], kb[:, sl],
                dimension_numbers=(((1,), (1,)), ((), ())),
                preferred_element_type=jnp.float32)
            s = s + key_bias                                # f32 masking + softmax
            s = s - jnp.max(s, axis=-1, keepdims=True)
            p = jnp.exp(s)
            p = p / jnp.sum(p, axis=-1, keepdims=True)      # exact divide
            oh = jnp.dot(p.astype(jnp.bfloat16), vb[:, sl],
                         preferred_element_type=jnp.float32)
            # concat_h(o_h) @ Wo == sum_h o_h @ Wo[h-block]  (avoids lane concat)
            acc = acc + jnp.dot(oh.astype(jnp.bfloat16), wo_pad[sl, :],
                                preferred_element_type=jnp.float32)
        return acc

    # ---- l == 0: in_linear + positional encoding; reset conv padding cells ----
    @pl.when(l == 0)
    def _():
        h_state[...] = (bdot(x_ref[0], in_w_ref[...]) + in_b_ref[...]
                        + pe_ref[...])
        # im2col cells belonging to out-of-range conv taps are never written
        # below and must read as zero; cleared once per batch item.
        im2col[...] = jnp.zeros(im2col.shape, im2col.dtype)

    x = h_state[...]                                        # (T, d) f32

    # ----------------- pre-LN multi-head self-attention + residual -------------
    h = layer_norm(x, ln1g_ref[0], ln1b_ref[0])
    q = bdot(h, wq_ref[0]) + bq_ref[0]                      # scale folded into wq/bq
    k = bdot(h, wk_ref[0]) + bk_ref[0]
    v = bdot(h, wv_ref[0]) + bv_ref[0]
    x = x + mha(q, k, v, wo_ref[0], num_heads, hp) + bo_ref[0]

    # -------- pre-LN FFN: Conv1d (im2col, single matmul) -> SiLU -> Linear -----
    h2 = layer_norm(x, ln2g_ref[0], ln2b_ref[0])
    for j in range(kernel_size):                            # static, unrolled
        dst_lo, dst_hi = max(0, pad - j), min(T, T + pad - j)
        src_lo, src_hi = max(0, j - pad), min(T, T + j - pad)
        if dst_hi > dst_lo:
            im2col[dst_lo:dst_hi, j * d:(j + 1) * d] = h2[src_lo:src_hi, :]
    y = bdot(im2col[...], convw_ref[0]) + convb_ref[0]      # one K*d-deep contraction
    y = y * jax.nn.sigmoid(y)                               # SiLU in f32 (EUP)
    x = x + bdot(y, w2_ref[0]) + b2_ref[0]

    h_state[...] = x

    # ---- l == L-1: final LayerNorm + query cross-attention + out_linear -------
    @pl.when(l == n_layers - 1)
    def _():
        xf = layer_norm(x, lng_ref[...], lnb_ref[...])
        xout_ref[0] = xf
        qq = bdot(qemb_ref[...], wqq_ref[...]) + bqq_ref[...]   # scale folded in
        kq = bdot(xf, wkq_ref[...]) + bkq_ref[...]
        vq = bdot(xf, wvq_ref[...]) + bvq_ref[...]
        att = mha(qq, kq, vq, woq_ref[...], num_heads_q, hpq) + boq_ref[...]
        spk_ref[0] = bdot(att, outw_ref[...]) + outb_ref[...]


# ------------------------------ parameter prep -------------------------------

def prepare_params(params, cfg):
    """Stack per-layer params along L, pad heads to 128-lane chunks, fold the
    attention scale into Wq/bq, reshape conv weights for im2col, cast matmul
    weights to bf16 (biases / LN params stay f32)."""
    d = cfg["encoder_hidden"]
    H = cfg["encoder_head"]
    K = cfg["conv_kernel_size"]
    F = cfg["conv_filter_size"]
    in_dim = cfg["ref_in_dim"]
    out_dim = cfg["ref_out_dim"]
    assert d % H == 0, "encoder_hidden must be divisible by encoder_head"
    assert K % 2 == 1, "conv kernel_size must be odd (torch pad=K//2 semantics)"

    dh = d // H
    hp = _round_up(dh, 128)
    scale = 1.0 / math.sqrt(dh)

    nq = max(1, d // 64)                     # torch: num_heads = hidden // 64
    assert d % nq == 0
    dq = d // nq
    hpq = _round_up(dq, 128)
    scale_q = 1.0 / math.sqrt(dq)

    def pad_cols(w, b, nh, dh_, hp_, s):
        din = w.shape[0]
        wp = jnp.zeros((din, nh * hp_), jnp.float32)
        bp = jnp.zeros((1, nh * hp_), jnp.float32)
        for h in range(nh):
            wp = wp.at[:, h * hp_:h * hp_ + dh_].set(w[:, h * dh_:(h + 1) * dh_] * s)
            bp = bp.at[:, h * hp_:h * hp_ + dh_].set(b[h * dh_:(h + 1) * dh_] * s)
        return wp.astype(jnp.bfloat16), bp

    def pad_rows(w, nh, dh_, hp_):
        dout = w.shape[1]
        wp = jnp.zeros((nh * hp_, dout), jnp.float32)
        for h in range(nh):
            wp = wp.at[h * hp_:h * hp_ + dh_, :].set(w[h * dh_:(h + 1) * dh_, :])
        return wp.astype(jnp.bfloat16)

    st = lambda xs: jnp.stack(xs, axis=0)
    layers = params["encoder"]["layers"]
    attn = [lp["attn"] for lp in layers]
    ffn = [lp["ffn"] for lp in layers]

    wq_l, bq_l, wk_l, bk_l, wv_l, bv_l, wo_l = [], [], [], [], [], [], []
    for a in attn:
        wqkv, bqkv = a["w_qkv"], a["b_qkv"]
        wq, bq = pad_cols(wqkv[:, :d], bqkv[:d], H, dh, hp, scale)
        wk, bk = pad_cols(wqkv[:, d:2 * d], bqkv[d:2 * d], H, dh, hp, 1.0)
        wv, bv = pad_cols(wqkv[:, 2 * d:], bqkv[2 * d:], H, dh, hp, 1.0)
        wq_l.append(wq); bq_l.append(bq)
        wk_l.append(wk); bk_l.append(bk)
        wv_l.append(wv); bv_l.append(bv)
        wo_l.append(pad_rows(a["wo"], H, dh, hp))

    # in_dim == hidden / out_dim == hidden fall back to identity projections
    # (the torch module skips those linears in that case).
    in_w = params["in_w"] if in_dim != d else jnp.eye(d, dtype=jnp.float32)
    in_b = params["in_b"] if in_dim != d else jnp.zeros((d,), jnp.float32)
    out_w = params["out_w"] if out_dim != d else jnp.eye(d, dtype=jnp.float32)
    out_b = params["out_b"] if out_dim != d else jnp.zeros((d,), jnp.float32)
    out_cols = out_w.shape[1]

    qa = params["query_attn"]
    wq_q, bq_q = pad_cols(qa["wq"], qa["bq"], nq, dq, hpq, scale_q)
    wk_q, bk_q = pad_cols(qa["wkv"][:, :d], qa["bkv"][:d], nq, dq, hpq, 1.0)
    wv_q, bv_q = pad_cols(qa["wkv"][:, d:], qa["bkv"][d:], nq, dq, hpq, 1.0)
    wo_q = pad_rows(qa["wo"], nq, dq, hpq)

    return dict(
        in_w=in_w.astype(jnp.bfloat16), in_b=in_b.reshape(1, d),
        ln1_g=st([a["ln_g"].reshape(1, d) for a in attn]),
        ln1_b=st([a["ln_b"].reshape(1, d) for a in attn]),
        wq=st(wq_l), wk=st(wk_l), wv=st(wv_l),
        bq=st(bq_l), bk=st(bk_l), bv=st(bv_l),
        wo=st(wo_l),
        bo=st([a["bo"].reshape(1, d) for a in attn]),
        ln2_g=st([f["ln_g"].reshape(1, d) for f in ffn]),
        ln2_b=st([f["ln_b"].reshape(1, d) for f in ffn]),
        conv_w=st([f["conv_w"].reshape(K * d, F).astype(jnp.bfloat16) for f in ffn]),
        conv_b=st([f["conv_b"].reshape(1, F) for f in ffn]),
        w2=st([f["ffn2_w"].astype(jnp.bfloat16) for f in ffn]),
        b2=st([f["ffn2_b"].reshape(1, d) for f in ffn]),
        last_g=params["encoder"]["last_ln_g"].reshape(1, d),
        last_b=params["encoder"]["last_ln_b"].reshape(1, d),
        q_emb=params["query_embs"],
        wq_q=wq_q, bq_q=bq_q, wk_q=wk_q, bk_q=bk_q, wv_q=wv_q, bv_q=bv_q,
        wo_q=wo_q, bo_q=qa["bo"].reshape(1, d),
        out_w=out_w.astype(jnp.bfloat16), out_b=out_b.reshape(1, out_cols),
    )


# ------------------------------- JAX wrapper ----------------------------------

def sinusoidal_pe(T, d):
    pos = jnp.arange(T, dtype=jnp.float32)[:, None]
    i = jnp.arange(0, d, 2, dtype=jnp.float32)
    div = jnp.exp(-jnp.log(10000.0) * i / d)
    pe = jnp.zeros((T, d), jnp.float32)
    pe = pe.at[:, 0::2].set(jnp.sin(pos * div))
    pe = pe.at[:, 1::2].set(jnp.cos(pos * div))
    return pe


def reference_encoder_forward(prep, cfg, x_ref, key_padding_mask=None):
    """Returns (spk_embs [B, num_query, out_dim], x [B, T, hidden])."""
    B, T, Din = x_ref.shape
    d = cfg["encoder_hidden"]
    L = cfg["encoder_layer"]
    H = cfg["encoder_head"]
    K = cfg["conv_kernel_size"]
    Q = prep["q_emb"].shape[0]
    out_dim = prep["out_b"].shape[-1]
    nq = max(1, d // 64)
    assert prep["in_w"].shape[0] == Din
    assert K // 2 < T, "sequence shorter than conv half-width not supported"

    pe = sinusoidal_pe(T, d)
    if key_padding_mask is None:
        bias = jnp.zeros((B, 1, T), jnp.float32)
    else:
        # convention: True = valid frame; invalid keys get -1e9 before softmax.
        bias = jnp.where(key_padding_mask[:, None, :], 0.0, _NEG_INF).astype(jnp.float32)

    args, in_specs = [], []

    def add(arr, kind):
        n = arr.ndim
        if kind == "b":      # batch-indexed
            spec = pl.BlockSpec((1,) + arr.shape[1:],
                                lambda b, l, _n=n: (b,) + (0,) * (_n - 1))
        elif kind == "l":    # layer-indexed (stacked along L)
            spec = pl.BlockSpec((1,) + arr.shape[1:],
                                lambda b, l, _n=n: (l,) + (0,) * (_n - 1))
        else:                # constant
            spec = pl.BlockSpec(arr.shape, lambda b, l, _n=n: (0,) * _n)
        args.append(arr)
        in_specs.append(spec)

    add(x_ref, "b")
    add(bias, "b")
    add(pe, "c"); add(prep["in_w"], "c"); add(prep["in_b"], "c")
    for name in ("ln1_g", "ln1_b", "wq", "wk", "wv", "bq", "bk", "bv",
                 "wo", "bo", "ln2_g", "ln2_b", "conv_w", "conv_b", "w2", "b2"):
        add(prep[name], "l")
    for name in ("last_g", "last_b", "q_emb", "wq_q", "bq_q", "wk_q", "bk_q",
                 "wv_q", "bv_q", "wo_q", "bo_q", "out_w", "out_b"):
        add(prep[name], "c")

    kernel = functools.partial(_encoder_kernel, num_heads=H, num_heads_q=nq,
                               kernel_size=K, eps=1e-5)

    spk, x_out = pl.pallas_call(
        kernel,
        out_shape=(jax.ShapeDtypeStruct((B, Q, out_dim), jnp.float32),
                   jax.ShapeDtypeStruct((B, T, d), jnp.float32)),
        grid=(B, L),
        in_specs=in_specs,
        out_specs=(pl.BlockSpec((1, Q, out_dim), lambda b, l: (b, 0, 0)),
                   pl.BlockSpec((1, T, d), lambda b, l: (b, 0, 0))),
        scratch_shapes=[pltpu.VMEM((T, d), jnp.float32),        # activation state
                        pltpu.VMEM((T, K * d), jnp.float32)],   # conv im2col tile
        compiler_params=pltpu.CompilerParams(
            dimension_semantics=("parallel", "arbitrary"),
            vmem_limit_bytes=_VMEM_LIMIT),
    )(*args)
    return spk, x_out


# --------------------------- deterministic params ----------------------------

def init_params(key, cfg):
    d = cfg["encoder_hidden"]
    in_dim, out_dim = cfg["ref_in_dim"], cfg["ref_out_dim"]
    F, K = cfg["conv_filter_size"], cfg["conv_kernel_size"]
    keys = iter(jax.random.split(key, 64))

    def nrm(*shape):
        return 0.02 * jax.random.normal(next(keys), shape, jnp.float32)

    def zeros(*shape):
        return jnp.zeros(shape, jnp.float32)

    def ones(*shape):
        return jnp.ones(shape, jnp.float32)

    layers = []
    for _ in range(cfg["encoder_layer"]):
        layers.append(dict(
            attn=dict(ln_g=ones(d), ln_b=zeros(d),
                      w_qkv=nrm(d, 3 * d), b_qkv=zeros(3 * d),
                      wo=nrm(d, d), bo=zeros(d)),
            ffn=dict(ln_g=ones(d), ln_b=zeros(d),
                     conv_w=nrm(K, d, F),       # conv_w[j] == torch weight[:, :, j].T
                     conv_b=zeros(F),
                     ffn2_w=nrm(F, d), ffn2_b=zeros(d)),
        ))
    return dict(
        in_w=nrm(in_dim, d), in_b=zeros(d),
        out_w=nrm(d, out_dim), out_b=zeros(out_dim),
        encoder=dict(layers=layers, last_ln_g=ones(d), last_ln_b=zeros(d)),
        query_embs=nrm(cfg["num_query_emb"], d),
        query_attn=dict(wq=nrm(d, d), bq=zeros(d),
                        wkv=nrm(d, 2 * d), bkv=zeros(2 * d),
                        wo=nrm(d, d), bo=zeros(d)),
    )


if __name__ == "__main__":
    cfg = dict(
        encoder_layer=2,
        encoder_hidden=64,     # must be a multiple of 64 (query_attn heads = hidden // 64)
        encoder_head=2,
        conv_filter_size=128,
        conv_kernel_size=5,
        encoder_dropout=0.0,
        use_skip_connection=False,
        use_new_ffn=False,
        ref_in_dim=32,
        ref_out_dim=32,
        use_query_emb=True,
        num_query_emb=8,
    )
    key = jax.random.PRNGKey(0)
    pkey, xkey = jax.random.split(key)
    params = init_params(pkey, cfg)
    prep = prepare_params(params, cfg)

    B, T = 2, 8
    x_in = jax.random.normal(xkey, (B, T, cfg["ref_in_dim"]), jnp.float32)

    # unmasked path
    spk_embs, x_out = reference_encoder_forward(prep, cfg, x_in, key_padding_mask=None)
    jax.block_until_ready((spk_embs, x_out))
    assert spk_embs.shape == (B, cfg["num_query_emb"], cfg["ref_out_dim"])
    assert x_out.shape == (B, T, cfg["encoder_hidden"])
    assert jnp.all(jnp.isfinite(spk_embs)) and jnp.all(jnp.isfinite(x_out))

    # masked path (all-valid mask must reproduce the unmasked result)
    mask = jnp.ones((B, T), dtype=bool)
    spk_m, x_m = reference_encoder_forward(prep, cfg, x_in, key_padding_mask=mask)
    jax.block_until_ready((spk_m, x_m))
    assert jnp.all(jnp.isfinite(spk_m)) and jnp.all(jnp.isfinite(x_m))
    assert jnp.allclose(spk_m, spk_embs, atol=1e-5) and jnp.allclose(x_m, x_out, atol=1e-5)

    print("KERNEL_OK")
</pallas_src>

<mosaic_0001>
module attributes {stable_mosaic.version = 11 : i64} {
  func.func @_encoder_kernel(%arg0: i32, %arg1: i32, %arg2: memref<1x8x32xf32, #tpu.memory_space<vmem>>, %arg3: memref<1x1x8xf32, #tpu.memory_space<vmem>>, %arg4: memref<8x64xf32, #tpu.memory_space<vmem>>, %arg5: memref<32x64xbf16, #tpu.memory_space<vmem>>, %arg6: memref<1x64xf32, #tpu.memory_space<vmem>>, %arg7: memref<1x1x64xf32, #tpu.memory_space<vmem>>, %arg8: memref<1x1x64xf32, #tpu.memory_space<vmem>>, %arg9: memref<1x64x256xbf16, #tpu.memory_space<vmem>>, %arg10: memref<1x64x256xbf16, #tpu.memory_space<vmem>>, %arg11: memref<1x64x256xbf16, #tpu.memory_space<vmem>>, %arg12: memref<1x1x256xf32, #tpu.memory_space<vmem>>, %arg13: memref<1x1x256xf32, #tpu.memory_space<vmem>>, %arg14: memref<1x1x256xf32, #tpu.memory_space<vmem>>, %arg15: memref<1x256x64xbf16, #tpu.memory_space<vmem>>, %arg16: memref<1x1x64xf32, #tpu.memory_space<vmem>>, %arg17: memref<1x1x64xf32, #tpu.memory_space<vmem>>, %arg18: memref<1x1x64xf32, #tpu.memory_space<vmem>>, %arg19: memref<1x320x128xbf16, #tpu.memory_space<vmem>>, %arg20: memref<1x1x128xf32, #tpu.memory_space<vmem>>, %arg21: memref<1x128x64xbf16, #tpu.memory_space<vmem>>, %arg22: memref<1x1x64xf32, #tpu.memory_space<vmem>>, %arg23: memref<1x64xf32, #tpu.memory_space<vmem>>, %arg24: memref<1x64xf32, #tpu.memory_space<vmem>>, %arg25: memref<8x64xf32, #tpu.memory_space<vmem>>, %arg26: memref<64x128xbf16, #tpu.memory_space<vmem>>, %arg27: memref<1x128xf32, #tpu.memory_space<vmem>>, %arg28: memref<64x128xbf16, #tpu.memory_space<vmem>>, %arg29: memref<1x128xf32, #tpu.memory_space<vmem>>, %arg30: memref<64x128xbf16, #tpu.memory_space<vmem>>, %arg31: memref<1x128xf32, #tpu.memory_space<vmem>>, %arg32: memref<128x64xbf16, #tpu.memory_space<vmem>>, %arg33: memref<1x64xf32, #tpu.memory_space<vmem>>, %arg34: memref<64x32xbf16, #tpu.memory_space<vmem>>, %arg35: memref<1x32xf32, #tpu.memory_space<vmem>>, %arg36: memref<1x8x32xf32, #tpu.memory_space<vmem>>, %arg37: memref<1x8x64xf32, #tpu.memory_space<vmem>>, %arg38: memref<8x64xf32, #tpu.memory_space<vmem>>, %arg39: memref<8x320xf32, #tpu.memory_space<vmem>>) attributes {dimension_semantics = [#tpu.dimension_semantics<parallel>, #tpu.dimension_semantics<arbitrary>], iteration_bounds = array<i64: 2, 2>, scalar_prefetch = 0 : i64, scratch_operands = 2 : i64, tpu.core_type = #tpu.core_type<tc>, window_params = [{transform_indices = @transform_0, window_bounds = array<i64: 1, 8, 32>}, {transform_indices = @transform_1, window_bounds = array<i64: 1, 1, 8>}, {pipeline_mode = #tpu.pipeline_mode<synchronous>, transform_indices = @transform_2, window_bounds = array<i64: 8, 64>}, {pipeline_mode = #tpu.pipeline_mode<synchronous>, transform_indices = @transform_3, window_bounds = array<i64: 32, 64>}, {pipeline_mode = #tpu.pipeline_mode<synchronous>, transform_indices = @transform_4, window_bounds = array<i64: 1, 64>}, {transform_indices = @transform_5, window_bounds = array<i64: 1, 1, 64>}, {transform_indices = @transform_6, window_bounds = array<i64: 1, 1, 64>}, {transform_indices = @transform_7, window_bounds = array<i64: 1, 64, 256>}, {transform_indices = @transform_8, window_bounds = array<i64: 1, 64, 256>}, {transform_indices = @transform_9, window_bounds = array<i64: 1, 64, 256>}, {transform_indices = @transform_10, window_bounds = array<i64: 1, 1, 256>}, {transform_indices = @transform_11, window_bounds = array<i64: 1, 1, 256>}, {transform_indices = @transform_12, window_bounds = array<i64: 1, 1, 256>}, {transform_indices = @transform_13, window_bounds = array<i64: 1, 256, 64>}, {transform_indices = @transform_14, window_bounds = array<i64: 1, 1, 64>}, {transform_indices = @transform_15, window_bounds = array<i64: 1, 1, 64>}, {transform_indices = @transform_16, window_bounds = array<i64: 1, 1, 64>}, {transform_indices = @transform_17, window_bounds = array<i64: 1, 320, 128>}, {transform_indices = @transform_18, window_bounds = array<i64: 1, 1, 128>}, {transform_indices = @transform_19, window_bounds = array<i64: 1, 128, 64>}, {transform_indices = @transform_20, window_bounds = array<i64: 1, 1, 64>}, {pipeline_mode = #tpu.pipeline_mode<synchronous>, transform_indices = @transform_21, window_bounds = array<i64: 1, 64>}, {pipeline_mode = #tpu.pipeline_mode<synchronous>, transform_indices = @transform_22, window_bounds = array<i64: 1, 64>}, {pipeline_mode = #tpu.pipeline_mode<synchronous>, transform_indices = @transform_23, window_bounds = array<i64: 8, 64>}, {pipeline_mode = #tpu.pipeline_mode<synchronous>, transform_indices = @transform_24, window_bounds = array<i64: 64, 128>}, {pipeline_mode = #tpu.pipeline_mode<synchronous>, transform_indices = @transform_25, window_bounds = array<i64: 1, 128>}, {pipeline_mode = #tpu.pipeline_mode<synchronous>, transform_indices = @transform_26, window_bounds = array<i64: 64, 128>}, {pipeline_mode = #tpu.pipeline_mode<synchronous>, transform_indices = @transform_27, window_bounds = array<i64: 1, 128>}, {pipeline_mode = #tpu.pipeline_mode<synchronous>, transform_indices = @transform_28, window_bounds = array<i64: 64, 128>}, {pipeline_mode = #tpu.pipeline_mode<synchronous>, transform_indices = @transform_29, window_bounds = array<i64: 1, 128>}, {pipeline_mode = #tpu.pipeline_mode<synchronous>, transform_indices = @transform_30, window_bounds = array<i64: 128, 64>}, {pipeline_mode = #tpu.pipeline_mode<synchronous>, transform_indices = @transform_31, window_bounds = array<i64: 1, 64>}, {pipeline_mode = #tpu.pipeline_mode<synchronous>, transform_indices = @transform_32, window_bounds = array<i64: 64, 32>}, {pipeline_mode = #tpu.pipeline_mode<synchronous>, transform_indices = @transform_33, window_bounds = array<i64: 1, 32>}, {transform_indices = @transform_34, window_bounds = array<i64: 1, 8, 32>}, {transform_indices = @transform_35, window_bounds = array<i64: 1, 8, 64>}]} {
    %c0_i32 = arith.constant 0 : i32
    %0 = arith.cmpi eq, %arg1, %c0_i32 : i32
    %1 = arith.extui %0 : i1 to i32
    %c0_i32_0 = arith.constant 0 : i32
    %2 = arith.cmpi ne, %1, %c0_i32_0 : i32
    scf.if %2 {
      %c0_88 = arith.constant 0 : index
      %c0_89 = arith.constant 0 : index
      %c0_90 = arith.constant 0 : index
      %172 = vector.load %arg2[%c0_88, %c0_89, %c0_90] : memref<1x8x32xf32, #tpu.memory_space<vmem>>, vector<1x8x32xf32>
      %173 = vector.shape_cast %172 : vector<1x8x32xf32> to vector<8x32xf32>
      %c0_91 = arith.constant 0 : index
      %c0_92 = arith.constant 0 : index
      %174 = vector.load %arg5[%c0_91, %c0_92] : memref<32x64xbf16, #tpu.memory_space<vmem>>, vector<32x64xbf16>
      %175 = arith.truncf %173 : vector<8x32xf32> to vector<8x32xbf16>
      %cst_93 = arith.constant dense<0.000000e+00> : vector<8x64xf32>
      %176 = tpu.matmul %175, %174, %cst_93 {dimension_numbers = #tpu.dot_dimension_numbers<[1], [0], [0], [1], [0, 0, 1, 1], [], []>} : vector<8x32xbf16>, vector<32x64xbf16>, vector<8x64xf32> -> vector<8x64xf32>
      %c0_94 = arith.constant 0 : index
      %c0_95 = arith.constant 0 : index
      %177 = vector.load %arg6[%c0_94, %c0_95] : memref<1x64xf32, #tpu.memory_space<vmem>>, vector<1x64xf32>
      %178 = vector.broadcast %177 : vector<1x64xf32> to vector<8x64xf32>
      %179 = arith.addf %176, %178 : vector<8x64xf32>
      %c0_96 = arith.constant 0 : index
      %c0_97 = arith.constant 0 : index
      %180 = vector.load %arg4[%c0_96, %c0_97] : memref<8x64xf32, #tpu.memory_space<vmem>>, vector<8x64xf32>
      %181 = arith.addf %179, %180 : vector<8x64xf32>
      %c0_98 = arith.constant 0 : index
      %c0_99 = arith.constant 0 : index
      %182 = vector.load %arg38[%c0_98, %c0_99] : memref<8x64xf32, #tpu.memory_space<vmem>>, vector<8x64xf32>
      tpu.vector_store %arg38[%c0_98, %c0_99], %181 {strides = array<i32>} : memref<8x64xf32, #tpu.memory_space<vmem>>, vector<8x64xf32>,
      %cst_100 = arith.constant 0.000000e+00 : f32
      %183 = vector.broadcast %cst_100 : f32 to vector<8x320xf32>
      %c0_101 = arith.constant 0 : index
      %c0_102 = arith.constant 0 : index
      %184 = vector.load %arg39[%c0_101, %c0_102] : memref<8x320xf32, #tpu.memory_space<vmem>>, vector<8x320xf32>
      tpu.vector_store %arg39[%c0_101, %c0_102], %183 {strides = array<i32>} : memref<8x320xf32, #tpu.memory_space<vmem>>, vector<8x320xf32>,
    } else {
    }
    %c0 = arith.constant 0 : index
    %c0_1 = arith.constant 0 : index
    %3 = vector.load %arg38[%c0, %c0_1] : memref<8x64xf32, #tpu.memory_space<vmem>>, vector<8x64xf32>
    %c0_2 = arith.constant 0 : index
    %c0_3 = arith.constant 0 : index
    %c0_4 = arith.constant 0 : index
    %4 = vector.load %arg7[%c0_2, %c0_3, %c0_4] : memref<1x1x64xf32, #tpu.memory_space<vmem>>, vector<1x1x64xf32>
    %5 = vector.shape_cast %4 : vector<1x1x64xf32> to vector<1x64xf32>
    %c0_5 = arith.constant 0 : index
    %c0_6 = arith.constant 0 : index
    %c0_7 = arith.constant 0 : index
    %6 = vector.load %arg8[%c0_5, %c0_6, %c0_7] : memref<1x1x64xf32, #tpu.memory_space<vmem>>, vector<1x1x64xf32>
    %7 = vector.shape_cast %6 : vector<1x1x64xf32> to vector<1x64xf32>
    %cst = arith.constant dense<0.000000e+00> : vector<8xf32>
    %8 = vector.multi_reduction <add>, %3, %cst [1] : vector<8x64xf32> to vector<8xf32>
    %9 = vector.shape_cast %8 : vector<8xf32> to vector<8x1xf32>
    %cst_8 = arith.constant 6.400000e+01 : f32
    %10 = vector.broadcast %cst_8 : f32 to vector<8x1xf32>
    %11 = arith.divf %9, %10 : vector<8x1xf32>
    %12 = vector.broadcast %11 : vector<8x1xf32> to vector<8x64xf32>
    %13 = arith.subf %3, %12 : vector<8x64xf32>
    %14 = arith.mulf %13, %13 : vector<8x64xf32>
    %cst_9 = arith.constant dense<0.000000e+00> : vector<8xf32>
    %15 = vector.multi_reduction <add>, %14, %cst_9 [1] : vector<8x64xf32> to vector<8xf32>
    %16 = vector.shape_cast %15 : vector<8xf32> to vector<8x1xf32>
    %cst_10 = arith.constant 6.400000e+01 : f32
    %17 = vector.broadcast %cst_10 : f32 to vector<8x1xf32>
    %18 = arith.divf %16, %17 : vector<8x1xf32>
    %19 = vector.broadcast %11 : vector<8x1xf32> to vector<8x64xf32>
    %20 = arith.subf %3, %19 : vector<8x64xf32>
    %cst_11 = arith.constant 9.99999974E-6 : f32
    %21 = vector.broadcast %cst_11 : f32 to vector<8x1xf32>
    %22 = arith.addf %18, %21 : vector<8x1xf32>
    %23 = math.rsqrt %22 : vector<8x1xf32>
    %24 = vector.broadcast %23 : vector<8x1xf32> to vector<8x64xf32>
    %25 = arith.mulf %20, %24 : vector<8x64xf32>
    %26 = vector.broadcast %5 : vector<1x64xf32> to vector<8x64xf32>
    %27 = arith.mulf %25, %26 : vector<8x64xf32>
    %28 = vector.broadcast %7 : vector<1x64xf32> to vector<8x64xf32>
    %29 = arith.addf %27, %28 : vector<8x64xf32>
    %c0_12 = arith.constant 0 : index
    %c0_13 = arith.constant 0 : index
    %c0_14 = arith.constant 0 : index
    %30 = vector.load %arg9[%c0_12, %c0_13, %c0_14] : memref<1x64x256xbf16, #tpu.memory_space<vmem>>, vector<1x64x256xbf16>
    %31 = vector.shape_cast %30 : vector<1x64x256xbf16> to vector<64x256xbf16>
    %32 = arith.truncf %29 : vector<8x64xf32> to vector<8x64xbf16>
    %cst_15 = arith.constant dense<0.000000e+00> : vector<8x256xf32>
    %33 = tpu.matmul %32, %31, %cst_15 {dimension_numbers = #tpu.dot_dimension_numbers<[1], [0], [0], [1], [0, 0, 1, 1], [], []>} : vector<8x64xbf16>, vector<64x256xbf16>, vector<8x256xf32> -> vector<8x256xf32>
    %c0_16 = arith.constant 0 : index
    %c0_17 = arith.constant 0 : index
    %c0_18 = arith.constant 0 : index
    %34 = vector.load %arg12[%c0_16, %c0_17, %c0_18] : memref<1x1x256xf32, #tpu.memory_space<vmem>>, vector<1x1x256xf32>
    %35 = vector.shape_cast %34 : vector<1x1x256xf32> to vector<1x256xf32>
    %36 = vector.broadcast %35 : vector<1x256xf32> to vector<8x256xf32>
    %37 = arith.addf %33, %36 : vector<8x256xf32>
    %c0_19 = arith.constant 0 : index
    %c0_20 = arith.constant 0 : index
    %c0_21 = arith.constant 0 : index
    %38 = vector.load %arg10[%c0_19, %c0_20, %c0_21] : memref<1x64x256xbf16, #tpu.memory_space<vmem>>, vector<1x64x256xbf16>
    %39 = vector.shape_cast %38 : vector<1x64x256xbf16> to vector<64x256xbf16>
    %40 = arith.truncf %29 : vector<8x64xf32> to vector<8x64xbf16>
    %cst_22 = arith.constant dense<0.000000e+00> : vector<8x256xf32>
    %41 = tpu.matmul %40, %39, %cst_22 {dimension_numbers = #tpu.dot_dimension_numbers<[1], [0], [0], [1], [0, 0, 1, 1], [], []>} : vector<8x64xbf16>, vector<64x256xbf16>, vector<8x256xf32> -> vector<8x256xf32>
    %c0_23 = arith.constant 0 : index
    %c0_24 = arith.constant 0 : index
    %c0_25 = arith.constant 0 : index
    %42 = vector.load %arg13[%c0_23, %c0_24, %c0_25] : memref<1x1x256xf32, #tpu.memory_space<vmem>>, vector<1x1x256xf32>
    %43 = vector.shape_cast %42 : vector<1x1x256xf32> to vector<1x256xf32>
    %44 = vector.broadcast %43 : vector<1x256xf32> to vector<8x256xf32>
    %45 = arith.addf %41, %44 : vector<8x256xf32>
    %c0_26 = arith.constant 0 : index
    %c0_27 = arith.constant 0 : index
    %c0_28 = arith.constant 0 : index
    %46 = vector.load %arg11[%c0_26, %c0_27, %c0_28] : memref<1x64x256xbf16, #tpu.memory_space<vmem>>, vector<1x64x256xbf16>
    %47 = vector.shape_cast %46 : vector<1x64x256xbf16> to vector<64x256xbf16>
    %48 = arith.truncf %29 : vector<8x64xf32> to vector<8x64xbf16>
    %cst_29 = arith.constant dense<0.000000e+00> : vector<8x256xf32>
    %49 = tpu.matmul %48, %47, %cst_29 {dimension_numbers = #tpu.dot_dimension_numbers<[1], [0], [0], [1], [0, 0, 1, 1], [], []>} : vector<8x64xbf16>, vector<64x256xbf16>, vector<8x256xf32> -> vector<8x256xf32>
    %c0_30 = arith.constant 0 : index
    %c0_31 = arith.constant 0 : index
    %c0_32 = arith.constant 0 : index
    %50 = vector.load %arg14[%c0_30, %c0_31, %c0_32] : memref<1x1x256xf32, #tpu.memory_space<vmem>>, vector<1x1x256xf32>
    %51 = vector.shape_cast %50 : vector<1x1x256xf32> to vector<1x256xf32>
    %52 = vector.broadcast %51 : vector<1x256xf32> to vector<8x256xf32>
    %53 = arith.addf %49, %52 : vector<8x256xf32>
    %c0_33 = arith.constant 0 : index
    %c0_34 = arith.constant 0 : index
    %c0_35 = arith.constant 0 : index
    %54 = vector.load %arg15[%c0_33, %c0_34, %c0_35] : memref<1x256x64xbf16, #tpu.memory_space<vmem>>, vector<1x256x64xbf16>
    %55 = vector.shape_cast %54 : vector<1x256x64xbf16> to vector<256x64xbf16>
    %c0_36 = arith.constant 0 : index
    %c0_37 = arith.constant 0 : index
    %c0_38 = arith.constant 0 : index
    %56 = vector.load %arg3[%c0_36, %c0_37, %c0_38] : memref<1x1x8xf32, #tpu.memory_space<vmem>>, vector<1x1x8xf32>
    %57 = vector.shape_cast %56 : vector<1x1x8xf32> to vector<1x8xf32>
    %58 = arith.truncf %37 : vector<8x256xf32> to vector<8x256xbf16>
    %59 = arith.truncf %45 : vector<8x256xf32> to vector<8x256xbf16>
    %60 = arith.truncf %53 : vector<8x256xf32> to vector<8x256xbf16>
    %cst_39 = arith.constant 0.000000e+00 : f32
    %61 = vector.broadcast %cst_39 : f32 to vector<8x64xf32>
    %62 = vector.extract_strided_slice %58 {offsets = [0, 0], sizes = [8, 128], strides = [1, 1]} : vector<8x256xbf16> to vector<8x128xbf16>
    %63 = vector.extract_strided_slice %59 {offsets = [0, 0], sizes = [8, 128], strides = [1, 1]} : vector<8x256xbf16> to vector<8x128xbf16>
    %cst_40 = arith.constant dense<0.000000e+00> : vector<8x8xf32>
    %64 = tpu.matmul %62, %63, %cst_40 {dimension_numbers = #tpu.dot_dimension_numbers<[1], [1], [0], [0], [0, 0, 1, 0], [], []>} : vector<8x128xbf16>, vector<8x128xbf16>, vector<8x8xf32> -> vector<8x8xf32>
    %65 = vector.broadcast %57 : vector<1x8xf32> to vector<8x8xf32>
    %66 = arith.addf %64, %65 : vector<8x8xf32>
    %cst_41 = arith.constant dense<0xFF800000> : vector<8xf32>
    %67 = vector.multi_reduction <maximumf>, %66, %cst_41 [1] : vector<8x8xf32> to vector<8xf32>
    %68 = vector.shape_cast %67 : vector<8xf32> to vector<8x1xf32>
    %69 = vector.broadcast %68 : vector<8x1xf32> to vector<8x8xf32>
    %70 = arith.subf %66, %69 : vector<8x8xf32>
    %71 = math.exp %70 : vector<8x8xf32>
    %cst_42 = arith.constant dense<0.000000e+00> : vector<8xf32>
    %72 = vector.multi_reduction <add>, %71, %cst_42 [1] : vector<8x8xf32> to vector<8xf32>
    %73 = vector.shape_cast %72 : vector<8xf32> to vector<8x1xf32>
    %74 = vector.broadcast %73 : vector<8x1xf32> to vector<8x8xf32>
    %75 = arith.divf %71, %74 : vector<8x8xf32>
    %76 = arith.truncf %75 : vector<8x8xf32> to vector<8x8xbf16>
    %77 = vector.extract_strided_slice %60 {offsets = [0, 0], sizes = [8, 128], strides = [1, 1]} : vector<8x256xbf16> to vector<8x128xbf16>
    %cst_43 = arith.constant dense<0.000000e+00> : vector<8x128xf32>
    %78 = tpu.matmul %76, %77, %cst_43 {dimension_numbers = #tpu.dot_dimension_numbers<[1], [0], [0], [1], [0, 0, 1, 1], [], []>} : vector<8x8xbf16>, vector<8x128xbf16>, vector<8x128xf32> -> vector<8x128xf32>
    %79 = arith.truncf %78 : vector<8x128xf32> to vector<8x128xbf16>
    %80 = vector.extract_strided_slice %55 {offsets = [0, 0], sizes = [128, 64], strides = [1, 1]} : vector<256x64xbf16> to vector<128x64xbf16>
    %cst_44 = arith.constant dense<0.000000e+00> : vector<8x64xf32>
    %81 = tpu.matmul %79, %80, %cst_44 {dimension_numbers = #tpu.dot_dimension_numbers<[1], [0], [0], [1], [0, 0, 1, 1], [], []>} : vector<8x128xbf16>, vector<128x64xbf16>, vector<8x64xf32> -> vector<8x64xf32>
    %82 = arith.addf %61, %81 : vector<8x64xf32>
    %83 = vector.extract_strided_slice %58 {offsets = [0, 128], sizes = [8, 128], strides = [1, 1]} : vector<8x256xbf16> to vector<8x128xbf16>
    %84 = vector.extract_strided_slice %59 {offsets = [0, 128], sizes = [8, 128], strides = [1, 1]} : vector<8x256xbf16> to vector<8x128xbf16>
    %cst_45 = arith.constant dense<0.000000e+00> : vector<8x8xf32>
    %85 = tpu.matmul %83, %84, %cst_45 {dimension_numbers = #tpu.dot_dimension_numbers<[1], [1], [0], [0], [0, 0, 1, 0], [], []>} : vector<8x128xbf16>, vector<8x128xbf16>, vector<8x8xf32> -> vector<8x8xf32>
    %86 = vector.broadcast %57 : vector<1x8xf32> to vector<8x8xf32>
    %87 = arith.addf %85, %86 : vector<8x8xf32>
    %cst_46 = arith.constant dense<0xFF800000> : vector<8xf32>
    %88 = vector.multi_reduction <maximumf>, %87, %cst_46 [1] : vector<8x8xf32> to vector<8xf32>
    %89 = vector.shape_cast %88 : vector<8xf32> to vector<8x1xf32>
    %90 = vector.broadcast %89 : vector<8x1xf32> to vector<8x8xf32>
    %91 = arith.subf %87, %90 : vector<8x8xf32>
    %92 = math.exp %91 : vector<8x8xf32>
    %cst_47 = arith.constant dense<0.000000e+00> : vector<8xf32>
    %93 = vector.multi_reduction <add>, %92, %cst_47 [1] : vector<8x8xf32> to vector<8xf32>
    %94 = vector.shape_cast %93 : vector<8xf32> to vector<8x1xf32>
    %95 = vector.broadcast %94 : vector<8x1xf32> to vector<8x8xf32>
    %96 = arith.divf %92, %95 : vector<8x8xf32>
    %97 = arith.truncf %96 : vector<8x8xf32> to vector<8x8xbf16>
    %98 = vector.extract_strided_slice %60 {offsets = [0, 128], sizes = [8, 128], strides = [1, 1]} : vector<8x256xbf16> to vector<8x128xbf16>
    %cst_48 = arith.constant dense<0.000000e+00> : vector<8x128xf32>
    %99 = tpu.matmul %97, %98, %cst_48 {dimension_numbers = #tpu.dot_dimension_numbers<[1], [0], [0], [1], [0, 0, 1, 1], [], []>} : vector<8x8xbf16>, vector<8x128xbf16>, vector<8x128xf32> -> vector<8x128xf32>
    %100 = arith.truncf %99 : vector<8x128xf32> to vector<8x128xbf16>
    %101 = vector.extract_strided_slice %55 {offsets = [128, 0], sizes = [128, 64], strides = [1, 1]} : vector<256x64xbf16> to vector<128x64xbf16>
    %cst_49 = arith.constant dense<0.000000e+00> : vector<8x64xf32>
    %102 = tpu.matmul %100, %101, %cst_49 {dimension_numbers = #tpu.dot_dimension_numbers<[1], [0], [0], [1], [0, 0, 1, 1], [], []>} : vector<8x128xbf16>, vector<128x64xbf16>, vector<8x64xf32> -> vector<8x64xf32>
    %103 = arith.addf %82, %102 : vector<8x64xf32>
    %104 = arith.addf %3, %103 : vector<8x64xf32>
    %c0_50 = arith.constant 0 : index
    %c0_51 = arith.constant 0 : index
    %c0_52 = arith.constant 0 : index
    %105 = vector.load %arg16[%c0_50, %c0_51, %c0_52] : memref<1x1x64xf32, #tpu.memory_space<vmem>>, vector<1x1x64xf32>
    %106 = vector.shape_cast %105 : vector<1x1x64xf32> to vector<1x64xf32>
    %107 = vector.broadcast %106 : vector<1x64xf32> to vector<8x64xf32>
    %108 = arith.addf %104, %107 : vector<8x64xf32>
    %c0_53 = arith.constant 0 : index
    %c0_54 = arith.constant 0 : index
    %c0_55 = arith.constant 0 : index
    %109 = vector.load %arg17[%c0_53, %c0_54, %c0_55] : memref<1x1x64xf32, #tpu.memory_space<vmem>>, vector<1x1x64xf32>
    %110 = vector.shape_cast %109 : vector<1x1x64xf32> to vector<1x64xf32>
    %c0_56 = arith.constant 0 : index
    %c0_57 = arith.constant 0 : index
    %c0_58 = arith.constant 0 : index
    %111 = vector.load %arg18[%c0_56, %c0_57, %c0_58] : memref<1x1x64xf32, #tpu.memory_space<vmem>>, vector<1x1x64xf32>
    %112 = vector.shape_cast %111 : vector<1x1x64xf32> to vector<1x64xf32>
    %cst_59 = arith.constant dense<0.000000e+00> : vector<8xf32>
    %113 = vector.multi_reduction <add>, %108, %cst_59 [1] : vector<8x64xf32> to vector<8xf32>
    %114 = vector.shape_cast %113 : vector<8xf32> to vector<8x1xf32>
    %cst_60 = arith.constant 6.400000e+01 : f32
    %115 = vector.broadcast %cst_60 : f32 to vector<8x1xf32>
    %116 = arith.divf %114, %115 : vector<8x1xf32>
    %117 = vector.broadcast %116 : vector<8x1xf32> to vector<8x64xf32>
    %118 = arith.subf %108, %117 : vector<8x64xf32>
    %119 = arith.mulf %118, %118 : vector<8x64xf32>
    %cst_61 = arith.constant dense<0.000000e+00> : vector<8xf32>
    %120 = vector.multi_reduction <add>, %119, %cst_61 [1] : vector<8x64xf32> to vector<8xf32>
    %121 = vector.shape_cast %120 : vector<8xf32> to vector<8x1xf32>
    %cst_62 = arith.constant 6.400000e+01 : f32
    %122 = vector.broadcast %cst_62 : f32 to vector<8x1xf32>
    %123 = arith.divf %121, %122 : vector<8x1xf32>
    %124 = vector.broadcast %116 : vector<8x1xf32> to vector<8x64xf32>
    %125 = arith.subf %108, %124 : vector<8x64xf32>
    %cst_63 = arith.constant 9.99999974E-6 : f32
    %126 = vector.broadcast %cst_63 : f32 to vector<8x1xf32>
    %127 = arith.addf %123, %126 : vector<8x1xf32>
    %128 = math.rsqrt %127 : vector<8x1xf32>
    %129 = vector.broadcast %128 : vector<8x1xf32> to vector<8x64xf32>
    %130 = arith.mulf %125, %129 : vector<8x64xf32>
    %131 = vector.broadcast %110 : vector<1x64xf32> to vector<8x64xf32>
    %132 = arith.mulf %130, %131 : vector<8x64xf32>
    %133 = vector.broadcast %112 : vector<1x64xf32> to vector<8x64xf32>
    %134 = arith.addf %132, %133 : vector<8x64xf32>
    %135 = vector.extract_strided_slice %134 {offsets = [0, 0], sizes = [6, 64], strides = [1, 1]} : vector<8x64xf32> to vector<6x64xf32>
    %c2 = arith.constant 2 : index
    %c0_64 = arith.constant 0 : index
    %136 = vector.load %arg39[%c2, %c0_64] : memref<8x320xf32, #tpu.memory_space<vmem>>, vector<6x64xf32>
    tpu.vector_store %arg39[%c2, %c0_64], %135 {strides = array<i32>} : memref<8x320xf32, #tpu.memory_space<vmem>>, vector<6x64xf32>,
    %137 = vector.extract_strided_slice %134 {offsets = [0, 0], sizes = [7, 64], strides = [1, 1]} : vector<8x64xf32> to vector<7x64xf32>
    %c1 = arith.constant 1 : index
    %c64 = arith.constant 64 : index
    %138 = vector.load %arg39[%c1, %c64] : memref<8x320xf32, #tpu.memory_space<vmem>>, vector<7x64xf32>
    tpu.vector_store %arg39[%c1, %c64], %137 {strides = array<i32>} : memref<8x320xf32, #tpu.memory_space<vmem>>, vector<7x64xf32>,
    %c0_65 = arith.constant 0 : index
    %c128 = arith.constant 128 : index
    %139 = vector.load %arg39[%c0_65, %c128] : memref<8x320xf32, #tpu.memory_space<vmem>>, vector<8x64xf32>
    tpu.vector_store %arg39[%c0_65, %c128], %134 {strides = array<i32>} : memref<8x320xf32, #tpu.memory_space<vmem>>, vector<8x64xf32>,
    %140 = vector.extract_strided_slice %134 {offsets = [1, 0], sizes = [7, 64], strides = [1, 1]} : vector<8x64xf32> to vector<7x64xf32>
    %c0_66 = arith.constant 0 : index
    %c192 = arith.constant 192 : index
    %141 = vector.load %arg39[%c0_66, %c192] : memref<8x320xf32, #tpu.memory_space<vmem>>, vector<7x64xf32>
    tpu.vector_store %arg39[%c0_66, %c192], %140 {strides = array<i32>} : memref<8x320xf32, #tpu.memory_space<vmem>>, vector<7x64xf32>,
    %142 = vector.extract_strided_slice %134 {offsets = [2, 0], sizes = [6, 64], strides = [1, 1]} : vector<8x64xf32> to vector<6x64xf32>
    %c0_67 = arith.constant 0 : index
    %c256 = arith.constant 256 : index
    %143 = vector.load %arg39[%c0_67, %c256] : memref<8x320xf32, #tpu.memory_space<vmem>>, vector<6x64xf32>
    tpu.vector_store %arg39[%c0_67, %c256], %142 {strides = array<i32>} : memref<8x320xf32, #tpu.memory_space<vmem>>, vector<6x64xf32>,
    %c0_68 = arith.constant 0 : index
    %c0_69 = arith.constant 0 : index
    %144 = vector.load %arg39[%c0_68, %c0_69] : memref<8x320xf32, #tpu.memory_space<vmem>>, vector<8x320xf32>
    %c0_70 = arith.constant 0 : index
    %c0_71 = arith.constant 0 : index
    %c0_72 = arith.constant 0 : index
    %145 = vector.load %arg19[%c0_70, %c0_71, %c0_72] : memref<1x320x128xbf16, #tpu.memory_space<vmem>>, vector<1x320x128xbf16>
    %146 = vector.shape_cast %145 : vector<1x320x128xbf16> to vector<320x128xbf16>
    %147 = arith.truncf %144 : vector<8x320xf32> to vector<8x320xbf16>
    %cst_73 = arith.constant dense<0.000000e+00> : vector<8x128xf32>
    %148 = tpu.matmul %147, %146, %cst_73 {dimension_numbers = #tpu.dot_dimension_numbers<[1], [0], [0], [1], [0, 0, 1, 1], [], []>} : vector<8x320xbf16>, vector<320x128xbf16>, vector<8x128xf32> -> vector<8x128xf32>
    %c0_74 = arith.constant 0 : index
    %c0_75 = arith.constant 0 : index
    %c0_76 = arith.constant 0 : index
    %149 = vector.load %arg20[%c0_74, %c0_75, %c0_76] : memref<1x1x128xf32, #tpu.memory_space<vmem>>, vector<1x1x128xf32>
    %150 = vector.shape_cast %149 : vector<1x1x128xf32> to vector<1x128xf32>
    %151 = vector.broadcast %150 : vector<1x128xf32> to vector<8x128xf32>
    %152 = arith.addf %148, %151 : vector<8x128xf32>
    %153 = arith.negf %152 : vector<8x128xf32>
    %154 = math.exp %153 : vector<8x128xf32>
    %cst_77 = arith.constant 1.000000e+00 : f32
    %155 = vector.broadcast %cst_77 : f32 to vector<8x128xf32>
    %156 = arith.addf %155, %154 : vector<8x128xf32>
    %157 = arith.divf %155, %156 : vector<8x128xf32>
    %158 = arith.mulf %152, %157 : vector<8x128xf32>
    %c0_78 = arith.constant 0 : index
    %c0_79 = arith.constant 0 : index
    %c0_80 = arith.constant 0 : index
    %159 = vector.load %arg21[%c0_78, %c0_79, %c0_80] : memref<1x128x64xbf16, #tpu.memory_space<vmem>>, vector<1x128x64xbf16>
    %160 = vector.shape_cast %159 : vector<1x128x64xbf16> to vector<128x64xbf16>
    %161 = arith.truncf %158 : vector<8x128xf32> to vector<8x128xbf16>
    %cst_81 = arith.constant dense<0.000000e+00> : vector<8x64xf32>
    %162 = tpu.matmul %161, %160, %cst_81 {dimension_numbers = #tpu.dot_dimension_numbers<[1], [0], [0], [1], [0, 0, 1, 1], [], []>} : vector<8x128xbf16>, vector<128x64xbf16>, vector<8x64xf32> -> vector<8x64xf32>
    %163 = arith.addf %108, %162 : vector<8x64xf32>
    %c0_82 = arith.constant 0 : index
    %c0_83 = arith.constant 0 : index
    %c0_84 = arith.constant 0 : index
    %164 = vector.load %arg22[%c0_82, %c0_83, %c0_84] : memref<1x1x64xf32, #tpu.memory_space<vmem>>, vector<1x1x64xf32>
    %165 = vector.shape_cast %164 : vector<1x1x64xf32> to vector<1x64xf32>
    %166 = vector.broadcast %165 : vector<1x64xf32> to vector<8x64xf32>
    %167 = arith.addf %163, %166 : vector<8x64xf32>
    %c0_85 = arith.constant 0 : index
    %c0_86 = arith.constant 0 : index
    %168 = vector.load %arg38[%c0_85, %c0_86] : memref<8x64xf32, #tpu.memory_space<vmem>>, vector<8x64xf32>
    tpu.vector_store %arg38[%c0_85, %c0_86], %167 {strides = array<i32>} : memref<8x64xf32, #tpu.memory_space<vmem>>, vector<8x64xf32>,
    %c1_i32 = arith.constant 1 : i32
    %169 = arith.cmpi eq, %arg1, %c1_i32 : i32
    %170 = arith.extui %169 : i1 to i32
    %c0_i32_87 = arith.constant 0 : i32
    %171 = arith.cmpi ne, %170, %c0_i32_87 : i32
    scf.if %171 {
      %c0_88 = arith.constant 0 : index
      %c0_89 = arith.constant 0 : index
      %172 = vector.load %arg23[%c0_88, %c0_89] : memref<1x64xf32, #tpu.memory_space<vmem>>, vector<1x64xf32>
      %c0_90 = arith.constant 0 : index
      %c0_91 = arith.constant 0 : index
      %173 = vector.load %arg24[%c0_90, %c0_91] : memref<1x64xf32, #tpu.memory_space<vmem>>, vector<1x64xf32>
      %cst_92 = arith.constant dense<0.000000e+00> : vector<8xf32>
      %174 = vector.multi_reduction <add>, %167, %cst_92 [1] : vector<8x64xf32> to vector<8xf32>
      %175 = vector.shape_cast %174 : vector<8xf32> to vector<8x1xf32>
      %cst_93 = arith.constant 6.400000e+01 : f32
      %176 = vector.broadcast %cst_93 : f32 to vector<8x1xf32>
      %177 = arith.divf %175, %176 : vector<8x1xf32>
      %178 = vector.broadcast %177 : vector<8x1xf32> to vector<8x64xf32>
      %179 = arith.subf %167, %178 : vector<8x64xf32>
      %180 = arith.mulf %179, %179 : vector<8x64xf32>
      %cst_94 = arith.constant dense<0.000000e+00> : vector<8xf32>
      %181 = vector.multi_reduction <add>, %180, %cst_94 [1] : vector<8x64xf32> to vector<8xf32>
      %182 = vector.shape_cast %181 : vector<8xf32> to vector<8x1xf32>
      %cst_95 = arith.constant 6.400000e+01 : f32
      %183 = vector.broadcast %cst_95 : f32 to vector<8x1xf32>
      %184 = arith.divf %182, %183 : vector<8x1xf32>
      %185 = vector.broadcast %177 : vector<8x1xf32> to vector<8x64xf32>
      %186 = arith.subf %167, %185 : vector<8x64xf32>
      %cst_96 = arith.constant 9.99999974E-6 : f32
      %187 = vector.broadcast %cst_96 : f32 to vector<8x1xf32>
      %188 = arith.addf %184, %187 : vector<8x1xf32>
      %189 = math.rsqrt %188 : vector<8x1xf32>
      %190 = vector.broadcast %189 : vector<8x1xf32> to vector<8x64xf32>
      %191 = arith.mulf %186, %190 : vector<8x64xf32>
      %192 = vector.broadcast %172 : vector<1x64xf32> to vector<8x64xf32>
      %193 = arith.mulf %191, %192 : vector<8x64xf32>
      %194 = vector.broadcast %173 : vector<1x64xf32> to vector<8x64xf32>
      %195 = arith.addf %193, %194 : vector<8x64xf32>
      %c0_97 = arith.constant 0 : index
      %c0_98 = arith.constant 0 : index
      %c0_99 = arith.constant 0 : index
      %196 = vector.load %arg37[%c0_97, %c0_98, %c0_99] : memref<1x8x64xf32, #tpu.memory_space<vmem>>, vector<1x8x64xf32>
      %197 = vector.shape_cast %196 : vector<1x8x64xf32> to vector<8x64xf32>
      %198 = vector.shape_cast %195 : vector<8x64xf32> to vector<1x8x64xf32>
      tpu.vector_store %arg37[%c0_97, %c0_98, %c0_99], %198 {strides = array<i32>} : memref<1x8x64xf32, #tpu.memory_space<vmem>>, vector<1x8x64xf32>,
      %c0_100 = arith.constant 0 : index
      %c0_101 = arith.constant 0 : index
      %199 = vector.load %arg25[%c0_100, %c0_101] : memref<8x64xf32, #tpu.memory_space<vmem>>, vector<8x64xf32>
      %c0_102 = arith.constant 0 : index
      %c0_103 = arith.constant 0 : index
      %200 = vector.load %arg26[%c0_102, %c0_103] : memref<64x128xbf16, #tpu.memory_space<vmem>>, vector<64x128xbf16>
      %201 = arith.truncf %199 : vector<8x64xf32> to vector<8x64xbf16>
      %cst_104 = arith.constant dense<0.000000e+00> : vector<8x128xf32>
      %202 = tpu.matmul %201, %200, %cst_104 {dimension_numbers = #tpu.dot_dimension_numbers<[1], [0], [0], [1], [0, 0, 1, 1], [], []>} : vector<8x64xbf16>, vector<64x128xbf16>, vector<8x128xf32> -> vector<8x128xf32>
      %c0_105 = arith.constant 0 : index
      %c0_106 = arith.constant 0 : index
      %203 = vector.load %arg27[%c0_105, %c0_106] : memref<1x128xf32, #tpu.memory_space<vmem>>, vector<1x128xf32>
      %204 = vector.broadcast %203 : vector<1x128xf32> to vector<8x128xf32>
      %205 = arith.addf %202, %204 : vector<8x128xf32>
      %c0_107 = arith.constant 0 : index
      %c0_108 = arith.constant 0 : index
      %206 = vector.load %arg28[%c0_107, %c0_108] : memref<64x128xbf16, #tpu.memory_space<vmem>>, vector<64x128xbf16>
      %207 = arith.truncf %195 : vector<8x64xf32> to vector<8x64xbf16>
      %cst_109 = arith.constant dense<0.000000e+00> : vector<8x128xf32>
      %208 = tpu.matmul %207, %206, %cst_109 {dimension_numbers = #tpu.dot_dimension_numbers<[1], [0], [0], [1], [0, 0, 1, 1], [], []>} : vector<8x64xbf16>, vector<64x128xbf16>, vector<8x128xf32> -> vector<8x128xf32>
      %c0_110 = arith.constant 0 : index
      %c0_111 = arith.constant 0 : index
      %209 = vector.load %arg29[%c0_110, %c0_111] : memref<1x128xf32, #tpu.memory_space<vmem>>, vector<1x128xf32>
      %210 = vector.broadcast %209 : vector<1x128xf32> to vector<8x128xf32>
      %211 = arith.addf %208, %210 : vector<8x128xf32>
      %c0_112 = arith.constant 0 : index
      %c0_113 = arith.constant 0 : index
      %212 = vector.load %arg30[%c0_112, %c0_113] : memref<64x128xbf16, #tpu.memory_space<vmem>>, vector<64x128xbf16>
      %213 = arith.truncf %195 : vector<8x64xf32> to vector<8x64xbf16>
      %cst_114 = arith.constant dense<0.000000e+00> : vector<8x128xf32>
      %214 = tpu.matmul %213, %212, %cst_114 {dimension_numbers = #tpu.dot_dimension_numbers<[1], [0], [0], [1], [0, 0, 1, 1], [], []>} : vector<8x64xbf16>, vector<64x128xbf16>, vector<8x128xf32> -> vector<8x128xf32>
      %c0_115 = arith.constant 0 : index
      %c0_116 = arith.constant 0 : index
      %215 = vector.load %arg31[%c0_115, %c0_116] : memref<1x128xf32, #tpu.memory_space<vmem>>, vector<1x128xf32>
      %216 = vector.broadcast %215 : vector<1x128xf32> to vector<8x128xf32>
      %217 = arith.addf %214, %216 : vector<8x128xf32>
      %c0_117 = arith.constant 0 : index
      %c0_118 = arith.constant 0 : index
      %218 = vector.load %arg32[%c0_117, %c0_118] : memref<128x64xbf16, #tpu.memory_space<vmem>>, vector<128x64xbf16>
      %c0_119 = arith.constant 0 : index
      %c0_120 = arith.constant 0 : index
      %c0_121 = arith.constant 0 : index
      %219 = vector.load %arg3[%c0_119, %c0_120, %c0_121] : memref<1x1x8xf32, #tpu.memory_space<vmem>>, vector<1x1x8xf32>
      %220 = vector.shape_cast %219 : vector<1x1x8xf32> to vector<1x8xf32>
      %221 = arith.truncf %205 : vector<8x128xf32> to vector<8x128xbf16>
      %222 = arith.truncf %211 : vector<8x128xf32> to vector<8x128xbf16>
      %223 = arith.truncf %217 : vector<8x128xf32> to vector<8x128xbf16>
      %cst_122 = arith.constant 0.000000e+00 : f32
      %224 = vector.broadcast %cst_122 : f32 to vector<8x64xf32>
      %cst_123 = arith.constant dense<0.000000e+00> : vector<8x8xf32>
      %225 = tpu.matmul %221, %222, %cst_123 {dimension_numbers = #tpu.dot_dimension_numbers<[1], [1], [0], [0], [0, 0, 1, 0], [], []>} : vector<8x128xbf16>, vector<8x128xbf16>, vector<8x8xf32> -> vector<8x8xf32>
      %226 = vector.broadcast %220 : vector<1x8xf32> to vector<8x8xf32>
      %227 = arith.addf %225, %226 : vector<8x8xf32>
      %cst_124 = arith.constant dense<0xFF800000> : vector<8xf32>
      %228 = vector.multi_reduction <maximumf>, %227, %cst_124 [1] : vector<8x8xf32> to vector<8xf32>
      %229 = vector.shape_cast %228 : vector<8xf32> to vector<8x1xf32>
      %230 = vector.broadcast %229 : vector<8x1xf32> to vector<8x8xf32>
      %231 = arith.subf %227, %230 : vector<8x8xf32>
      %232 = math.exp %231 : vector<8x8xf32>
      %cst_125 = arith.constant dense<0.000000e+00> : vector<8xf32>
      %233 = vector.multi_reduction <add>, %232, %cst_125 [1] : vector<8x8xf32> to vector<8xf32>
      %234 = vector.shape_cast %233 : vector<8xf32> to vector<8x1xf32>
      %235 = vector.broadcast %234 : vector<8x1xf32> to vector<8x8xf32>
      %236 = arith.divf %232, %235 : vector<8x8xf32>
      %237 = arith.truncf %236 : vector<8x8xf32> to vector<8x8xbf16>
      %cst_126 = arith.constant dense<0.000000e+00> : vector<8x128xf32>
      %238 = tpu.matmul %237, %223, %cst_126 {dimension_numbers = #tpu.dot_dimension_numbers<[1], [0], [0], [1], [0, 0, 1, 1], [], []>} : vector<8x8xbf16>, vector<8x128xbf16>, vector<8x128xf32> -> vector<8x128xf32>
      %239 = arith.truncf %238 : vector<8x128xf32> to vector<8x128xbf16>
      %cst_127 = arith.constant dense<0.000000e+00> : vector<8x64xf32>
      %240 = tpu.matmul %239, %218, %cst_127 {dimension_numbers = #tpu.dot_dimension_numbers<[1], [0], [0], [1], [0, 0, 1, 1], [], []>} : vector<8x128xbf16>, vector<128x64xbf16>, vector<8x64xf32> -> vector<8x64xf32>
      %241 = arith.addf %224, %240 : vector<8x64xf32>
      %c0_128 = arith.constant 0 : index
      %c0_129 = arith.constant 0 : index
      %242 = vector.load %arg33[%c0_128, %c0_129] : memref<1x64xf32, #tpu.memory_space<vmem>>, vector<1x64xf32>
      %243 = vector.broadcast %242 : vector<1x64xf32> to vector<8x64xf32>
      %244 = arith.addf %241, %243 : vector<8x64xf32>
      %c0_130 = arith.constant 0 : index
      %c0_131 = arith.constant 0 : index
      %245 = vector.load %arg34[%c0_130, %c0_131] : memref<64x32xbf16, #tpu.memory_space<vmem>>, vector<64x32xbf16>
      %246 = arith.truncf %244 : vector<8x64xf32> to vector<8x64xbf16>
      %cst_132 = arith.constant dense<0.000000e+00> : vector<8x32xf32>
      %247 = tpu.matmul %246, %245, %cst_132 {dimension_numbers = #tpu.dot_dimension_numbers<[1], [0], [0], [1], [0, 0, 1, 1], [], []>} : vector<8x64xbf16>, vector<64x32xbf16>, vector<8x32xf32> -> vector<8x32xf32>
      %c0_133 = arith.constant 0 : index
      %c0_134 = arith.constant 0 : index
      %248 = vector.load %arg35[%c0_133, %c0_134] : memref<1x32xf32, #tpu.memory_space<vmem>>, vector<1x32xf32>
      %249 = vector.broadcast %248 : vector<1x32xf32> to vector<8x32xf32>
      %250 = arith.addf %247, %249 : vector<8x32xf32>
      %c0_135 = arith.constant 0 : index
      %c0_136 = arith.constant 0 : index
      %c0_137 = arith.constant 0 : index
      %251 = vector.load %arg36[%c0_135, %c0_136, %c0_137] : memref<1x8x32xf32, #tpu.memory_space<vmem>>, vector<1x8x32xf32>
      %252 = vector.shape_cast %251 : vector<1x8x32xf32> to vector<8x32xf32>
      %253 = vector.shape_cast %250 : vector<8x32xf32> to vector<1x8x32xf32>
      tpu.vector_store %arg36[%c0_135, %c0_136, %c0_137], %253 {strides = array<i32>} : memref<1x8x32xf32, #tpu.memory_space<vmem>>, vector<1x8x32xf32>,
    } else {
    }
    return
  }
  func.func @transform_0(%arg0: i32, %arg1: i32) -> (i32, i32, i32) {
    %c0_i32 = arith.constant 0 : i32
    %c0_i32_0 = arith.constant 0 : i32
    %c0_i32_1 = arith.constant 0 : i32
    return %arg0, %c0_i32, %c0_i32_0 : i32, i32, i32
  }
  func.func @transform_1(%arg0: i32, %arg1: i32) -> (i32, i32, i32) {
    %c0_i32 = arith.constant 0 : i32
    %c0_i32_0 = arith.constant 0 : i32
    %c0_i32_1 = arith.constant 0 : i32
    return %arg0, %c0_i32, %c0_i32_0 : i32, i32, i32
  }
  func.func @transform_2(%arg0: i32, %arg1: i32) -> (i32, i32) {
    %c0_i32 = arith.constant 0 : i32
    %c0_i32_0 = arith.constant 0 : i32
    %c0_i32_1 = arith.constant 0 : i32
    return %c0_i32, %c0_i32_0 : i32, i32
  }
  func.func @transform_3(%arg0: i32, %arg1: i32) -> (i32, i32) {
    %c0_i32 = arith.constant 0 : i32
    %c0_i32_0 = arith.constant 0 : i32
    %c0_i32_1 = arith.constant 0 : i32
    return %c0_i32, %c0_i32_0 : i32, i32
  }
  func.func @transform_4(%arg0: i32, %arg1: i32) -> (i32, i32) {
    %c0_i32 = arith.constant 0 : i32
    %c0_i32_0 = arith.constant 0 : i32
    %c0_i32_1 = arith.constant 0 : i32
    return %c0_i32, %c0_i32_0 : i32, i32
  }
  func.func @transform_5(%arg0: i32, %arg1: i32) -> (i32, i32, i32) {
    %c0_i32 = arith.constant 0 : i32
    %c0_i32_0 = arith.constant 0 : i32
    %c0_i32_1 = arith.constant 0 : i32
    return %arg1, %c0_i32, %c0_i32_0 : i32, i32, i32
  }
  func.func @transform_6(%arg0: i32, %arg1: i32) -> (i32, i32, i32) {
    %c0_i32 = arith.constant 0 : i32
    %c0_i32_0 = arith.constant 0 : i32
    %c0_i32_1 = arith.constant 0 : i32
    return %arg1, %c0_i32, %c0_i32_0 : i32, i32, i32
  }
  func.func @transform_7(%arg0: i32, %arg1: i32) -> (i32, i32, i32) {
    %c0_i32 = arith.constant 0 : i32
    %c0_i32_0 = arith.constant 0 : i32
    %c0_i32_1 = arith.constant 0 : i32
    return %arg1, %c0_i32, %c0_i32_0 : i32, i32, i32
  }
  func.func @transform_8(%arg0: i32, %arg1: i32) -> (i32, i32, i32) {
    %c0_i32 = arith.constant 0 : i32
    %c0_i32_0 = arith.constant 0 : i32
    %c0_i32_1 = arith.constant 0 : i32
    return %arg1, %c0_i32, %c0_i32_0 : i32, i32, i32
  }
  func.func @transform_9(%arg0: i32, %arg1: i32) -> (i32, i32, i32) {
    %c0_i32 = arith.constant 0 : i32
    %c0_i32_0 = arith.constant 0 : i32
    %c0_i32_1 = arith.constant 0 : i32
    return %arg1, %c0_i32, %c0_i32_0 : i32, i32, i32
  }
  func.func @transform_10(%arg0: i32, %arg1: i32) -> (i32, i32, i32) {
    %c0_i32 = arith.constant 0 : i32
    %c0_i32_0 = arith.constant 0 : i32
    %c0_i32_1 = arith.constant 0 : i32
    return %arg1, %c0_i32, %c0_i32_0 : i32, i32, i32
  }
  func.func @transform_11(%arg0: i32, %arg1: i32) -> (i32, i32, i32) {
    %c0_i32 = arith.constant 0 : i32
    %c0_i32_0 = arith.constant 0 : i32
    %c0_i32_1 = arith.constant 0 : i32
    return %arg1, %c0_i32, %c0_i32_0 : i32, i32, i32
  }
  func.func @transform_12(%arg0: i32, %arg1: i32) -> (i32, i32, i32) {
    %c0_i32 = arith.constant 0 : i32
    %c0_i32_0 = arith.constant 0 : i32
    %c0_i32_1 = arith.constant 0 : i32
    return %arg1, %c0_i32, %c0_i32_0 : i32, i32, i32
  }
  func.func @transform_13(%arg0: i32, %arg1: i32) -> (i32, i32, i32) {
    %c0_i32 = arith.constant 0 : i32
    %c0_i32_0 = arith.constant 0 : i32
    %c0_i32_1 = arith.constant 0 : i32
    return %arg1, %c0_i32, %c0_i32_0 : i32, i32, i32
  }
  func.func @transform_14(%arg0: i32, %arg1: i32) -> (i32, i32, i32) {
    %c0_i32 = arith.constant 0 : i32
    %c0_i32_0 = arith.constant 0 : i32
    %c0_i32_1 = arith.constant 0 : i32
    return %arg1, %c0_i32, %c0_i32_0 : i32, i32, i32
  }
  func.func @transform_15(%arg0: i32, %arg1: i32) -> (i32, i32, i32) {
    %c0_i32 = arith.constant 0 : i32
    %c0_i32_0 = arith.constant 0 : i32
    %c0_i32_1 = arith.constant 0 : i32
    return %arg1, %c0_i32, %c0_i32_0 : i32, i32, i32
  }
  func.func @transform_16(%arg0: i32, %arg1: i32) -> (i32, i32, i32) {
    %c0_i32 = arith.constant 0 : i32
    %c0_i32_0 = arith.constant 0 : i32
    %c0_i32_1 = arith.constant 0 : i32
    return %arg1, %c0_i32, %c0_i32_0 : i32, i32, i32
  }
  func.func @transform_17(%arg0: i32, %arg1: i32) -> (i32, i32, i32) {
    %c0_i32 = arith.constant 0 : i32
    %c0_i32_0 = arith.constant 0 : i32
    %c0_i32_1 = arith.constant 0 : i32
    return %arg1, %c0_i32, %c0_i32_0 : i32, i32, i32
  }
  func.func @transform_18(%arg0: i32, %arg1: i32) -> (i32, i32, i32) {
    %c0_i32 = arith.constant 0 : i32
    %c0_i32_0 = arith.constant 0 : i32
    %c0_i32_1 = arith.constant 0 : i32
    return %arg1, %c0_i32, %c0_i32_0 : i32, i32, i32
  }
  func.func @transform_19(%arg0: i32, %arg1: i32) -> (i32, i32, i32) {
    %c0_i32 = arith.constant 0 : i32
    %c0_i32_0 = arith.constant 0 : i32
    %c0_i32_1 = arith.constant 0 : i32
    return %arg1, %c0_i32, %c0_i32_0 : i32, i32, i32
  }
  func.func @transform_20(%arg0: i32, %arg1: i32) -> (i32, i32, i32) {
    %c0_i32 = arith.constant 0 : i32
    %c0_i32_0 = arith.constant 0 : i32
    %c0_i32_1 = arith.constant 0 : i32
    return %arg1, %c0_i32, %c0_i32_0 : i32, i32, i32
  }
  func.func @transform_21(%arg0: i32, %arg1: i32) -> (i32, i32) {
    %c0_i32 = arith.constant 0 : i32
    %c0_i32_0 = arith.constant 0 : i32
    %c0_i32_1 = arith.constant 0 : i32
    return %c0_i32, %c0_i32_0 : i32, i32
  }
  func.func @transform_22(%arg0: i32, %arg1: i32) -> (i32, i32) {
    %c0_i32 = arith.constant 0 : i32
    %c0_i32_0 = arith.constant 0 : i32
    %c0_i32_1 = arith.constant 0 : i32
    return %c0_i32, %c0_i32_0 : i32, i32
  }
  func.func @transform_23(%arg0: i32, %arg1: i32) -> (i32, i32) {
    %c0_i32 = arith.constant 0 : i32
    %c0_i32_0 = arith.constant 0 : i32
    %c0_i32_1 = arith.constant 0 : i32
    return %c0_i32, %c0_i32_0 : i32, i32
  }
  func.func @transform_24(%arg0: i32, %arg1: i32) -> (i32, i32) {
    %c0_i32 = arith.constant 0 : i32
    %c0_i32_0 = arith.constant 0 : i32
    %c0_i32_1 = arith.constant 0 : i32
    return %c0_i32, %c0_i32_0 : i32, i32
  }
  func.func @transform_25(%arg0: i32, %arg1: i32) -> (i32, i32) {
    %c0_i32 = arith.constant 0 : i32
    %c0_i32_0 = arith.constant 0 : i32
    %c0_i32_1 = arith.constant 0 : i32
    return %c0_i32, %c0_i32_0 : i32, i32
  }
  func.func @transform_26(%arg0: i32, %arg1: i32) -> (i32, i32) {
    %c0_i32 = arith.constant 0 : i32
    %c0_i32_0 = arith.constant 0 : i32
    %c0_i32_1 = arith.constant 0 : i32
    return %c0_i32, %c0_i32_0 : i32, i32
  }
  func.func @transform_27(%arg0: i32, %arg1: i32) -> (i32, i32) {
    %c0_i32 = arith.constant 0 : i32
    %c0_i32_0 = arith.constant 0 : i32
    %c0_i32_1 = arith.constant 0 : i32
    return %c0_i32, %c0_i32_0 : i32, i32
  }
  func.func @transform_28(%arg0: i32, %arg1: i32) -> (i32, i32) {
    %c0_i32 = arith.constant 0 : i32
    %c0_i32_0 = arith.constant 0 : i32
    %c0_i32_1 = arith.constant 0 : i32
    return %c0_i32, %c0_i32_0 : i32, i32
  }
  func.func @transform_29(%arg0: i32, %arg1: i32) -> (i32, i32) {
    %c0_i32 = arith.constant 0 : i32
    %c0_i32_0 = arith.constant 0 : i32
    %c0_i32_1 = arith.constant 0 : i32
    return %c0_i32, %c0_i32_0 : i32, i32
  }
  func.func @transform_30(%arg0: i32, %arg1: i32) -> (i32, i32) {
    %c0_i32 = arith.constant 0 : i32
    %c0_i32_0 = arith.constant 0 : i32
    %c0_i32_1 = arith.constant 0 : i32
    return %c0_i32, %c0_i32_0 : i32, i32
  }
  func.func @transform_31(%arg0: i32, %arg1: i32) -> (i32, i32) {
    %c0_i32 = arith.constant 0 : i32
    %c0_i32_0 = arith.constant 0 : i32
    %c0_i32_1 = arith.constant 0 : i32
    return %c0_i32, %c0_i32_0 : i32, i32
  }
  func.func @transform_32(%arg0: i32, %arg1: i32) -> (i32, i32) {
    %c0_i32 = arith.constant 0 : i32
    %c0_i32_0 = arith.constant 0 : i32
    %c0_i32_1 = arith.constant 0 : i32
    return %c0_i32, %c0_i32_0 : i32, i32
  }
  func.func @transform_33(%arg0: i32, %arg1: i32) -> (i32, i32) {
    %c0_i32 = arith.constant 0 : i32
    %c0_i32_0 = arith.constant 0 : i32
    %c0_i32_1 = arith.constant 0 : i32
    return %c0_i32, %c0_i32_0 : i32, i32
  }
  func.func @transform_34(%arg0: i32, %arg1: i32) -> (i32, i32, i32) {
    %c0_i32 = arith.constant 0 : i32
    %c0_i32_0 = arith.constant 0 : i32
    %c0_i32_1 = arith.constant 0 : i32
    return %arg0, %c0_i32, %c0_i32_0 : i32, i32, i32
  }
  func.func @transform_35(%arg0: i32, %arg1: i32) -> (i32, i32, i32) {
    %c0_i32 = arith.constant 0 : i32
    %c0_i32_0 = arith.constant 0 : i32
    %c0_i32_1 = arith.constant 0 : i32
    return %arg0, %c0_i32, %c0_i32_0 : i32, i32, i32
  }
}

</mosaic_0001>

<llo_original>
// kernel: tpu_custom_call.1
$region0: #{tpu_custom_call.1}
  #allocation0 [shape = 'u32[]', space=smem, size = 0x4, offset = 0x4, fixed_abs, tag = 'smem constant byte address 0x4 - core index']
  #allocation1 [shape = 'u32[144,128]{1,0:T(1,128)}', space=vmem, size = 0x12000, scoped, tag = 'internal scratch']
  #allocation2 [shape = 'f32[8,64]{1,0:T(8,128)}', space=vmem, size = 0x1000, scoped, tag = 'scratch operand']
  #allocation3 [shape = 'f32[8,320]{1,0:T(8,128)}', space=vmem, size = 0x3000, scoped, tag = 'scratch operand']
  %s0 = inlined_call_operand.smem [shape: u32[36], index: -1, kind: input, shape index: {}]
  %s1 = sld [smem:[%s0]]
  %s2 = scalar_lea.smem %s0, 1
  %s3 = sld [smem:[%s2]]
  %s4 = scalar_lea.smem %s0, 2
  %s5 = sld [smem:[%s4]]
  %s6 = scalar_lea.smem %s0, 3
  %s7 = sld [smem:[%s6]]
  %s8 = scalar_lea.smem %s0, 4
  %s9 = sld [smem:[%s8]]
  %s10 = scalar_lea.smem %s0, 5
  %s11 = sld [smem:[%s10]]
  %s12 = scalar_lea.smem %s0, 6
  %s13 = sld [smem:[%s12]]
  %s14 = scalar_lea.smem %s0, 7
  %s15 = sld [smem:[%s14]]
  %s16 = scalar_lea.smem %s0, 8
  %s17 = sld [smem:[%s16]]
  %s18 = scalar_lea.smem %s0, 9
  %s19 = sld [smem:[%s18]]
  %s20 = scalar_lea.smem %s0, 10
  %s21 = sld [smem:[%s20]]
  %s22 = scalar_lea.smem %s0, 11
  %s23 = sld [smem:[%s22]]
  %s24 = scalar_lea.smem %s0, 12
  %s25 = sld [smem:[%s24]]
  %s26 = scalar_lea.smem %s0, 13
  %s27 = sld [smem:[%s26]]
  %s28 = scalar_lea.smem %s0, 14
  %s29 = sld [smem:[%s28]]
  %s30 = scalar_lea.smem %s0, 15
  %s31 = sld [smem:[%s30]]
  %s32 = scalar_lea.smem %s0, 16
  %s33 = sld [smem:[%s32]]
  %s34 = scalar_lea.smem %s0, 17
  %s35 = sld [smem:[%s34]]
  %s36 = scalar_lea.smem %s0, 18
  %s37 = sld [smem:[%s36]]
  %s38 = scalar_lea.smem %s0, 19
  %s39 = sld [smem:[%s38]]
  %s40 = scalar_lea.smem %s0, 20
  %s41 = sld [smem:[%s40]]
  %s42 = scalar_lea.smem %s0, 21
  %s43 = sld [smem:[%s42]]
  %s44 = scalar_lea.smem %s0, 22
  %s45 = sld [smem:[%s44]]
  %s46 = scalar_lea.smem %s0, 23
  %s47 = sld [smem:[%s46]]
  %s48 = scalar_lea.smem %s0, 24
  %s49 = sld [smem:[%s48]]
  %s50 = scalar_lea.smem %s0, 25
  %s51 = sld [smem:[%s50]]
  %s52 = scalar_lea.smem %s0, 26
  %s53 = sld [smem:[%s52]]
  %s54 = scalar_lea.smem %s0, 27
  %s55 = sld [smem:[%s54]]
  %s56 = scalar_lea.smem %s0, 28
  %s57 = sld [smem:[%s56]]
  %s58 = scalar_lea.smem %s0, 29
  %s59 = sld [smem:[%s58]]
  %s60 = scalar_lea.smem %s0, 30
  %s61 = sld [smem:[%s60]]
  %s62 = scalar_lea.smem %s0, 31
  %s63 = sld [smem:[%s62]]
  %s64 = scalar_lea.smem %s0, 32
  %s65 = sld [smem:[%s64]]
  %s66 = scalar_lea.smem %s0, 33
  %s67 = sld [smem:[%s66]]
  %s68 = scalar_lea.smem %s0, 34
  %s69 = sld [smem:[%s68]]
  %s70 = scalar_lea.smem %s0, 35
  %s71 = sld [smem:[%s70]]
  %72 = xla_tuple %s69, %s71
  %s73 = sld [smem:[#allocation0]]
  $region257: #{tpu_custom_call.1} parent=0
    _
  %s75 = ssub.s32 1, %s73
  %s76 = scalar_select 0, %s75, %s73
  $region1: #{tpu_custom_call.1} parent=0
    #allocation4 [shape = 'u8[8192]{0}', space=vmem, size = 0x2000, scoped, tag = 'input window, operand 0']
    #allocation5 [shape = 's32[2]{0}', space=sflag, size = 0x8, scoped, tag = 'scoped memory for tpu_custom_call.1']
    #allocation6 [shape = 's32[2]{0}', space=sflag, size = 0x8, scoped, tag = 'scoped memory for tpu_custom_call.1']
    #allocation7 [shape = 'u8[1024]{0}', space=vmem, size = 0x400, scoped, tag = 'input window, operand 1']
    #allocation8 [shape = 's32[2]{0}', space=sflag, size = 0x8, scoped, tag = 'scoped memory for tpu_custom_call.1']
    #allocation9 [shape = 'u8[4096]{0}', space=vmem, size = 0x1000, scoped, tag = 'input window, operand 2, single buffered']
    #allocation10 [shape = 'u8[8192]{0}', space=vmem, size = 0x2000, scoped, tag = 'input window, operand 3, single buffered']
    #allocation11 [shape = 's32[1]{0}', space=sflag, size = 0x4, scoped, tag = 'scoped memory for tpu_custom_call.1']
    #allocation12 [shape = 'u8[512]{0}', space=vmem, size = 0x400, scoped, tag = 'input window, operand 4, single buffered']
    #allocation13 [shape = 'u8[1024]{0}', space=vmem, size = 0x400, scoped, tag = 'input window, operand 5']
    #allocation14 [shape = 's32[2]{0}', space=sflag, size = 0x8, scoped, tag = 'scoped memory for tpu_custom_call.1']
    #allocation15 [shape = 'u8[1024]{0}', space=vmem, size = 0x400, scoped, tag = 'input window, operand 6']
    #allocation16 [shape = 'u8[2048]{0}', space=vmem, size = 0x800, scoped, tag = 'input window, operand 10']
    #allocation17 [shape = 's32[2]{0}', space=sflag, size = 0x8, scoped, tag = 'scoped memory for tpu_custom_call.1']
    #allocation18 [shape = 'u8[2048]{0}', space=vmem, size = 0x800, scoped, tag = 'input window, operand 11']
    #allocation19 [shape = 'u8[2048]{0}', space=vmem, size = 0x800, scoped, tag = 'input window, operand 12']
    #allocation20 [shape = 's32[2]{0}', space=sflag, size = 0x8, scoped, tag = 'scoped memory for tpu_custom_call.1']
    #allocation21 [shape = 'u8[1024]{0}', space=vmem, size = 0x400, scoped, tag = 'input window, operand 14']
    #allocation22 [shape = 'u8[1024]{0}', space=vmem, size = 0x400, scoped, tag = 'input window, operand 15']
    #allocation23 [shape = 's32[2]{0}', space=sflag, size = 0x8, scoped, tag = 'scoped memory for tpu_custom_call.1']
    #allocation24 [shape = 'u8[1024]{0}', space=vmem, size = 0x400, scoped, tag = 'input window, operand 16']
    #allocation25 [shape = 'u8[1024]{0}', space=vmem, size = 0x400, scoped, tag = 'input window, operand 18']
    #allocation26 [shape = 's32[2]{0}', space=sflag, size = 0x8, scoped, tag = 'scoped memory for tpu_custom_call.1']
    #allocation27 [shape = 'u8[4096]{0}', space=vmem, size = 0x1000, scoped, tag = 'input window, operand 23, single buffered']
    #allocation28 [shape = 'u8[16384]{0}', space=vmem, size = 0x4000, scoped, tag = 'input window, operand 24, single buffered']
    #allocation29 [shape = 's32[1]{0}', space=sflag, size = 0x4, scoped, tag = 'scoped memory for tpu_custom_call.1']
    #allocation30 [shape = 'u8[16384]{0}', space=vmem, size = 0x4000, scoped, tag = 'input window, operand 26, single buffered']
    #allocation31 [shape = 'u8[16384]{0}', space=vmem, size = 0x4000, scoped, tag = 'input window, operand 28, single buffered']
    #allocation32 [shape = 's32[1]{0}', space=sflag, size = 0x4, scoped, tag = 'scoped memory for tpu_custom_call.1']
    #allocation33 [shape = 'u8[8192]{0}', space=vmem, size = 0x2000, scoped, tag = 'output window, operand 0']
    #allocation34 [shape = 'u8[8192]{0}', space=vmem, size = 0x2000, scoped, tag = 'output window, operand 1']
    #allocation35 [shape = 's32[2]{0}', space=sflag, size = 0x8, scoped, tag = 'scoped memory for tpu_custom_call.1']
    %77 = vsyncpa [#allocation5], 0
    %s78 = scalar_lea.sflag [#allocation5], 1
    %79 = vsyncpa %s78, 0
    %80 = vsyncpa [#allocation8], 0
    %s81 = scalar_lea.sflag [#allocation8], 1
    %82 = vsyncpa %s81, 0
    %83 = vsyncpa [#allocation11], 0
    %84 = vsyncpa [#allocation14], 0
    %s85 = scalar_lea.sflag [#allocation14], 1
    %86 = vsyncpa %s85, 0
    %87 = vsyncpa [#allocation17], 0
    %s88 = scalar_lea.sflag [#allocation17], 1
    %89 = vsyncpa %s88, 0
    %90 = vsyncpa [#allocation20], 0
    %s91 = scalar_lea.sflag [#allocation20], 1
    %92 = vsyncpa %s91, 0
    %93 = vsyncpa [#allocation23], 0
    %s94 = scalar_lea.sflag [#allocation23], 1
    %95 = vsyncpa %s94, 0
    %96 = vsyncpa [#allocation26], 0
    %s97 = scalar_lea.sflag [#allocation26], 1
    %98 = vsyncpa %s97, 0
    %99 = vsyncpa [#allocation29], 0
    %100 = vsyncpa [#allocation32], 0
    %101 = vsyncpa [#allocation6], 0
    %s102 = scalar_lea.sflag [#allocation6], 1
    %103 = vsyncpa %s102, 0
    %104 = vsyncpa [#allocation35], 0
    %s105 = scalar_lea.sflag [#allocation35], 1
    %106 = vsyncpa %s105, 0
    loop: start=0, step=1, limit=6
    $region2: #{tpu_custom_call.1} parent=1 // loop_pre_header
      _
    $region3: #{tpu_custom_call.1} parent=1 // loop_header
      %s108 = sphi 0, %s112
      %p109 = scmp.ge.s32.totalorder %s108, 6
      %s115 = sphi 0, %s127
      %s116 = sphi 0, %s123
      %s117 = sphi 0, %s115
      %s118 = sphi 0, %s116
      %s119 = sphi 0, %s117
      %s120 = sphi 0, %s118
      %s130 = sphi 0, %s132
      %s133 = sphi 0, %s130
      %s134 = sphi 0, %s133
      %s150 = sphi 0, %s134
      %s156 = sphi 0, %s158
      %s159 = sphi 0, %s156
      %s160 = sphi 0, %s159
      %s176 = sphi 0, %s160
      %s180 = sphi 0, %s180
      %s182 = sphi 0, %s180
      %s183 = sphi 0, %s182
      %s197 = sphi 0, %s183
      %s201 = sphi 0, %s201
      %s203 = sphi 0, %s201
      %s204 = sphi 0, %s203
      %s218 = sphi 0, %s204
      %s222 = sphi 0, %s222
      %s224 = sphi 0, %s222
      %s225 = sphi 0, %s224
      %s239 = sphi 0, %s225
      %s245 = sphi 0, %s247
      %s248 = sphi 0, %s245
      %s249 = sphi 0, %s248
      %s265 = sphi 0, %s249
      %s271 = sphi 0, %s273
      %s274 = sphi 0, %s271
      %s275 = sphi 0, %s274
      %s291 = sphi 0, %s275
      %s297 = sphi 0, %s299
      %s300 = sphi 0, %s297
      %s301 = sphi 0, %s300
      %s317 = sphi 0, %s301
      %s323 = sphi 0, %s325
      %s326 = sphi 0, %s323
      %s327 = sphi 0, %s326
      %s343 = sphi 0, %s327
      %s349 = sphi 0, %s351
      %s352 = sphi 0, %s349
      %s353 = sphi 0, %s352
      %s369 = sphi 0, %s353
      %s375 = sphi 0, %s377
      %s378 = sphi 0, %s375
      %s379 = sphi 0, %s378
      %s395 = sphi 0, %s379
      %s401 = sphi 0, %s403
      %s404 = sphi 0, %s401
      %s405 = sphi 0, %s404
      %s421 = sphi 0, %s405
      %s427 = sphi 0, %s429
      %s430 = sphi 0, %s427
      %s431 = sphi 0, %s430
      %s447 = sphi 0, %s431
      %s453 = sphi 0, %s455
      %s456 = sphi 0, %s453
      %s457 = sphi 0, %s456
      %s473 = sphi 0, %s457
      %s479 = sphi 0, %s481
      %s482 = sphi 0, %s479
      %s483 = sphi 0, %s482
      %s499 = sphi 0, %s483
      %s505 = sphi 0, %s507
      %s508 = sphi 0, %s505
      %s509 = sphi 0, %s508
      %s525 = sphi 0, %s509
      %s531 = sphi 0, %s533
      %s534 = sphi 0, %s531
      %s535 = sphi 0, %s534
      %s551 = sphi 0, %s535
      %s557 = sphi 0, %s559
      %s560 = sphi 0, %s557
      %s561 = sphi 0, %s560
      %s577 = sphi 0, %s561
      %s583 = sphi 0, %s585
      %s586 = sphi 0, %s583
      %s587 = sphi 0, %s586
      %s603 = sphi 0, %s587
      %s609 = sphi 0, %s611
      %s612 = sphi 0, %s609
      %s613 = sphi 0, %s612
      %s629 = sphi 0, %s613
      %s635 = sphi 0, %s637
      %s638 = sphi 0, %s635
      %s639 = sphi 0, %s638
      %s655 = sphi 0, %s639
      %s659 = sphi 0, %s659
      %s661 = sphi 0, %s659
      %s662 = sphi 0, %s661
      %s676 = sphi 0, %s662
      %s680 = sphi 0, %s680
      %s682 = sphi 0, %s680
      %s683 = sphi 0, %s682
      %s697 = sphi 0, %s683
      %s701 = sphi 0, %s701
      %s703 = sphi 0, %s701
      %s704 = sphi 0, %s703
      %s718 = sphi 0, %s704
      %s722 = sphi 0, %s722
      %s724 = sphi 0, %s722
      %s725 = sphi 0, %s724
      %s739 = sphi 0, %s725
      %s743 = sphi 0, %s743
      %s745 = sphi 0, %s743
      %s746 = sphi 0, %s745
      %s760 = sphi 0, %s746
      %s764 = sphi 0, %s764
      %s766 = sphi 0, %s764
      %s767 = sphi 0, %s766
      %s781 = sphi 0, %s767
      %s785 = sphi 0, %s785
      %s787 = sphi 0, %s785
      %s788 = sphi 0, %s787
      %s802 = sphi 0, %s788
      %s806 = sphi 0, %s806
      %s808 = sphi 0, %s806
      %s809 = sphi 0, %s808
      %s823 = sphi 0, %s809
      %s827 = sphi 0, %s827
      %s829 = sphi 0, %s827
      %s830 = sphi 0, %s829
      %s844 = sphi 0, %s830
      %s848 = sphi 0, %s848
      %s850 = sphi 0, %s848
      %s851 = sphi 0, %s850
      %s865 = sphi 0, %s851
      %s869 = sphi 0, %s869
      %s871 = sphi 0, %s869
      %s872 = sphi 0, %s871
      %s886 = sphi 0, %s872
      %s890 = sphi 0, %s890
      %s892 = sphi 0, %s890
      %s893 = sphi 0, %s892
      %s907 = sphi 0, %s893
      %s911 = sphi 0, %s911
      %s913 = sphi 0, %s911
      %s914 = sphi 0, %s913
      %s928 = sphi 0, %s914
      %s934 = sphi 0, %s936
      %s937 = sphi 0, %s934
      %s938 = sphi 0, %s937
      %s954 = sphi 0, %s938
      %s960 = sphi 0, %s962
      %s963 = sphi 0, %s960
      %s964 = sphi 0, %s963
      %s980 = sphi 0, %s964
    $region4: #{tpu_custom_call.1} parent=1 // loop_header_branch
      %111 = sbr.rel (%p109) target = $region8
    $region5: #{tpu_custom_call.1} parent=1 // loop_body
      %s113 = ssub.s32 %s108, 1
      %s114 = ssub.s32 %s108, 2
      %s121 = sadd.s32 1, %s116
      %p122 = scmp.ge.s32.totalorder %s121, 2
      %s123 = scalar_select %p122, 0, %s121
      %s124 = sadd.s32 1, %s115
      %s125 = scalar_select %p122, %s124, %s115
      %p126 = scmp.ge.s32.totalorder %s125, 2
      %s127 = scalar_select %p126, 0, %s125
      %s128 = ssub.s32 %s115, %s127
      %p129 = scmp.eq.s32.totalorder %s128, 0
      %s131 = sadd.s32 %s130, 1
      %s132 = scalar_select %p129, %s130, %s131
      %p135 = pneg %p129
      %p136 = scmp.eq.s32.totalorder %s108, 3
      %p137 = por %p135, %p136
      %p138 = scmp.ne.s32.totalorder %s130, %s133
      %p139 = scmp.eq.s32.totalorder %s108, 0
      %p140 = por %p138, %p139
      %p141 = scmp.ne.s32.totalorder %s130, %s133
      %p142 = scmp.eq.s32.totalorder %s113, 3
      %p143 = por %p141, %p142
      %p144 = scmp.ne.s32.totalorder %s133, %s134
      %p145 = scmp.eq.s32.totalorder %s113, 0
      %p146 = por %p144, %p145
      %p147 = scmp.ne.s32.totalorder %s133, %s134
      %p148 = scmp.eq.s32.totalorder %s114, 3
      %p149 = por %p147, %p148
      %p151 = scmp.ne.s32.totalorder %s134, %s150
      %p152 = scmp.eq.s32.totalorder %s114, 0
      %p153 = por %p151, %p152
      %s154 = ssub.s32 %s115, %s127
      %p155 = scmp.eq.s32.totalorder %s154, 0
      %s157 = sadd.s32 %s156, 1
      %s158 = scalar_select %p155, %s156, %s157
      %p161 = pneg %p155
      %p162 = scmp.eq.s32.totalorder %s108, 3
      %p163 = por %p161, %p162
      %p164 = scmp.ne.s32.totalorder %s156, %s159
      %p165 = scmp.eq.s32.totalorder %s108, 0
      %p166 = por %p164, %p165
      %p167 = scmp.ne.s32.totalorder %s156, %s159
      %p168 = scmp.eq.s32.totalorder %s113, 3
      %p169 = por %p167, %p168
      %p170 = scmp.ne.s32.totalorder %s159, %s160
      %p171 = scmp.eq.s32.totalorder %s113, 0
      %p172 = por %p170, %p171
      %p173 = scmp.ne.s32.totalorder %s159, %s160
      %p174 = scmp.eq.s32.totalorder %s114, 3
      %p175 = por %p173, %p174
      %p177 = scmp.ne.s32.totalorder %s160, %s176
      %p178 = scmp.eq.s32.totalorder %s114, 0
      %p179 = por %p177, %p178
      %s181 = sadd.s32 %s180, 1
      %p184 = scmp.eq.s32.totalorder %s108, 3
      %p185 = scmp.ne.s32.totalorder %s180, %s182
      %p186 = scmp.eq.s32.totalorder %s108, 0
      %p187 = por %p185, %p186
      %p188 = scmp.ne.s32.totalorder %s180, %s182
      %p189 = scmp.eq.s32.totalorder %s113, 3
      %p190 = por %p188, %p189
      %p191 = scmp.ne.s32.totalorder %s182, %s183
      %p192 = scmp.eq.s32.totalorder %s113, 0
      %p193 = por %p191, %p192
      %p194 = scmp.ne.s32.totalorder %s182, %s183
      %p195 = scmp.eq.s32.totalorder %s114, 3
      %p196 = por %p194, %p195
      %p198 = scmp.ne.s32.totalorder %s183, %s197
      %p199 = scmp.eq.s32.totalorder %s114, 0
      %p200 = por %p198, %p199
      %s202 = sadd.s32 %s201, 1
      %p205 = scmp.eq.s32.totalorder %s108, 3
      %p206 = scmp.ne.s32.totalorder %s201, %s203
      %p207 = scmp.eq.s32.totalorder %s108, 0
      %p208 = por %p206, %p207
      %p209 = scmp.ne.s32.totalorder %s201, %s203
      %p210 = scmp.eq.s32.totalorder %s113, 3
      %p211 = por %p209, %p210
      %p212 = scmp.ne.s32.totalorder %s203, %s204
      %p213 = scmp.eq.s32.totalorder %s113, 0
      %p214 = por %p212, %p213
      %p215 = scmp.ne.s32.totalorder %s203, %s204
      %p216 = scmp.eq.s32.totalorder %s114, 3
      %p217 = por %p215, %p216
      %p219 = scmp.ne.s32.totalorder %s204, %s218
      %p220 = scmp.eq.s32.totalorder %s114, 0
      %p221 = por %p219, %p220
      %s223 = sadd.s32 %s222, 1
      %p226 = scmp.eq.s32.totalorder %s108, 3
      %p227 = scmp.ne.s32.totalorder %s222, %s224
      %p228 = scmp.eq.s32.totalorder %s108, 0
      %p229 = por %p227, %p228
      %p230 = scmp.ne.s32.totalorder %s222, %s224
      %p231 = scmp.eq.s32.totalorder %s113, 3
      %p232 = por %p230, %p231
      %p233 = scmp.ne.s32.totalorder %s224, %s225
      %p234 = scmp.eq.s32.totalorder %s113, 0
      %p235 = por %p233, %p234
      %p236 = scmp.ne.s32.totalorder %s224, %s225
      %p237 = scmp.eq.s32.totalorder %s114, 3
      %p238 = por %p236, %p237
      %p240 = scmp.ne.s32.totalorder %s225, %s239
      %p241 = scmp.eq.s32.totalorder %s114, 0
      %p242 = por %p240, %p241
      %s243 = ssub.s32 %s116, %s123
      %p244 = scmp.eq.s32.totalorder %s243, 0
      %s246 = sadd.s32 %s245, 1
      %s247 = scalar_select %p244, %s245, %s246
      %p250 = pneg %p244
      %p251 = scmp.eq.s32.totalorder %s108, 3
      %p252 = por %p250, %p251
      %p253 = scmp.ne.s32.totalorder %s245, %s248
      %p254 = scmp.eq.s32.totalorder %s108, 0
      %p255 = por %p253, %p254
      %p256 = scmp.ne.s32.totalorder %s245, %s248
      %p257 = scmp.eq.s32.totalorder %s113, 3
      %p258 = por %p256, %p257
      %p259 = scmp.ne.s32.totalorder %s248, %s249
      %p260 = scmp.eq.s32.totalorder %s113, 0
      %p261 = por %p259, %p260
      %p262 = scmp.ne.s32.totalorder %s248, %s249
      %p263 = scmp.eq.s32.totalorder %s114, 3
      %p264 = por %p262, %p263
      %p266 = scmp.ne.s32.totalorder %s249, %s265
      %p267 = scmp.eq.s32.totalorder %s114, 0
      %p268 = por %p266, %p267
      %s269 = ssub.s32 %s116, %s123
      %p270 = scmp.eq.s32.totalorder %s269, 0
      %s272 = sadd.s32 %s271, 1
      %s273 = scalar_select %p270, %s271, %s272
      %p276 = pneg %p270
      %p277 = scmp.eq.s32.totalorder %s108, 3
      %p278 = por %p276, %p277
      %p279 = scmp.ne.s32.totalorder %s271, %s274
      %p280 = scmp.eq.s32.totalorder %s108, 0
      %p281 = por %p279, %p280
      %p282 = scmp.ne.s32.totalorder %s271, %s274
      %p283 = scmp.eq.s32.totalorder %s113, 3
      %p284 = por %p282, %p283
      %p285 = scmp.ne.s32.totalorder %s274, %s275
      %p286 = scmp.eq.s32.totalorder %s113, 0
      %p287 = por %p285, %p286
      %p288 = scmp.ne.s32.totalorder %s274, %s275
      %p289 = scmp.eq.s32.totalorder %s114, 3
      %p290 = por %p288, %p289
      %p292 = scmp.ne.s32.totalorder %s275, %s291
      %p293 = scmp.eq.s32.totalorder %s114, 0
      %p294 = por %p292, %p293
      %s295 = ssub.s32 %s116, %s123
      %p296 = scmp.eq.s32.totalorder %s295, 0
      %s298 = sadd.s32 %s297, 1
      %s299 = scalar_select %p296, %s297, %s298
      %p302 = pneg %p296
      %p303 = scmp.eq.s32.totalorder %s108, 3
      %p304 = por %p302, %p303
      %p305 = scmp.ne.s32.totalorder %s297, %s300
      %p306 = scmp.eq.s32.totalorder %s108, 0
      %p307 = por %p305, %p306
      %p308 = scmp.ne.s32.totalorder %s297, %s300
      %p309 = scmp.eq.s32.totalorder %s113, 3
      %p310 = por %p308, %p309
      %p311 = scmp.ne.s32.totalorder %s300, %s301
      %p312 = scmp.eq.s32.totalorder %s113, 0
      %p313 = por %p311, %p312
      %p314 = scmp.ne.s32.totalorder %s300, %s301
      %p315 = scmp.eq.s32.totalorder %s114, 3
      %p316 = por %p314, %p315
      %p318 = scmp.ne.s32.totalorder %s301, %s317
      %p319 = scmp.eq.s32.totalorder %s114, 0
      %p320 = por %p318, %p319
      %s321 = ssub.s32 %s116, %s123
      %p322 = scmp.eq.s32.totalorder %s321, 0
      %s324 = sadd.s32 %s323, 1
      %s325 = scalar_select %p322, %s323, %s324
      %p328 = pneg %p322
      %p329 = scmp.eq.s32.totalorder %s108, 3
      %p330 = por %p328, %p329
      %p331 = scmp.ne.s32.totalorder %s323, %s326
      %p332 = scmp.eq.s32.totalorder %s108, 0
      %p333 = por %p331, %p332
      %p334 = scmp.ne.s32.totalorder %s323, %s326
      %p335 = scmp.eq.s32.totalorder %s113, 3
      %p336 = por %p334, %p335
      %p337 = scmp.ne.s32.totalorder %s326, %s327
      %p338 = scmp.eq.s32.totalorder %s113, 0
      %p339 = por %p337, %p338
      %p340 = scmp.ne.s32.totalorder %s326, %s327
      %p341 = scmp.eq.s32.totalorder %s114, 3
      %p342 = por %p340, %p341
      %p344 = scmp.ne.s32.totalorder %s327, %s343
      %p345 = scmp.eq.s32.totalorder %s114, 0
      %p346 = por %p344, %p345
      %s347 = ssub.s32 %s116, %s123
      %p348 = scmp.eq.s32.totalorder %s347, 0
      %s350 = sadd.s32 %s349, 1
      %s351 = scalar_select %p348, %s349, %s350
      %p354 = pneg %p348
      %p355 = scmp.eq.s32.totalorder %s108, 3
      %p356 = por %p354, %p355
      %p357 = scmp.ne.s32.totalorder %s349, %s352
      %p358 = scmp.eq.s32.totalorder %s108, 0
      %p359 = por %p357, %p358
      %p360 = scmp.ne.s32.totalorder %s349, %s352
      %p361 = scmp.eq.s32.totalorder %s113, 3
      %p362 = por %p360, %p361
      %p363 = scmp.ne.s32.totalorder %s352, %s353
      %p364 = scmp.eq.s32.totalorder %s113, 0
      %p365 = por %p363, %p364
      %p366 = scmp.ne.s32.totalorder %s352, %s353
      %p367 = scmp.eq.s32.totalorder %s114, 3
      %p368 = por %p366, %p367
      %p370 = scmp.ne.s32.totalorder %s353, %s369
      %p371 = scmp.eq.s32.totalorder %s114, 0
      %p372 = por %p370, %p371
      %s373 = ssub.s32 %s116, %s123
      %p374 = scmp.eq.s32.totalorder %s373, 0
      %s376 = sadd.s32 %s375, 1
      %s377 = scalar_select %p374, %s375, %s376
      %p380 = pneg %p374
      %p381 = scmp.eq.s32.totalorder %s108, 3
      %p382 = por %p380, %p381
      %p383 = scmp.ne.s32.totalorder %s375, %s378
      %p384 = scmp.eq.s32.totalorder %s108, 0
      %p385 = por %p383, %p384
      %p386 = scmp.ne.s32.totalorder %s375, %s378
      %p387 = scmp.eq.s32.totalorder %s113, 3
      %p388 = por %p386, %p387
      %p389 = scmp.ne.s32.totalorder %s378, %s379
      %p390 = scmp.eq.s32.totalorder %s113, 0
      %p391 = por %p389, %p390
      %p392 = scmp.ne.s32.totalorder %s378, %s379
      %p393 = scmp.eq.s32.totalorder %s114, 3
      %p394 = por %p392, %p393
      %p396 = scmp.ne.s32.totalorder %s379, %s395
      %p397 = scmp.eq.s32.totalorder %s114, 0
      %p398 = por %p396, %p397
      %s399 = ssub.s32 %s116, %s123
      %p400 = scmp.eq.s32.totalorder %s399, 0
      %s402 = sadd.s32 %s401, 1
      %s403 = scalar_select %p400, %s401, %s402
      %p406 = pneg %p400
      %p407 = scmp.eq.s32.totalorder %s108, 3
      %p408 = por %p406, %p407
      %p409 = scmp.ne.s32.totalorder %s401, %s404
      %p410 = scmp.eq.s32.totalorder %s108, 0
      %p411 = por %p409, %p410
      %p412 = scmp.ne.s32.totalorder %s401, %s404
      %p413 = scmp.eq.s32.totalorder %s113, 3
      %p414 = por %p412, %p413
      %p415 = scmp.ne.s32.totalorder %s404, %s405
      %p416 = scmp.eq.s32.totalorder %s113, 0
      %p417 = por %p415, %p416
      %p418 = scmp.ne.s32.totalorder %s404, %s405
      %p419 = scmp.eq.s32.totalorder %s114, 3
      %p420 = por %p418, %p419
      %p422 = scmp.ne.s32.totalorder %s405, %s421
      %p423 = scmp.eq.s32.totalorder %s114, 0
      %p424 = por %p422, %p423
      %s425 = ssub.s32 %s116, %s123
      %p426 = scmp.eq.s32.totalorder %s425, 0
      %s428 = sadd.s32 %s427, 1
      %s429 = scalar_select %p426, %s427, %s428
      %p432 = pneg %p426
      %p433 = scmp.eq.s32.totalorder %s108, 3
      %p434 = por %p432, %p433
      %p435 = scmp.ne.s32.totalorder %s427, %s430
      %p436 = scmp.eq.s32.totalorder %s108, 0
      %p437 = por %p435, %p436
      %p438 = scmp.ne.s32.totalorder %s427, %s430
      %p439 = scmp.eq.s32.totalorder %s113, 3
      %p440 = por %p438, %p439
      %p441 = scmp.ne.s32.totalorder %s430, %s431
      %p442 = scmp.eq.s32.totalorder %s113, 0
      %p443 = por %p441, %p442
      %p444 = scmp.ne.s32.totalorder %s430, %s431
      %p445 = scmp.eq.s32.totalorder %s114, 3
      %p446 = por %p444, %p445
      %p448 = scmp.ne.s32.totalorder %s431, %s447
      %p449 = scmp.eq.s32.totalorder %s114, 0
      %p450 = por %p448, %p449
      %s451 = ssub.s32 %s116, %s123
      %p452 = scmp.eq.s32.totalorder %s451, 0
      %s454 = sadd.s32 %s453, 1
      %s455 = scalar_select %p452, %s453, %s454
      %p458 = pneg %p452
      %p459 = scmp.eq.s32.totalorder %s108, 3
      %p460 = por %p458, %p459
      %p461 = scmp.ne.s32.totalorder %s453, %s456
      %p462 = scmp.eq.s32.totalorder %s108, 0
      %p463 = por %p461, %p462
      %p464 = scmp.ne.s32.totalorder %s453, %s456
      %p465 = scmp.eq.s32.totalorder %s113, 3
      %p466 = por %p464, %p465
      %p467 = scmp.ne.s32.totalorder %s456, %s457
      %p468 = scmp.eq.s32.totalorder %s113, 0
      %p469 = por %p467, %p468
      %p470 = scmp.ne.s32.totalorder %s456, %s457
      %p471 = scmp.eq.s32.totalorder %s114, 3
      %p472 = por %p470, %p471
      %p474 = scmp.ne.s32.totalorder %s457, %s473
      %p475 = scmp.eq.s32.totalorder %s114, 0
      %p476 = por %p474, %p475
      %s477 = ssub.s32 %s116, %s123
      %p478 = scmp.eq.s32.totalorder %s477, 0
      %s480 = sadd.s32 %s479, 1
      %s481 = scalar_select %p478, %s479, %s480
      %p484 = pneg %p478
      %p485 = scmp.eq.s32.totalorder %s108, 3
      %p486 = por %p484, %p485
      %p487 = scmp.ne.s32.totalorder %s479, %s482
      %p488 = scmp.eq.s32.totalorder %s108, 0
      %p489 = por %p487, %p488
      %p490 = scmp.ne.s32.totalorder %s479, %s482
      %p491 = scmp.eq.s32.totalorder %s113, 3
      %p492 = por %p490, %p491
      %p493 = scmp.ne.s32.totalorder %s482, %s483
      %p494 = scmp.eq.s32.totalorder %s113, 0
      %p495 = por %p493, %p494
      %p496 = scmp.ne.s32.totalorder %s482, %s483
      %p497 = scmp.eq.s32.totalorder %s114, 3
      %p498 = por %p496, %p497
      %p500 = scmp.ne.s32.totalorder %s483, %s499
      %p501 = scmp.eq.s32.totalorder %s114, 0
      %p502 = por %p500, %p501
      %s503 = ssub.s32 %s116, %s123
      %p504 = scmp.eq.s32.totalorder %s503, 0
      %s506 = sadd.s32 %s505, 1
      %s507 = scalar_select %p504, %s505, %s506
      %p510 = pneg %p504
      %p511 = scmp.eq.s32.totalorder %s108, 3
      %p512 = por %p510, %p511
      %p513 = scmp.ne.s32.totalorder %s505, %s508
      %p514 = scmp.eq.s32.totalorder %s108, 0
      %p515 = por %p513, %p514
      %p516 = scmp.ne.s32.totalorder %s505, %s508
      %p517 = scmp.eq.s32.totalorder %s113, 3
      %p518 = por %p516, %p517
      %p519 = scmp.ne.s32.totalorder %s508, %s509
      %p520 = scmp.eq.s32.totalorder %s113, 0
      %p521 = por %p519, %p520
      %p522 = scmp.ne.s32.totalorder %s508, %s509
      %p523 = scmp.eq.s32.totalorder %s114, 3
      %p524 = por %p522, %p523
      %p526 = scmp.ne.s32.totalorder %s509, %s525
      %p527 = scmp.eq.s32.totalorder %s114, 0
      %p528 = por %p526, %p527
      %s529 = ssub.s32 %s116, %s123
      %p530 = scmp.eq.s32.totalorder %s529, 0
      %s532 = sadd.s32 %s531, 1
      %s533 = scalar_select %p530, %s531, %s532
      %p536 = pneg %p530
      %p537 = scmp.eq.s32.totalorder %s108, 3
      %p538 = por %p536, %p537
      %p539 = scmp.ne.s32.totalorder %s531, %s534
      %p540 = scmp.eq.s32.totalorder %s108, 0
      %p541 = por %p539, %p540
      %p542 = scmp.ne.s32.totalorder %s531, %s534
      %p543 = scmp.eq.s32.totalorder %s113, 3
      %p544 = por %p542, %p543
      %p545 = scmp.ne.s32.totalorder %s534, %s535
      %p546 = scmp.eq.s32.totalorder %s113, 0
      %p547 = por %p545, %p546
      %p548 = scmp.ne.s32.totalorder %s534, %s535
      %p549 = scmp.eq.s32.totalorder %s114, 3
      %p550 = por %p548, %p549
      %p552 = scmp.ne.s32.totalorder %s535, %s551
      %p553 = scmp.eq.s32.totalorder %s114, 0
      %p554 = por %p552, %p553
      %s555 = ssub.s32 %s116, %s123
      %p556 = scmp.eq.s32.totalorder %s555, 0
      %s558 = sadd.s32 %s557, 1
      %s559 = scalar_select %p556, %s557, %s558
      %p562 = pneg %p556
      %p563 = scmp.eq.s32.totalorder %s108, 3
      %p564 = por %p562, %p563
      %p565 = scmp.ne.s32.totalorder %s557, %s560
      %p566 = scmp.eq.s32.totalorder %s108, 0
      %p567 = por %p565, %p566
      %p568 = scmp.ne.s32.totalorder %s557, %s560
      %p569 = scmp.eq.s32.totalorder %s113, 3
      %p570 = por %p568, %p569
      %p571 = scmp.ne.s32.totalorder %s560, %s561
      %p572 = scmp.eq.s32.totalorder %s113, 0
      %p573 = por %p571, %p572
      %p574 = scmp.ne.s32.totalorder %s560, %s561
      %p575 = scmp.eq.s32.totalorder %s114, 3
      %p576 = por %p574, %p575
      %p578 = scmp.ne.s32.totalorder %s561, %s577
      %p579 = scmp.eq.s32.totalorder %s114, 0
      %p580 = por %p578, %p579
      %s581 = ssub.s32 %s116, %s123
      %p582 = scmp.eq.s32.totalorder %s581, 0
      %s584 = sadd.s32 %s583, 1
      %s585 = scalar_select %p582, %s583, %s584
      %p588 = pneg %p582
      %p589 = scmp.eq.s32.totalorder %s108, 3
      %p590 = por %p588, %p589
      %p591 = scmp.ne.s32.totalorder %s583, %s586
      %p592 = scmp.eq.s32.totalorder %s108, 0
      %p593 = por %p591, %p592
      %p594 = scmp.ne.s32.totalorder %s583, %s586
      %p595 = scmp.eq.s32.totalorder %s113, 3
      %p596 = por %p594, %p595
      %p597 = scmp.ne.s32.totalorder %s586, %s587
      %p598 = scmp.eq.s32.totalorder %s113, 0
      %p599 = por %p597, %p598
      %p600 = scmp.ne.s32.totalorder %s586, %s587
      %p601 = scmp.eq.s32.totalorder %s114, 3
      %p602 = por %p600, %p601
      %p604 = scmp.ne.s32.totalorder %s587, %s603
      %p605 = scmp.eq.s32.totalorder %s114, 0
      %p606 = por %p604, %p605
      %s607 = ssub.s32 %s116, %s123
      %p608 = scmp.eq.s32.totalorder %s607, 0
      %s610 = sadd.s32 %s609, 1
      %s611 = scalar_select %p608, %s609, %s610
      %p614 = pneg %p608
      %p615 = scmp.eq.s32.totalorder %s108, 3
      %p616 = por %p614, %p615
      %p617 = scmp.ne.s32.totalorder %s609, %s612
      %p618 = scmp.eq.s32.totalorder %s108, 0
      %p619 = por %p617, %p618
      %p620 = scmp.ne.s32.totalorder %s609, %s612
      %p621 = scmp.eq.s32.totalorder %s113, 3
      %p622 = por %p620, %p621
      %p623 = scmp.ne.s32.totalorder %s612, %s613
      %p624 = scmp.eq.s32.totalorder %s113, 0
      %p625 = por %p623, %p624
      %p626 = scmp.ne.s32.totalorder %s612, %s613
      %p627 = scmp.eq.s32.totalorder %s114, 3
      %p628 = por %p626, %p627
      %p630 = scmp.ne.s32.totalorder %s613, %s629
      %p631 = scmp.eq.s32.totalorder %s114, 0
      %p632 = por %p630, %p631
      %s633 = ssub.s32 %s116, %s123
      %p634 = scmp.eq.s32.totalorder %s633, 0
      %s636 = sadd.s32 %s635, 1
      %s637 = scalar_select %p634, %s635, %s636
      %p640 = pneg %p634
      %p641 = scmp.eq.s32.totalorder %s108, 3
      %p642 = por %p640, %p641
      %p643 = scmp.ne.s32.totalorder %s635, %s638
      %p644 = scmp.eq.s32.totalorder %s108, 0
      %p645 = por %p643, %p644
      %p646 = scmp.ne.s32.totalorder %s635, %s638
      %p647 = scmp.eq.s32.totalorder %s113, 3
      %p648 = por %p646, %p647
      %p649 = scmp.ne.s32.totalorder %s638, %s639
      %p650 = scmp.eq.s32.totalorder %s113, 0
      %p651 = por %p649, %p650
      %p652 = scmp.ne.s32.totalorder %s638, %s639
      %p653 = scmp.eq.s32.totalorder %s114, 3
      %p654 = por %p652, %p653
      %p656 = scmp.ne.s32.totalorder %s639, %s655
      %p657 = scmp.eq.s32.totalorder %s114, 0
      %p658 = por %p656, %p657
      %s660 = sadd.s32 %s659, 1
      %p663 = scmp.eq.s32.totalorder %s108, 3
      %p664 = scmp.ne.s32.totalorder %s659, %s661
      %p665 = scmp.eq.s32.totalorder %s108, 0
      %p666 = por %p664, %p665
      %p667 = scmp.ne.s32.totalorder %s659, %s661
      %p668 = scmp.eq.s32.totalorder %s113, 3
      %p669 = por %p667, %p668
      %p670 = scmp.ne.s32.totalorder %s661, %s662
      %p671 = scmp.eq.s32.totalorder %s113, 0
      %p672 = por %p670, %p671
      %p673 = scmp.ne.s32.totalorder %s661, %s662
      %p674 = scmp.eq.s32.totalorder %s114, 3
      %p675 = por %p673, %p674
      %p677 = scmp.ne.s32.totalorder %s662, %s676
      %p678 = scmp.eq.s32.totalorder %s114, 0
      %p679 = por %p677, %p678
      %s681 = sadd.s32 %s680, 1
      %p684 = scmp.eq.s32.totalorder %s108, 3
      %p685 = scmp.ne.s32.totalorder %s680, %s682
      %p686 = scmp.eq.s32.totalorder %s108, 0
      %p687 = por %p685, %p686
      %p688 = scmp.ne.s32.totalorder %s680, %s682
      %p689 = scmp.eq.s32.totalorder %s113, 3
      %p690 = por %p688, %p689
      %p691 = scmp.ne.s32.totalorder %s682, %s683
      %p692 = scmp.eq.s32.totalorder %s113, 0
      %p693 = por %p691, %p692
      %p694 = scmp.ne.s32.totalorder %s682, %s683
      %p695 = scmp.eq.s32.totalorder %s114, 3
      %p696 = por %p694, %p695
      %p698 = scmp.ne.s32.totalorder %s683, %s697
      %p699 = scmp.eq.s32.totalorder %s114, 0
      %p700 = por %p698, %p699
      %s702 = sadd.s32 %s701, 1
      %p705 = scmp.eq.s32.totalorder %s108, 3
      %p706 = scmp.ne.s32.totalorder %s701, %s703
      %p707 = scmp.eq.s32.totalorder %s108, 0
      %p708 = por %p706, %p707
      %p709 = scmp.ne.s32.totalorder %s701, %s703
      %p710 = scmp.eq.s32.totalorder %s113, 3
      %p711 = por %p709, %p710
      %p712 = scmp.ne.s32.totalorder %s703, %s704
      %p713 = scmp.eq.s32.totalorder %s113, 0
      %p714 = por %p712, %p713
      %p715 = scmp.ne.s32.totalorder %s703, %s704
      %p716 = scmp.eq.s32.totalorder %s114, 3
      %p717 = por %p715, %p716
      %p719 = scmp.ne.s32.totalorder %s704, %s718
      %p720 = scmp.eq.s32.totalorder %s114, 0
      %p721 = por %p719, %p720
      %s723 = sadd.s32 %s722, 1
      %p726 = scmp.eq.s32.totalorder %s108, 3
      %p727 = scmp.ne.s32.totalorder %s722, %s724
      %p728 = scmp.eq.s32.totalorder %s108, 0
      %p729 = por %p727, %p728
      %p730 = scmp.ne.s32.totalorder %s722, %s724
      %p731 = scmp.eq.s32.totalorder %s113, 3
      %p732 = por %p730, %p731
      %p733 = scmp.ne.s32.totalorder %s724, %s725
      %p734 = scmp.eq.s32.totalorder %s113, 0
      %p735 = por %p733, %p734
      %p736 = scmp.ne.s32.totalorder %s724, %s725
      %p737 = scmp.eq.s32.totalorder %s114, 3
      %p738 = por %p736, %p737
      %p740 = scmp.ne.s32.totalorder %s725, %s739
      %p741 = scmp.eq.s32.totalorder %s114, 0
      %p742 = por %p740, %p741
      %s744 = sadd.s32 %s743, 1
      %p747 = scmp.eq.s32.totalorder %s108, 3
      %p748 = scmp.ne.s32.totalorder %s743, %s745
      %p749 = scmp.eq.s32.totalorder %s108, 0
      %p750 = por %p748, %p749
      %p751 = scmp.ne.s32.totalorder %s743, %s745
      %p752 = scmp.eq.s32.totalorder %s113, 3
      %p753 = por %p751, %p752
      %p754 = scmp.ne.s32.totalorder %s745, %s746
      %p755 = scmp.eq.s32.totalorder %s113, 0
      %p756 = por %p754, %p755
      %p757 = scmp.ne.s32.totalorder %s745, %s746
      %p758 = scmp.eq.s32.totalorder %s114, 3
      %p759 = por %p757, %p758
      %p761 = scmp.ne.s32.totalorder %s746, %s760
      %p762 = scmp.eq.s32.totalorder %s114, 0
      %p763 = por %p761, %p762
      %s765 = sadd.s32 %s764, 1
      %p768 = scmp.eq.s32.totalorder %s108, 3
      %p769 = scmp.ne.s32.totalorder %s764, %s766
      %p770 = scmp.eq.s32.totalorder %s108, 0
      %p771 = por %p769, %p770
      %p772 = scmp.ne.s32.totalorder %s764, %s766
      %p773 = scmp.eq.s32.totalorder %s113, 3
      %p774 = por %p772, %p773
      %p775 = scmp.ne.s32.totalorder %s766, %s767
      %p776 = scmp.eq.s32.totalorder %s113, 0
      %p777 = por %p775, %p776
      %p778 = scmp.ne.s32.totalorder %s766, %s767
      %p779 = scmp.eq.s32.totalorder %s114, 3
      %p780 = por %p778, %p779
      %p782 = scmp.ne.s32.totalorder %s767, %s781
      %p783 = scmp.eq.s32.totalorder %s114, 0
      %p784 = por %p782, %p783
      %s786 = sadd.s32 %s785, 1
      %p789 = scmp.eq.s32.totalorder %s108, 3
      %p790 = scmp.ne.s32.totalorder %s785, %s787
      %p791 = scmp.eq.s32.totalorder %s108, 0
      %p792 = por %p790, %p791
      %p793 = scmp.ne.s32.totalorder %s785, %s787
      %p794 = scmp.eq.s32.totalorder %s113, 3
      %p795 = por %p793, %p794
      %p796 = scmp.ne.s32.totalorder %s787, %s788
      %p797 = scmp.eq.s32.totalorder %s113, 0
      %p798 = por %p796, %p797
      %p799 = scmp.ne.s32.totalorder %s787, %s788
      %p800 = scmp.eq.s32.totalorder %s114, 3
      %p801 = por %p799, %p800
      %p803 = scmp.ne.s32.totalorder %s788, %s802
      %p804 = scmp.eq.s32.totalorder %s114, 0
      %p805 = por %p803, %p804
      %s807 = sadd.s32 %s806, 1
      %p810 = scmp.eq.s32.totalorder %s108, 3
      %p811 = scmp.ne.s32.totalorder %s806, %s808
      %p812 = scmp.eq.s32.totalorder %s108, 0
      %p813 = por %p811, %p812
      %p814 = scmp.ne.s32.totalorder %s806, %s808
      %p815 = scmp.eq.s32.totalorder %s113, 3
      %p816 = por %p814, %p815
      %p817 = scmp.ne.s32.totalorder %s808, %s809
      %p818 = scmp.eq.s32.totalorder %s113, 0
      %p819 = por %p817, %p818
      %p820 = scmp.ne.s32.totalorder %s808, %s809
      %p821 = scmp.eq.s32.totalorder %s114, 3
      %p822 = por %p820, %p821
      %p824 = scmp.ne.s32.totalorder %s809, %s823
      %p825 = scmp.eq.s32.totalorder %s114, 0
      %p826 = por %p824, %p825
      %s828 = sadd.s32 %s827, 1
      %p831 = scmp.eq.s32.totalorder %s108, 3
      %p832 = scmp.ne.s32.totalorder %s827, %s829
      %p833 = scmp.eq.s32.totalorder %s108, 0
      %p834 = por %p832, %p833
      %p835 = scmp.ne.s32.totalorder %s827, %s829
      %p836 = scmp.eq.s32.totalorder %s113, 3
      %p837 = por %p835, %p836
      %p838 = scmp.ne.s32.totalorder %s829, %s830
      %p839 = scmp.eq.s32.totalorder %s113, 0
      %p840 = por %p838, %p839
      %p841 = scmp.ne.s32.totalorder %s829, %s830
      %p842 = scmp.eq.s32.totalorder %s114, 3
      %p843 = por %p841, %p842
      %p845 = scmp.ne.s32.totalorder %s830, %s844
      %p846 = scmp.eq.s32.totalorder %s114, 0
      %p847 = por %p845, %p846
      %s849 = sadd.s32 %s848, 1
      %p852 = scmp.eq.s32.totalorder %s108, 3
      %p853 = scmp.ne.s32.totalorder %s848, %s850
      %p854 = scmp.eq.s32.totalorder %s108, 0
      %p855 = por %p853, %p854
      %p856 = scmp.ne.s32.totalorder %s848, %s850
      %p857 = scmp.eq.s32.totalorder %s113, 3
      %p858 = por %p856, %p857
      %p859 = scmp.ne.s32.totalorder %s850, %s851
      %p860 = scmp.eq.s32.totalorder %s113, 0
      %p861 = por %p859, %p860
      %p862 = scmp.ne.s32.totalorder %s850, %s851
      %p863 = scmp.eq.s32.totalorder %s114, 3
      %p864 = por %p862, %p863
      %p866 = scmp.ne.s32.totalorder %s851, %s865
      %p867 = scmp.eq.s32.totalorder %s114, 0
      %p868 = por %p866, %p867
      %s870 = sadd.s32 %s869, 1
      %p873 = scmp.eq.s32.totalorder %s108, 3
      %p874 = scmp.ne.s32.totalorder %s869, %s871
      %p875 = scmp.eq.s32.totalorder %s108, 0
      %p876 = por %p874, %p875
      %p877 = scmp.ne.s32.totalorder %s869, %s871
      %p878 = scmp.eq.s32.totalorder %s113, 3
      %p879 = por %p877, %p878
      %p880 = scmp.ne.s32.totalorder %s871, %s872
      %p881 = scmp.eq.s32.totalorder %s113, 0
      %p882 = por %p880, %p881
      %p883 = scmp.ne.s32.totalorder %s871, %s872
      %p884 = scmp.eq.s32.totalorder %s114, 3
      %p885 = por %p883, %p884
      %p887 = scmp.ne.s32.totalorder %s872, %s886
      %p888 = scmp.eq.s32.totalorder %s114, 0
      %p889 = por %p887, %p888
      %s891 = sadd.s32 %s890, 1
      %p894 = scmp.eq.s32.totalorder %s108, 3
      %p895 = scmp.ne.s32.totalorder %s890, %s892
      %p896 = scmp.eq.s32.totalorder %s108, 0
      %p897 = por %p895, %p896
      %p898 = scmp.ne.s32.totalorder %s890, %s892
      %p899 = scmp.eq.s32.totalorder %s113, 3
      %p900 = por %p898, %p899
      %p901 = scmp.ne.s32.totalorder %s892, %s893
      %p902 = scmp.eq.s32.totalorder %s113, 0
      %p903 = por %p901, %p902
      %p904 = scmp.ne.s32.totalorder %s892, %s893
      %p905 = scmp.eq.s32.totalorder %s114, 3
      %p906 = por %p904, %p905
      %p908 = scmp.ne.s32.totalorder %s893, %s907
      %p909 = scmp.eq.s32.totalorder %s114, 0
      %p910 = por %p908, %p909
      %s912 = sadd.s32 %s911, 1
      %p915 = scmp.eq.s32.totalorder %s108, 3
      %p916 = scmp.ne.s32.totalorder %s911, %s913
      %p917 = scmp.eq.s32.totalorder %s108, 0
      %p918 = por %p916, %p917
      %p919 = scmp.ne.s32.totalorder %s911, %s913
      %p920 = scmp.eq.s32.totalorder %s113, 3
      %p921 = por %p919, %p920
      %p922 = scmp.ne.s32.totalorder %s913, %s914
      %p923 = scmp.eq.s32.totalorder %s113, 0
      %p924 = por %p922, %p923
      %p925 = scmp.ne.s32.totalorder %s913, %s914
      %p926 = scmp.eq.s32.totalorder %s114, 3
      %p927 = por %p925, %p926
      %p929 = scmp.ne.s32.totalorder %s914, %s928
      %p930 = scmp.eq.s32.totalorder %s114, 0
      %p931 = por %p929, %p930
      %s932 = ssub.s32 %s115, %s127
      %p933 = scmp.eq.s32.totalorder %s932, 0
      %s935 = sadd.s32 %s934, 1
      %s936 = scalar_select %p933, %s934, %s935
      %p939 = pneg %p933
      %p940 = scmp.eq.s32.totalorder %s108, 3
      %p941 = por %p939, %p940
      %p942 = scmp.ne.s32.totalorder %s934, %s937
      %p943 = scmp.eq.s32.totalorder %s108, 0
      %p944 = por %p942, %p943
      %p945 = scmp.ne.s32.totalorder %s934, %s937
      %p946 = scmp.eq.s32.totalorder %s113, 3
      %p947 = por %p945, %p946
      %p948 = scmp.ne.s32.totalorder %s937, %s938
      %p949 = scmp.eq.s32.totalorder %s113, 0
      %p950 = por %p948, %p949
      %p951 = scmp.ne.s32.totalorder %s937, %s938
      %p952 = scmp.eq.s32.totalorder %s114, 3
      %p953 = por %p951, %p952
      %p955 = scmp.ne.s32.totalorder %s938, %s954
      %p956 = scmp.eq.s32.totalorder %s114, 0
      %p957 = por %p955, %p956
      %s958 = ssub.s32 %s115, %s127
      %p959 = scmp.eq.s32.totalorder %s958, 0
      %s961 = sadd.s32 %s960, 1
      %s962 = scalar_select %p959, %s960, %s961
      %p965 = pneg %p959
      %p966 = scmp.eq.s32.totalorder %s108, 3
      %p967 = por %p965, %p966
      %p968 = scmp.ne.s32.totalorder %s960, %s963
      %p969 = scmp.eq.s32.totalorder %s108, 0
      %p970 = por %p968, %p969
      %p971 = scmp.ne.s32.totalorder %s960, %s963
      %p972 = scmp.eq.s32.totalorder %s113, 3
      %p973 = por %p971, %p972
      %p974 = scmp.ne.s32.totalorder %s963, %s964
      %p975 = scmp.eq.s32.totalorder %s113, 0
      %p976 = por %p974, %p975
      %p977 = scmp.ne.s32.totalorder %s963, %s964
      %p978 = scmp.eq.s32.totalorder %s114, 3
      %p979 = por %p977, %p978
      %p981 = scmp.ne.s32.totalorder %s964, %s980
      %p982 = scmp.eq.s32.totalorder %s114, 0
      %p983 = por %p981, %p982
      %p984 = scmp.le.s32.totalorder 1, %s108
      %p985 = scmp.lt.s32.totalorder %s108, 5
      %p986 = pnand %p984, %p985
      %p987 = pneg %p986
      // Predicated region
      $region9: #{tpu_custom_call.1} parent=5 // pred_check
        _
      $region10: #{tpu_custom_call.1} parent=5 // pred_check_branch
        %989 = sbr.rel (%p986) target = $region12
      $region11: #{tpu_custom_call.1} parent=5 // pred_region
        %s990 = ssub.s32 %s108, 1
        // Predicated region
        $region13: #{tpu_custom_call.1} parent=11 // pred_check
          %p991 = pneg %p193
        $region14: #{tpu_custom_call.1} parent=11 // pred_check_branch
          %993 = sbr.rel (%p991) target = $region16
        $region15: #{tpu_custom_call.1} parent=11 // pred_region
          %s995 = ssub.s32 128, 128
          %996 = vsyncadd [#allocation8], %s995
          %s998 = sshll.u32 [#allocation9], 4
          %s999 = int_to_ptr.vmem [resolvable:$true] %s998
          %1001 = dma.hbm_to_vmem [thread:$0]  %s5, 128, %s999, [#allocation8]
        $region16: #{tpu_custom_call.1} parent=11 // pred_fallthru
          _
        // Predicated region
        $region17: #{tpu_custom_call.1} parent=11 // pred_check
          %p1002 = pneg %p214
        $region18: #{tpu_custom_call.1} parent=11 // pred_check_branch
          %1004 = sbr.rel (%p1002) target = $region20
        $region19: #{tpu_custom_call.1} parent=11 // pred_region
          %s1006 = ssub.s32 256, 256
          %1007 = vsyncadd [#allocation11], %s1006
          %s1008 = sshll.u32 [#allocation10], 4
          %s1009 = int_to_ptr.vmem [resolvable:$true] %s1008
          %1014 = dma.hbm_to_vmem [thread:$0]  %s7, 256, %s1009, [#allocation11], 64, 64, 4
        $region20: #{tpu_custom_call.1} parent=11 // pred_fallthru
          _
        // Predicated region
        $region21: #{tpu_custom_call.1} parent=11 // pred_check
          %p1015 = pneg %p235
        $region22: #{tpu_custom_call.1} parent=11 // pred_check_branch
          %1017 = sbr.rel (%p1015) target = $region24
        $region23: #{tpu_custom_call.1} parent=11 // pred_region
          %s1019 = ssub.s32 16, 16
          %1020 = vsyncadd [#allocation11], %s1019
          %s1022 = sshll.u32 [#allocation12], 4
          %s1023 = int_to_ptr.vmem [resolvable:$true] %s1022
          %1025 = dma.hbm_to_vmem [thread:$0]  %s9, 16, %s1023, [#allocation11]
        $region24: #{tpu_custom_call.1} parent=11 // pred_fallthru
          _
        // Predicated region
        $region25: #{tpu_custom_call.1} parent=11 // pred_check
          %p1026 = pneg %p672
        $region26: #{tpu_custom_call.1} parent=11 // pred_check_branch
          %1028 = sbr.rel (%p1026) target = $region28
        $region27: #{tpu_custom_call.1} parent=11 // pred_region
          _
        $region28: #{tpu_custom_call.1} parent=11 // pred_fallthru
          _
        // Predicated region
        $region29: #{tpu_custom_call.1} parent=11 // pred_check
          %p1029 = pneg %p693
        $region30: #{tpu_custom_call.1} parent=11 // pred_check_branch
          %1031 = sbr.rel (%p1029) target = $region32
        $region31: #{tpu_custom_call.1} parent=11 // pred_region
          _
        $region32: #{tpu_custom_call.1} parent=11 // pred_fallthru
          _
        // Predicated region
        $region33: #{tpu_custom_call.1} parent=11 // pred_check
          %p1032 = pneg %p714
        $region34: #{tpu_custom_call.1} parent=11 // pred_check_branch
          %1034 = sbr.rel (%p1032) target = $region36
        $region35: #{tpu_custom_call.1} parent=11 // pred_region
          %s1036 = ssub.s32 128, 128
          %1037 = vsyncadd [#allocation26], %s1036
          %s1039 = sshll.u32 [#allocation27], 4
          %s1040 = int_to_ptr.vmem [resolvable:$true] %s1039
          %1042 = dma.hbm_to_vmem [thread:$0]  %s47, 128, %s1040, [#allocation26]
        $region36: #{tpu_custom_call.1} parent=11 // pred_fallthru
          _
        // Predicated region
        $region37: #{tpu_custom_call.1} parent=11 // pred_check
          %p1043 = pneg %p735
        $region38: #{tpu_custom_call.1} parent=11 // pred_check_branch
          %1045 = sbr.rel (%p1043) target = $region40
        $region39: #{tpu_custom_call.1} parent=11 // pred_region
          %s1047 = ssub.s32 512, 512
          %1048 = vsyncadd [#allocation29], %s1047
          %s1049 = sshll.u32 [#allocation28], 4
          %s1050 = int_to_ptr.vmem [resolvable:$true] %s1049
          %1055 = dma.hbm_to_vmem [thread:$0]  %s49, 512, %s1050, [#allocation29], 64, 64, 4
        $region40: #{tpu_custom_call.1} parent=11 // pred_fallthru
          _
        // Predicated region
        $region41: #{tpu_custom_call.1} parent=11 // pred_check
          %p1056 = pneg %p756
        $region42: #{tpu_custom_call.1} parent=11 // pred_check_branch
          %1058 = sbr.rel (%p1056) target = $region44
        $region43: #{tpu_custom_call.1} parent=11 // pred_region
          _
        $region44: #{tpu_custom_call.1} parent=11 // pred_fallthru
          _
        // Predicated region
        $region45: #{tpu_custom_call.1} parent=11 // pred_check
          %p1059 = pneg %p777
        $region46: #{tpu_custom_call.1} parent=11 // pred_check_branch
          %1061 = sbr.rel (%p1059) target = $region48
        $region47: #{tpu_custom_call.1} parent=11 // pred_region
          %s1063 = ssub.s32 512, 512
          %1064 = vsyncadd [#allocation29], %s1063
          %s1065 = sshll.u32 [#allocation30], 4
          %s1066 = int_to_ptr.vmem [resolvable:$true] %s1065
          %1071 = dma.hbm_to_vmem [thread:$0]  %s53, 512, %s1066, [#allocation29], 64, 64, 4
        $region48: #{tpu_custom_call.1} parent=11 // pred_fallthru
          _
        // Predicated region
        $region49: #{tpu_custom_call.1} parent=11 // pred_check
          %p1072 = pneg %p798
        $region50: #{tpu_custom_call.1} parent=11 // pred_check_branch
          %1074 = sbr.rel (%p1072) target = $region52
        $region51: #{tpu_custom_call.1} parent=11 // pred_region
          _
        $region52: #{tpu_custom_call.1} parent=11 // pred_fallthru
          _
        // Predicated region
        $region53: #{tpu_custom_call.1} parent=11 // pred_check
          %p1075 = pneg %p819
        $region54: #{tpu_custom_call.1} parent=11 // pred_check_branch
          %1077 = sbr.rel (%p1075) target = $region56
        $region55: #{tpu_custom_call.1} parent=11 // pred_region
          %s1079 = ssub.s32 512, 512
          %1080 = vsyncadd [#allocation32], %s1079
          %s1081 = sshll.u32 [#allocation31], 4
          %s1082 = int_to_ptr.vmem [resolvable:$true] %s1081
          %1087 = dma.hbm_to_vmem [thread:$0]  %s57, 512, %s1082, [#allocation32], 64, 64, 4
        $region56: #{tpu_custom_call.1} parent=11 // pred_fallthru
          _
        // Predicated region
        $region57: #{tpu_custom_call.1} parent=11 // pred_check
          %p1088 = pneg %p840
        $region58: #{tpu_custom_call.1} parent=11 // pred_check_branch
          %1090 = sbr.rel (%p1088) target = $region60
        $region59: #{tpu_custom_call.1} parent=11 // pred_region
          _
        $region60: #{tpu_custom_call.1} parent=11 // pred_fallthru
          _
        // Predicated region
        $region61: #{tpu_custom_call.1} parent=11 // pred_check
          %p1091 = pneg %p861
        $region62: #{tpu_custom_call.1} parent=11 // pred_check_branch
          %1093 = sbr.rel (%p1091) target = $region64
        $region63: #{tpu_custom_call.1} parent=11 // pred_region
          _
        $region64: #{tpu_custom_call.1} parent=11 // pred_fallthru
          _
        // Predicated region
        $region65: #{tpu_custom_call.1} parent=11 // pred_check
          %p1094 = pneg %p882
        $region66: #{tpu_custom_call.1} parent=11 // pred_check_branch
          %1096 = sbr.rel (%p1094) target = $region68
        $region67: #{tpu_custom_call.1} parent=11 // pred_region
          _
        $region68: #{tpu_custom_call.1} parent=11 // pred_fallthru
          _
        // Predicated region
        $region69: #{tpu_custom_call.1} parent=11 // pred_check
          %p1097 = pneg %p903
        $region70: #{tpu_custom_call.1} parent=11 // pred_check_branch
          %1099 = sbr.rel (%p1097) target = $region72
        $region71: #{tpu_custom_call.1} parent=11 // pred_region
          _
        $region72: #{tpu_custom_call.1} parent=11 // pred_fallthru
          _
        // Predicated region
        $region73: #{tpu_custom_call.1} parent=11 // pred_check
          %p1100 = pneg %p924
        $region74: #{tpu_custom_call.1} parent=11 // pred_check_branch
          %1102 = sbr.rel (%p1100) target = $region76
        $region75: #{tpu_custom_call.1} parent=11 // pred_region
          _
        $region76: #{tpu_custom_call.1} parent=11 // pred_fallthru
          _
      $region12: #{tpu_custom_call.1} parent=5 // pred_fallthru
        _
      %p1103 = scmp.lt.s32.totalorder %s108, 4
      // Predicated region
      $region77: #{tpu_custom_call.1} parent=5 // pred_check
        %p1104 = pneg %p1103
      $region78: #{tpu_custom_call.1} parent=5 // pred_check_branch
        %1106 = sbr.rel (%p1104) target = $region80
      $region79: #{tpu_custom_call.1} parent=5 // pred_region
        // Predicated region
        $region81: #{tpu_custom_call.1} parent=79 // pred_check
          %p1107 = pneg %p140
        $region82: #{tpu_custom_call.1} parent=79 // pred_check_branch
          %1109 = sbr.rel (%p1107) target = $region84
        $region83: #{tpu_custom_call.1} parent=79 // pred_region
          %s1110 = sand.u32 %s130, 1
          %s1111 = scalar_lea.sflag [#allocation5], %s1110
          %s1112 = sand.u32 %s130, 1
          %s1113 = smul.addr %s1112, 8
          %s1114 = scalar_lea.vmem [#allocation4], %s1113
          %s1116 = ssub.s32 128, 128
          %1117 = vsyncadd %s1111, %s1116
          %s1118 = smul.addr %s115, 128
          %s1119 = scalar_lea.hbm %s1, %s1118
          %s1121 = sshll.u32 %s1114, 4
          %s1122 = int_to_ptr.vmem [resolvable:$true] %s1121
          %1124 = dma.hbm_to_vmem [thread:$0]  %s1119, 128, %s1122, %s1111
        $region84: #{tpu_custom_call.1} parent=79 // pred_fallthru
          _
        // Predicated region
        $region85: #{tpu_custom_call.1} parent=79 // pred_check
          %p1125 = pneg %p166
        $region86: #{tpu_custom_call.1} parent=79 // pred_check_branch
          %1127 = sbr.rel (%p1125) target = $region88
        $region87: #{tpu_custom_call.1} parent=79 // pred_region
          %s1128 = sand.u32 %s108, 1
          %s1129 = scalar_lea.sflag [#allocation8], %s1128
          %s1130 = sand.u32 %s156, 1
          %s1131 = scalar_lea.vmem [#allocation7], %s1130
          %s1133 = ssub.s32 16, 16
          %1134 = vsyncadd %s1129, %s1133
          %s1135 = smul.addr %s115, 16
          %s1136 = scalar_lea.hbm %s3, %s1135
          %s1138 = sshll.u32 %s1131, 4
          %s1139 = int_to_ptr.vmem [resolvable:$true] %s1138
          %1141 = dma.hbm_to_vmem [thread:$0]  %s1136, 16, %s1139, %s1129
        $region88: #{tpu_custom_call.1} parent=79 // pred_fallthru
          _
        // Predicated region
        $region89: #{tpu_custom_call.1} parent=79 // pred_check
          %p1142 = pneg %p255
        $region90: #{tpu_custom_call.1} parent=79 // pred_check_branch
          %1144 = sbr.rel (%p1142) target = $region92
        $region91: #{tpu_custom_call.1} parent=79 // pred_region
          %s1145 = sand.u32 %s108, 1
          %s1146 = scalar_lea.sflag [#allocation14], %s1145
          %s1147 = sand.u32 %s245, 1
          %s1148 = scalar_lea.vmem [#allocation13], %s1147
          %s1150 = ssub.s32 16, 16
          %1151 = vsyncadd %s1146, %s1150
          %s1152 = smul.addr %s116, 16
          %s1153 = scalar_lea.hbm %s11, %s1152
          %s1155 = sshll.u32 %s1148, 4
          %s1156 = int_to_ptr.vmem [resolvable:$true] %s1155
          %1158 = dma.hbm_to_vmem [thread:$0]  %s1153, 16, %s1156, %s1146
        $region92: #{tpu_custom_call.1} parent=79 // pred_fallthru
          _
        // Predicated region
        $region93: #{tpu_custom_call.1} parent=79 // pred_check
          %p1159 = pneg %p281
        $region94: #{tpu_custom_call.1} parent=79 // pred_check_branch
          %1161 = sbr.rel (%p1159) target = $region96
        $region95: #{tpu_custom_call.1} parent=79 // pred_region
          %s1162 = sand.u32 %s108, 1
          %s1163 = scalar_lea.sflag [#allocation14], %s1162
          %s1164 = sand.u32 %s271, 1
          %s1165 = scalar_lea.vmem [#allocation15], %s1164
          %s1167 = ssub.s32 16, 16
          %1168 = vsyncadd %s1163, %s1167
          %s1169 = smul.addr %s116, 16
          %s1170 = scalar_lea.hbm %s13, %s1169
          %s1172 = sshll.u32 %s1165, 4
          %s1173 = int_to_ptr.vmem [resolvable:$true] %s1172
          %1175 = dma.hbm_to_vmem [thread:$0]  %s1170, 16, %s1173, %s1163
        $region96: #{tpu_custom_call.1} parent=79 // pred_fallthru
          _
        // Predicated region
        $region97: #{tpu_custom_call.1} parent=79 // pred_check
          %p1176 = pneg %p307
        $region98: #{tpu_custom_call.1} parent=79 // pred_check_branch
          %1178 = sbr.rel (%p1176) target = $region100
        $region99: #{tpu_custom_call.1} parent=79 // pred_region
          %p1179 = scmp.lt.s32.totalorder %s116, 1
          %s1180 = scalar_select %p1179, %s116, 1
          %s1181 = smul.addr %s1180, 16
          %s1182 = smul.addr %s1181, 4
          %s1183 = scalar_lea.vmem %s15, %s1182
        $region100: #{tpu_custom_call.1} parent=79 // pred_fallthru
          _
        // Predicated region
        $region101: #{tpu_custom_call.1} parent=79 // pred_check
          %p1184 = pneg %p333
        $region102: #{tpu_custom_call.1} parent=79 // pred_check_branch
          %1186 = sbr.rel (%p1184) target = $region104
        $region103: #{tpu_custom_call.1} parent=79 // pred_region
          %p1187 = scmp.lt.s32.totalorder %s116, 1
          %s1188 = scalar_select %p1187, %s116, 1
          %s1189 = smul.addr %s1188, 16
          %s1190 = smul.addr %s1189, 4
          %s1191 = scalar_lea.vmem %s17, %s1190
        $region104: #{tpu_custom_call.1} parent=79 // pred_fallthru
          _
        // Predicated region
        $region105: #{tpu_custom_call.1} parent=79 // pred_check
          %p1192 = pneg %p359
        $region106: #{tpu_custom_call.1} parent=79 // pred_check_branch
          %1194 = sbr.rel (%p1192) target = $region108
        $region107: #{tpu_custom_call.1} parent=79 // pred_region
          %p1195 = scmp.lt.s32.totalorder %s116, 1
          %s1196 = scalar_select %p1195, %s116, 1
          %s1197 = smul.addr %s1196, 16
          %s1198 = smul.addr %s1197, 4
          %s1199 = scalar_lea.vmem %s19, %s1198
        $region108: #{tpu_custom_call.1} parent=79 // pred_fallthru
          _
        // Predicated region
        $region109: #{tpu_custom_call.1} parent=79 // pred_check
          %p1200 = pneg %p385
        $region110: #{tpu_custom_call.1} parent=79 // pred_check_branch
          %1202 = sbr.rel (%p1200) target = $region112
        $region111: #{tpu_custom_call.1} parent=79 // pred_region
          %s1203 = sand.u32 %s108, 1
          %s1204 = scalar_lea.sflag [#allocation17], %s1203
          %s1205 = sand.u32 %s375, 1
          %s1206 = smul.addr %s1205, 2
          %s1207 = scalar_lea.vmem [#allocation16], %s1206
          %s1209 = ssub.s32 32, 32
          %1210 = vsyncadd %s1204, %s1209
          %s1211 = smul.addr %s116, 2
          %s1212 = smul.addr %s1211, 16
          %s1213 = scalar_lea.hbm %s21, %s1212
          %s1215 = sshll.u32 %s1207, 4
          %s1216 = int_to_ptr.vmem [resolvable:$true] %s1215
          %1218 = dma.hbm_to_vmem [thread:$0]  %s1213, 32, %s1216, %s1204
        $region112: #{tpu_custom_call.1} parent=79 // pred_fallthru
          _
        // Predicated region
        $region113: #{tpu_custom_call.1} parent=79 // pred_check
          %p1219 = pneg %p411
        $region114: #{tpu_custom_call.1} parent=79 // pred_check_branch
          %1221 = sbr.rel (%p1219) target = $region116
        $region115: #{tpu_custom_call.1} parent=79 // pred_region
          %s1222 = sand.u32 %s108, 1
          %s1223 = scalar_lea.sflag [#allocation17], %s1222
          %s1224 = sand.u32 %s401, 1
          %s1225 = smul.addr %s1224, 2
          %s1226 = scalar_lea.vmem [#allocation18], %s1225
          %s1228 = ssub.s32 32, 32
          %1229 = vsyncadd %s1223, %s1228
          %s1230 = smul.addr %s116, 2
          %s1231 = smul.addr %s1230, 16
          %s1232 = scalar_lea.hbm %s23, %s1231
          %s1234 = sshll.u32 %s1226, 4
          %s1235 = int_to_ptr.vmem [resolvable:$true] %s1234
          %1237 = dma.hbm_to_vmem [thread:$0]  %s1232, 32, %s1235, %s1223
        $region116: #{tpu_custom_call.1} parent=79 // pred_fallthru
          _
        // Predicated region
        $region117: #{tpu_custom_call.1} parent=79 // pred_check
          %p1238 = pneg %p437
        $region118: #{tpu_custom_call.1} parent=79 // pred_check_branch
          %1240 = sbr.rel (%p1238) target = $region120
        $region119: #{tpu_custom_call.1} parent=79 // pred_region
          %s1241 = sand.u32 %s108, 1
          %s1242 = scalar_lea.sflag [#allocation20], %s1241
          %s1243 = sand.u32 %s427, 1
          %s1244 = smul.addr %s1243, 2
          %s1245 = scalar_lea.vmem [#allocation19], %s1244
          %s1247 = ssub.s32 32, 32
          %1248 = vsyncadd %s1242, %s1247
          %s1249 = smul.addr %s116, 2
          %s1250 = smul.addr %s1249, 16
          %s1251 = scalar_lea.hbm %s25, %s1250
          %s1253 = sshll.u32 %s1245, 4
          %s1254 = int_to_ptr.vmem [resolvable:$true] %s1253
          %1256 = dma.hbm_to_vmem [thread:$0]  %s1251, 32, %s1254, %s1242
        $region120: #{tpu_custom_call.1} parent=79 // pred_fallthru
          _
        // Predicated region
        $region121: #{tpu_custom_call.1} parent=79 // pred_check
          %p1257 = pneg %p463
        $region122: #{tpu_custom_call.1} parent=79 // pred_check_branch
          %1259 = sbr.rel (%p1257) target = $region124
        $region123: #{tpu_custom_call.1} parent=79 // pred_region
          %p1260 = scmp.lt.s32.totalorder %s116, 1
          %s1261 = scalar_select %p1260, %s116, 1
          %s1262 = smul.addr %s1261, 32
          %s1263 = smul.addr %s1262, 4
          %s1264 = scalar_lea.vmem %s27, %s1263
        $region124: #{tpu_custom_call.1} parent=79 // pred_fallthru
          _
        // Predicated region
        $region125: #{tpu_custom_call.1} parent=79 // pred_check
          %p1265 = pneg %p489
        $region126: #{tpu_custom_call.1} parent=79 // pred_check_branch
          %1267 = sbr.rel (%p1265) target = $region128
        $region127: #{tpu_custom_call.1} parent=79 // pred_region
          %s1268 = sand.u32 %s108, 1
          %s1269 = scalar_lea.sflag [#allocation20], %s1268
          %s1270 = sand.u32 %s479, 1
          %s1271 = scalar_lea.vmem [#allocation21], %s1270
          %s1273 = ssub.s32 16, 16
          %1274 = vsyncadd %s1269, %s1273
          %s1275 = smul.addr %s116, 16
          %s1276 = scalar_lea.hbm %s29, %s1275
          %s1278 = sshll.u32 %s1271, 4
          %s1279 = int_to_ptr.vmem [resolvable:$true] %s1278
          %1281 = dma.hbm_to_vmem [thread:$0]  %s1276, 16, %s1279, %s1269
        $region128: #{tpu_custom_call.1} parent=79 // pred_fallthru
          _
        // Predicated region
        $region129: #{tpu_custom_call.1} parent=79 // pred_check
          %p1282 = pneg %p515
        $region130: #{tpu_custom_call.1} parent=79 // pred_check_branch
          %1284 = sbr.rel (%p1282) target = $region132
        $region131: #{tpu_custom_call.1} parent=79 // pred_region
          %s1285 = sand.u32 %s108, 1
          %s1286 = scalar_lea.sflag [#allocation23], %s1285
          %s1287 = sand.u32 %s505, 1
          %s1288 = scalar_lea.vmem [#allocation22], %s1287
          %s1290 = ssub.s32 16, 16
          %1291 = vsyncadd %s1286, %s1290
          %s1292 = smul.addr %s116, 16
          %s1293 = scalar_lea.hbm %s31, %s1292
          %s1295 = sshll.u32 %s1288, 4
          %s1296 = int_to_ptr.vmem [resolvable:$true] %s1295
          %1298 = dma.hbm_to_vmem [thread:$0]  %s1293, 16, %s1296, %s1286
        $region132: #{tpu_custom_call.1} parent=79 // pred_fallthru
          _
        // Predicated region
        $region133: #{tpu_custom_call.1} parent=79 // pred_check
          %p1299 = pneg %p541
        $region134: #{tpu_custom_call.1} parent=79 // pred_check_branch
          %1301 = sbr.rel (%p1299) target = $region136
        $region135: #{tpu_custom_call.1} parent=79 // pred_region
          %s1302 = sand.u32 %s108, 1
          %s1303 = scalar_lea.sflag [#allocation23], %s1302
          %s1304 = sand.u32 %s531, 1
          %s1305 = scalar_lea.vmem [#allocation24], %s1304
          %s1307 = ssub.s32 16, 16
          %1308 = vsyncadd %s1303, %s1307
          %s1309 = smul.addr %s116, 16
          %s1310 = scalar_lea.hbm %s33, %s1309
          %s1312 = sshll.u32 %s1305, 4
          %s1313 = int_to_ptr.vmem [resolvable:$true] %s1312
          %1315 = dma.hbm_to_vmem [thread:$0]  %s1310, 16, %s1313, %s1303
        $region136: #{tpu_custom_call.1} parent=79 // pred_fallthru
          _
        // Predicated region
        $region137: #{tpu_custom_call.1} parent=79 // pred_check
          %p1316 = pneg %p567
        $region138: #{tpu_custom_call.1} parent=79 // pred_check_branch
          %1318 = sbr.rel (%p1316) target = $region140
        $region139: #{tpu_custom_call.1} parent=79 // pred_region
          %p1319 = scmp.lt.s32.totalorder %s116, 1
          %s1320 = scalar_select %p1319, %s116, 1
          %s1321 = smul.addr %s1320, 40
          %s1322 = smul.addr %s1321, 4
          %s1323 = scalar_lea.vmem %s35, %s1322
        $region140: #{tpu_custom_call.1} parent=79 // pred_fallthru
          _
        // Predicated region
        $region141: #{tpu_custom_call.1} parent=79 // pred_check
          %p1324 = pneg %p593
        $region142: #{tpu_custom_call.1} parent=79 // pred_check_branch
          %1326 = sbr.rel (%p1324) target = $region144
        $region143: #{tpu_custom_call.1} parent=79 // pred_region
          %s1327 = sand.u32 %s108, 1
          %s1328 = scalar_lea.sflag [#allocation26], %s1327
          %s1329 = sand.u32 %s583, 1
          %s1330 = scalar_lea.vmem [#allocation25], %s1329
          %s1332 = ssub.s32 16, 16
          %1333 = vsyncadd %s1328, %s1332
          %s1334 = smul.addr %s116, 16
          %s1335 = scalar_lea.hbm %s37, %s1334
          %s1337 = sshll.u32 %s1330, 4
          %s1338 = int_to_ptr.vmem [resolvable:$true] %s1337
          %1340 = dma.hbm_to_vmem [thread:$0]  %s1335, 16, %s1338, %s1328
        $region144: #{tpu_custom_call.1} parent=79 // pred_fallthru
          _
        // Predicated region
        $region145: #{tpu_custom_call.1} parent=79 // pred_check
          %p1341 = pneg %p619
        $region146: #{tpu_custom_call.1} parent=79 // pred_check_branch
          %1343 = sbr.rel (%p1341) target = $region148
        $region147: #{tpu_custom_call.1} parent=79 // pred_region
          %p1344 = scmp.lt.s32.totalorder %s116, 1
          %s1345 = scalar_select %p1344, %s116, 1
          %s1346 = smul.addr %s1345, 16
          %s1347 = smul.addr %s1346, 4
          %s1348 = scalar_lea.vmem %s39, %s1347
        $region148: #{tpu_custom_call.1} parent=79 // pred_fallthru
          _
        // Predicated region
        $region149: #{tpu_custom_call.1} parent=79 // pred_check
          %p1349 = pneg %p645
        $region150: #{tpu_custom_call.1} parent=79 // pred_check_branch
          %1351 = sbr.rel (%p1349) target = $region152
        $region151: #{tpu_custom_call.1} parent=79 // pred_region
          %p1352 = scmp.lt.s32.totalorder %s116, 1
          %s1353 = scalar_select %p1352, %s116, 1
          %s1354 = scalar_lea.vmem %s41, %s1353
        $region152: #{tpu_custom_call.1} parent=79 // pred_fallthru
          _
      $region80: #{tpu_custom_call.1} parent=5 // pred_fallthru
        _
      %p1355 = scmp.le.s32.totalorder 1, %s108
      %p1356 = scmp.lt.s32.totalorder %s108, 5
      %p1357 = pnand %p1355, %p1356
      %p1358 = pneg %p1357
      // Predicated region
      $region153: #{tpu_custom_call.1} parent=5 // pred_check
        _
      $region154: #{tpu_custom_call.1} parent=5 // pred_check_branch
        %1360 = sbr.rel (%p1357) target = $region156
      $region155: #{tpu_custom_call.1} parent=5 // pred_region
        %s1361 = ssub.s32 %s108, 1
        %s1362 = sand.u32 %s133, 1
        %s1363 = scalar_lea.sflag [#allocation5], %s1362
        %s1364 = sand.u32 %s133, 1
        %s1365 = smul.addr %s1364, 8
        %s1366 = scalar_lea.vmem [#allocation4], %s1365
        // Predicated region
        $region157: #{tpu_custom_call.1} parent=155 // pred_check
          %p1367 = pneg %p146
        $region158: #{tpu_custom_call.1} parent=155 // pred_check_branch
          %1369 = sbr.rel (%p1367) target = $region160
        $region159: #{tpu_custom_call.1} parent=155 // pred_region
          %1370 = dma.done %s1363, 128
        $region160: #{tpu_custom_call.1} parent=155 // pred_fallthru
          _
        %s1371 = sand.u32 %s113, 1
        %s1372 = scalar_lea.sflag [#allocation8], %s1371
        %s1373 = sand.u32 %s159, 1
        %s1374 = scalar_lea.vmem [#allocation7], %s1373
        // Predicated region
        $region161: #{tpu_custom_call.1} parent=155 // pred_check
          %p1375 = pneg %p172
        $region162: #{tpu_custom_call.1} parent=155 // pred_check_branch
          %1377 = sbr.rel (%p1375) target = $region164
        $region163: #{tpu_custom_call.1} parent=155 // pred_region
          %1378 = dma.done %s1372, 16
        $region164: #{tpu_custom_call.1} parent=155 // pred_fallthru
          _
        // Predicated region
        $region165: #{tpu_custom_call.1} parent=155 // pred_check
          %p1379 = pneg %p193
        $region166: #{tpu_custom_call.1} parent=155 // pred_check_branch
          %1381 = sbr.rel (%p1379) target = $region168
        $region167: #{tpu_custom_call.1} parent=155 // pred_region
          %1382 = dma.done [#allocation8], 128
        $region168: #{tpu_custom_call.1} parent=155 // pred_fallthru
          _
        // Predicated region
        $region169: #{tpu_custom_call.1} parent=155 // pred_check
          %p1383 = pneg %p214
        $region170: #{tpu_custom_call.1} parent=155 // pred_check_branch
          %1385 = sbr.rel (%p1383) target = $region172
        $region171: #{tpu_custom_call.1} parent=155 // pred_region
          %1386 = dma.done [#allocation11], 256
        $region172: #{tpu_custom_call.1} parent=155 // pred_fallthru
          _
        // Predicated region
        $region173: #{tpu_custom_call.1} parent=155 // pred_check
          %p1387 = pneg %p235
        $region174: #{tpu_custom_call.1} parent=155 // pred_check_branch
          %1389 = sbr.rel (%p1387) target = $region176
        $region175: #{tpu_custom_call.1} parent=155 // pred_region
          %1390 = dma.done [#allocation11], 16
        $region176: #{tpu_custom_call.1} parent=155 // pred_fallthru
          _
        %s1391 = sand.u32 %s113, 1
        %s1392 = scalar_lea.sflag [#allocation14], %s1391
        %s1393 = sand.u32 %s248, 1
        %s1394 = scalar_lea.vmem [#allocation13], %s1393
        // Predicated region
        $region177: #{tpu_custom_call.1} parent=155 // pred_check
          %p1395 = pneg %p261
        $region178: #{tpu_custom_call.1} parent=155 // pred_check_branch
          %1397 = sbr.rel (%p1395) target = $region180
        $region179: #{tpu_custom_call.1} parent=155 // pred_region
          %1398 = dma.done %s1392, 16
        $region180: #{tpu_custom_call.1} parent=155 // pred_fallthru
          _
        %s1399 = sand.u32 %s113, 1
        %s1400 = scalar_lea.sflag [#allocation14], %s1399
        %s1401 = sand.u32 %s274, 1
        %s1402 = scalar_lea.vmem [#allocation15], %s1401
        // Predicated region
        $region181: #{tpu_custom_call.1} parent=155 // pred_check
          %p1403 = pneg %p287
        $region182: #{tpu_custom_call.1} parent=155 // pred_check_branch
          %1405 = sbr.rel (%p1403) target = $region184
        $region183: #{tpu_custom_call.1} parent=155 // pred_region
          %1406 = dma.done %s1400, 16
        $region184: #{tpu_custom_call.1} parent=155 // pred_fallthru
          _
        %s1407 = sand.u32 %s113, 1
        %s1408 = scalar_lea.sflag [#allocation17], %s1407
        %s1409 = sand.u32 %s378, 1
        %s1410 = smul.addr %s1409, 2
        %s1411 = scalar_lea.vmem [#allocation16], %s1410
        // Predicated region
        $region185: #{tpu_custom_call.1} parent=155 // pred_check
          %p1412 = pneg %p391
        $region186: #{tpu_custom_call.1} parent=155 // pred_check_branch
          %1414 = sbr.rel (%p1412) target = $region188
        $region187: #{tpu_custom_call.1} parent=155 // pred_region
          %1415 = dma.done %s1408, 32
        $region188: #{tpu_custom_call.1} parent=155 // pred_fallthru
          _
        %s1416 = sand.u32 %s113, 1
        %s1417 = scalar_lea.sflag [#allocation17], %s1416
        %s1418 = sand.u32 %s404, 1
        %s1419 = smul.addr %s1418, 2
        %s1420 = scalar_lea.vmem [#allocation18], %s1419
        // Predicated region
        $region189: #{tpu_custom_call.1} parent=155 // pred_check
          %p1421 = pneg %p417
        $region190: #{tpu_custom_call.1} parent=155 // pred_check_branch
          %1423 = sbr.rel (%p1421) target = $region192
        $region191: #{tpu_custom_call.1} parent=155 // pred_region
          %1424 = dma.done %s1417, 32
        $region192: #{tpu_custom_call.1} parent=155 // pred_fallthru
          _
        %s1425 = sand.u32 %s113, 1
        %s1426 = scalar_lea.sflag [#allocation20], %s1425
        %s1427 = sand.u32 %s430, 1
        %s1428 = smul.addr %s1427, 2
        %s1429 = scalar_lea.vmem [#allocation19], %s1428
        // Predicated region
        $region193: #{tpu_custom_call.1} parent=155 // pred_check
          %p1430 = pneg %p443
        $region194: #{tpu_custom_call.1} parent=155 // pred_check_branch
          %1432 = sbr.rel (%p1430) target = $region196
        $region195: #{tpu_custom_call.1} parent=155 // pred_region
          %1433 = dma.done %s1426, 32
        $region196: #{tpu_custom_call.1} parent=155 // pred_fallthru
          _
        %s1434 = sand.u32 %s113, 1
        %s1435 = scalar_lea.sflag [#allocation20], %s1434
        %s1436 = sand.u32 %s482, 1
        %s1437 = scalar_lea.vmem [#allocation21], %s1436
        // Predicated region
        $region197: #{tpu_custom_call.1} parent=155 // pred_check
          %p1438 = pneg %p495
        $region198: #{tpu_custom_call.1} parent=155 // pred_check_branch
          %1440 = sbr.rel (%p1438) target = $region200
        $region199: #{tpu_custom_call.1} parent=155 // pred_region
          %1441 = dma.done %s1435, 16
        $region200: #{tpu_custom_call.1} parent=155 // pred_fallthru
          _
        %s1442 = sand.u32 %s113, 1
        %s1443 = scalar_lea.sflag [#allocation23], %s1442
        %s1444 = sand.u32 %s508, 1
        %s1445 = scalar_lea.vmem [#allocation22], %s1444
        // Predicated region
        $region201: #{tpu_custom_call.1} parent=155 // pred_check
          %p1446 = pneg %p521
        $region202: #{tpu_custom_call.1} parent=155 // pred_check_branch
          %1448 = sbr.rel (%p1446) target = $region204
        $region203: #{tpu_custom_call.1} parent=155 // pred_region
          %1449 = dma.done %s1443, 16
        $region204: #{tpu_custom_call.1} parent=155 // pred_fallthru
          _
        %s1450 = sand.u32 %s113, 1
        %s1451 = scalar_lea.sflag [#allocation23], %s1450
        %s1452 = sand.u32 %s534, 1
        %s1453 = scalar_lea.vmem [#allocation24], %s1452
        // Predicated region
        $region205: #{tpu_custom_call.1} parent=155 // pred_check
          %p1454 = pneg %p547
        $region206: #{tpu_custom_call.1} parent=155 // pred_check_branch
          %1456 = sbr.rel (%p1454) target = $region208
        $region207: #{tpu_custom_call.1} parent=155 // pred_region
          %1457 = dma.done %s1451, 16
        $region208: #{tpu_custom_call.1} parent=155 // pred_fallthru
          _
        %s1458 = sand.u32 %s113, 1
        %s1459 = scalar_lea.sflag [#allocation26], %s1458
        %s1460 = sand.u32 %s586, 1
        %s1461 = scalar_lea.vmem [#allocation25], %s1460
        // Predicated region
        $region209: #{tpu_custom_call.1} parent=155 // pred_check
          %p1462 = pneg %p599
        $region210: #{tpu_custom_call.1} parent=155 // pred_check_branch
          %1464 = sbr.rel (%p1462) target = $region212
        $region211: #{tpu_custom_call.1} parent=155 // pred_region
          %1465 = dma.done %s1459, 16
        $region212: #{tpu_custom_call.1} parent=155 // pred_fallthru
          _
        // Predicated region
        $region213: #{tpu_custom_call.1} parent=155 // pred_check
          %p1466 = pneg %p714
        $region214: #{tpu_custom_call.1} parent=155 // pred_check_branch
          %1468 = sbr.rel (%p1466) target = $region216
        $region215: #{tpu_custom_call.1} parent=155 // pred_region
          %1469 = dma.done [#allocation26], 128
        $region216: #{tpu_custom_call.1} parent=155 // pred_fallthru
          _
        // Predicated region
        $region217: #{tpu_custom_call.1} parent=155 // pred_check
          %p1470 = pneg %p735
        $region218: #{tpu_custom_call.1} parent=155 // pred_check_branch
          %1472 = sbr.rel (%p1470) target = $region220
        $region219: #{tpu_custom_call.1} parent=155 // pred_region
          %1473 = dma.done [#allocation29], 512
        $region220: #{tpu_custom_call.1} parent=155 // pred_fallthru
          _
        // Predicated region
        $region221: #{tpu_custom_call.1} parent=155 // pred_check
          %p1474 = pneg %p777
        $region222: #{tpu_custom_call.1} parent=155 // pred_check_branch
          %1476 = sbr.rel (%p1474) target = $region224
        $region223: #{tpu_custom_call.1} parent=155 // pred_region
          %1477 = dma.done [#allocation29], 512
        $region224: #{tpu_custom_call.1} parent=155 // pred_fallthru
          _
        // Predicated region
        $region225: #{tpu_custom_call.1} parent=155 // pred_check
          %p1478 = pneg %p819
        $region226: #{tpu_custom_call.1} parent=155 // pred_check_branch
          %1480 = sbr.rel (%p1478) target = $region228
        $region227: #{tpu_custom_call.1} parent=155 // pred_region
          %1481 = dma.done [#allocation32], 512
        $region228: #{tpu_custom_call.1} parent=155 // pred_fallthru
          _
        %s1482 = sand.u32 %s133, 1
        %s1483 = scalar_lea.sflag [#allocation5], %s1482
        %s1484 = sand.u32 %s133, 1
        %s1485 = smul.addr %s1484, 8
        %s1486 = scalar_lea.vmem [#allocation4], %s1485
        %p1487 = pneg %p146
        %p1488 = pneg %p143
        %s1489 = sand.u32 %s113, 1
        %s1490 = scalar_lea.sflag [#allocation8], %s1489
        %s1491 = sand.u32 %s159, 1
        %s1492 = scalar_lea.vmem [#allocation7], %s1491
        %p1493 = pneg %p172
        %p1494 = pneg %p169
        %p1495 = pneg %p193
        %p1496 = pneg %p190
        %p1497 = pneg %p214
        %p1498 = pneg %p211
        %p1499 = pneg %p235
        %p1500 = pneg %p232
        %s1501 = sand.u32 %s113, 1
        %s1502 = scalar_lea.sflag [#allocation14], %s1501
        %s1503 = sand.u32 %s248, 1
        %s1504 = scalar_lea.vmem [#allocation13], %s1503
        %p1505 = pneg %p261
        %p1506 = pneg %p258
        %s1507 = sand.u32 %s113, 1
        %s1508 = scalar_lea.sflag [#allocation14], %s1507
        %s1509 = sand.u32 %s274, 1
        %s1510 = scalar_lea.vmem [#allocation15], %s1509
        %p1511 = pneg %p287
        %p1512 = pneg %p284
        %p1513 = scmp.lt.s32.totalorder %s118, 1
        %s1514 = scalar_select %p1513, %s118, 1
        %s1515 = smul.addr %s1514, 16
        %s1516 = smul.addr %s1515, 4
        %s1517 = scalar_lea.vmem %s15, %s1516
        %p1518 = pneg %p313
        %p1519 = pneg %p310
        %p1520 = scmp.lt.s32.totalorder %s118, 1
        %s1521 = scalar_select %p1520, %s118, 1
        %s1522 = smul.addr %s1521, 16
        %s1523 = smul.addr %s1522, 4
        %s1524 = scalar_lea.vmem %s17, %s1523
        %p1525 = pneg %p339
        %p1526 = pneg %p336
        %p1527 = scmp.lt.s32.totalorder %s118, 1
        %s1528 = scalar_select %p1527, %s118, 1
        %s1529 = smul.addr %s1528, 16
        %s1530 = smul.addr %s1529, 4
        %s1531 = scalar_lea.vmem %s19, %s1530
        %p1532 = pneg %p365
        %p1533 = pneg %p362
        %s1534 = sand.u32 %s113, 1
        %s1535 = scalar_lea.sflag [#allocation17], %s1534
        %s1536 = sand.u32 %s378, 1
        %s1537 = smul.addr %s1536, 2
        %s1538 = scalar_lea.vmem [#allocation16], %s1537
        %p1539 = pneg %p391
        %p1540 = pneg %p388
        %s1541 = sand.u32 %s113, 1
        %s1542 = scalar_lea.sflag [#allocation17], %s1541
        %s1543 = sand.u32 %s404, 1
        %s1544 = smul.addr %s1543, 2
        %s1545 = scalar_lea.vmem [#allocation18], %s1544
        %p1546 = pneg %p417
        %p1547 = pneg %p414
        %s1548 = sand.u32 %s113, 1
        %s1549 = scalar_lea.sflag [#allocation20], %s1548
        %s1550 = sand.u32 %s430, 1
        %s1551 = smul.addr %s1550, 2
        %s1552 = scalar_lea.vmem [#allocation19], %s1551
        %p1553 = pneg %p443
        %p1554 = pneg %p440
        %p1555 = scmp.lt.s32.totalorder %s118, 1
        %s1556 = scalar_select %p1555, %s118, 1
        %s1557 = smul.addr %s1556, 32
        %s1558 = smul.addr %s1557, 4
        %s1559 = scalar_lea.vmem %s27, %s1558
        %p1560 = pneg %p469
        %p1561 = pneg %p466
        %s1562 = sand.u32 %s113, 1
        %s1563 = scalar_lea.sflag [#allocation20], %s1562
        %s1564 = sand.u32 %s482, 1
        %s1565 = scalar_lea.vmem [#allocation21], %s1564
        %p1566 = pneg %p495
        %p1567 = pneg %p492
        %s1568 = sand.u32 %s113, 1
        %s1569 = scalar_lea.sflag [#allocation23], %s1568
        %s1570 = sand.u32 %s508, 1
        %s1571 = scalar_lea.vmem [#allocation22], %s1570
        %p1572 = pneg %p521
        %p1573 = pneg %p518
        %s1574 = sand.u32 %s113, 1
        %s1575 = scalar_lea.sflag [#allocation23], %s1574
        %s1576 = sand.u32 %s534, 1
        %s1577 = scalar_lea.vmem [#allocation24], %s1576
        %p1578 = pneg %p547
        %p1579 = pneg %p544
        %p1580 = scmp.lt.s32.totalorder %s118, 1
        %s1581 = scalar_select %p1580, %s118, 1
        %s1582 = smul.addr %s1581, 40
        %s1583 = smul.addr %s1582, 4
        %s1584 = scalar_lea.vmem %s35, %s1583
        %p1585 = pneg %p573
        %p1586 = pneg %p570
        %s1587 = sand.u32 %s113, 1
        %s1588 = scalar_lea.sflag [#allocation26], %s1587
        %s1589 = sand.u32 %s586, 1
        %s1590 = scalar_lea.vmem [#allocation25], %s1589
        %p1591 = pneg %p599
        %p1592 = pneg %p596
        %p1593 = scmp.lt.s32.totalorder %s118, 1
        %s1594 = scalar_select %p1593, %s118, 1
        %s1595 = smul.addr %s1594, 16
        %s1596 = smul.addr %s1595, 4
        %s1597 = scalar_lea.vmem %s39, %s1596
        %p1598 = pneg %p625
        %p1599 = pneg %p622
        %p1600 = scmp.lt.s32.totalorder %s118, 1
        %s1601 = scalar_select %p1600, %s118, 1
        %s1602 = scalar_lea.vmem %s41, %s1601
        %p1603 = pneg %p651
        %p1604 = pneg %p648
        %p1605 = pneg %p672
        %p1606 = pneg %p669
        %p1607 = pneg %p693
        %p1608 = pneg %p690
        %p1609 = pneg %p714
        %p1610 = pneg %p711
        %p1611 = pneg %p735
        %p1612 = pneg %p732
        %p1613 = pneg %p756
        %p1614 = pneg %p753
        %p1615 = pneg %p777
        %p1616 = pneg %p774
        %p1617 = pneg %p798
        %p1618 = pneg %p795
        %p1619 = pneg %p819
        %p1620 = pneg %p816
        %p1621 = pneg %p840
        %p1622 = pneg %p837
        %p1623 = pneg %p861
        %p1624 = pneg %p858
        %p1625 = pneg %p882
        %p1626 = pneg %p879
        %p1627 = pneg %p903
        %p1628 = pneg %p900
        %p1629 = pneg %p924
        %p1630 = pneg %p921
        %p1631 = pneg %p950
        %p1632 = pneg %p947
        %s1633 = sand.u32 %s937, 1
        %s1634 = scalar_lea.sflag [#allocation6], %s1633
        %s1635 = sand.u32 %s937, 1
        %s1636 = smul.addr %s1635, 8
        %s1637 = scalar_lea.vmem [#allocation33], %s1636
        %p1638 = pneg %p976
        %p1639 = pneg %p973
        %s1640 = sand.u32 %s963, 1
        %s1641 = scalar_lea.sflag [#allocation35], %s1640
        %s1642 = sand.u32 %s963, 1
        %s1643 = smul.addr %s1642, 8
        %s1644 = scalar_lea.vmem [#allocation34], %s1643
        %p1645 = scmp.lt.s32.totalorder %s118, 1
        %s1646 = scalar_select %p1645, %s118, 1
        %s1647 = smul.addr %s1646, 16
        %s1648 = smul.addr %s1647, 4
        %s1649 = scalar_lea.vmem %s15, %s1648
        %p1650 = scmp.lt.s32.totalorder %s118, 1
        %s1651 = scalar_select %p1650, %s118, 1
        %s1652 = smul.addr %s1651, 16
        %s1653 = smul.addr %s1652, 4
        %s1654 = scalar_lea.vmem %s17, %s1653
        %p1655 = scmp.lt.s32.totalorder %s118, 1
        %s1656 = scalar_select %p1655, %s118, 1
        %s1657 = smul.addr %s1656, 16
        %s1658 = smul.addr %s1657, 4
        %s1659 = scalar_lea.vmem %s19, %s1658
        %p1660 = scmp.lt.s32.totalorder %s118, 1
        %s1661 = scalar_select %p1660, %s118, 1
        %s1662 = smul.addr %s1661, 32
        %s1663 = smul.addr %s1662, 4
        %s1664 = scalar_lea.vmem %s27, %s1663
        %p1665 = scmp.lt.s32.totalorder %s118, 1
        %s1666 = scalar_select %p1665, %s118, 1
        %s1667 = smul.addr %s1666, 40
        %s1668 = smul.addr %s1667, 4
        %s1669 = scalar_lea.vmem %s35, %s1668
        %p1670 = scmp.lt.s32.totalorder %s118, 1
        %s1671 = scalar_select %p1670, %s118, 1
        %s1672 = smul.addr %s1671, 16
        %s1673 = smul.addr %s1672, 4
        %s1674 = scalar_lea.vmem %s39, %s1673
        %p1675 = scmp.lt.s32.totalorder %s118, 1
        %s1676 = scalar_select %p1675, %s118, 1
        %s1677 = scalar_lea.vmem %s41, %s1676
        %p1679 = scmp.eq.s32.totalorder %s118, 0
        // Predicated region
        $region229: #{tpu_custom_call.1} parent=155 // pred_check
          %p1680 = pneg %p1679
        $region230: #{tpu_custom_call.1} parent=155 // pred_check_branch
          %1682 = sbr.rel (%p1680) target = $region232
        $region231: #{tpu_custom_call.1} parent=155 // pred_region
          %v1683 = vld [vmem:[%s1366] sm:$0xff]
          %v1684 = vld [vmem:[#allocation10] sm:$0xf]
          %v1685 = vld [vmem:[#allocation10 + $0x4] sm:$0xf]
          %v1686 = vld [vmem:[#allocation10 + $0x8] sm:$0xf]
          %v1687 = vld [vmem:[#allocation10 + $0xc] sm:$0xf]
          %v1688 = vpack.c.bf16 %v1683, %v1683
          %v1689 = vld [vmem:[#allocation12] sm:$0x1]
          %v1691 = vlaneseq
          %v1692 = vshrl.u32 %v1691, 7
          %v1693 = vsub.s32 0, %v1692
          %v1694 = vrot.slane %v1689, %v1693
          %v1700 = vunpack.c.l.b16 %v1684
          %v1701 = vunpack.c.l.b16 %v1685
          %v1702 = vunpack.c.l.b16 %v1686
          %v1703 = vunpack.c.l.b16 %v1687
          %v1704 = vpack.c.b16 %v1701, %v1700
          %v1705 = vpack.c.b16 %v1703, %v1702
          %vm1708 = vcmask 261120
          %v1710 = vsel %vm1708, %v1688, 0
          %1712 = vmatprep.subr.bf16.mxu0 0
          %1713 = vmatpush1.bf16.msra.mxu0 0
          %1714 = vmatprep.subr.bf16.mxu0 0
          %1715 = vmatpush1.bf16.msra.mxu0 0
          %1716 = vmatprep.subr.bf16.mxu0 0
          %1717 = vmatpush1.bf16.msra.mxu0 0
          %1718 = vmatprep.subr.bf16.mxu0 0
          %1719 = vmatpush1.bf16.msra.mxu0 0
          %1720 = vmatprep.subr.bf16.mxu0 0
          %1721 = vmatpush1.bf16.msra.mxu0 0
          %1722 = vmatprep.subr.bf16.mxu0 0
          %1723 = vmatpush1.bf16.msra.mxu0 0
          %1724 = vmatprep.subr.bf16.mxu0 0
          %1725 = vmatpush1.bf16.msra.mxu0 %v1705
          %1726 = vmatprep.subr.bf16.mxu0 0
          %1727 = vmatpush1.bf16.msra.mxu0 %v1704
          %1728 = vmatprep.subr.bf16.mxu0 0
          %1729 = vmatpush2.bf16.msra.mxu0 0
          %1730 = vmatprep.subr.bf16.mxu0 0
          %1731 = vmatpush2.bf16.msra.mxu0 0
          %1732 = vmatprep.subr.bf16.mxu0 0
          %1733 = vmatpush2.bf16.msra.mxu0 0
          %1734 = vmatprep.subr.bf16.mxu0 0
          %1735 = vmatpush2.bf16.msra.mxu0 0
          %1736 = vmatprep.subr.bf16.mxu0 0
          %1737 = vmatpush2.bf16.msra.mxu0 0
          %1738 = vmatprep.subr.bf16.mxu0 0
          %1739 = vmatpush2.bf16.msra.mxu0 0
          %1740 = vmatprep.subr.bf16.mxu0 0
          %1741 = vmatpush2.bf16.msra.mxu0 0
          %1742 = vmatprep.subr.bf16.mxu0 0
          %1743 = vmatpush2.bf16.msra.mxu0 0
          %1744 = vmatprep.mubr.bf16.mxu0 0
          %1745 = vmatmul.mubr.bf16.gmra.mxu0 %v1710
          %v1746 = vpop.f32.mrf.mxu0
          %v1747 = vadd.f32 %v1694, %v1746
          %v1748 = vpop.f32.mrf.mxu0
          %v1749 = vpop.f32.mrf.mxu0
          %v1750 = vpop.f32.mrf.mxu0
          %1751 = vdwg.mxu0
          %v1752 = vld [vmem:[#allocation9] sm:$0xff]
          %v1753 = vadd.f32 %v1747, %v1752
          %vm1754 = vcmask 523264
          %1755 = vst.msk [vmem:[#allocation2] sm:$0xff] %vm1754, %v1753
          %1756 = vst [vmem:[#allocation3] sm:$0xff] 0.0
          %1757 = vst [vmem:[#allocation3 + $0x8] sm:$0xff] 0.0
          %1758 = vst.msk [vmem:[#allocation3 + $0x10] sm:$0xff] %vm1754, 0.0
        $region232: #{tpu_custom_call.1} parent=155 // pred_fallthru
          _
        %v1759 = vld [vmem:[#allocation2] sm:$0xff]
        %v1760 = vld [vmem:[%s1394] sm:$0x1]
        %v1761 = vld [vmem:[%s1402] sm:$0x1]
        %vm1762 = vcmask 523264
        %v1763 = vsel %vm1762, %v1759, 0.0
        %1764 = vadd.xlane.f32.xlu0 %v1763
        %v1765 = vpop.xlane.xlu0 %1764
        %v1766 = vrcp.pop 64.0
        %v1767 = vmul.f32 %v1765, %v1766
        %v1768 = vsub.f32 %v1759, %v1767
        %v1769 = vmul.f32 %v1768, %v1768
        %v1770 = vsel %vm1762, %v1769, 0.0
        %1771 = vadd.xlane.f32.xlu0 %v1770
        %v1772 = vpop.xlane.xlu0 %1771
        %v1773 = vmul.f32 %v1772, %v1766
        %v1774 = vadd.f32 %v1773, 1e-05
        %v1775 = vrsqrt.pop %v1774
        %v1776 = vmul.f32 %v1768, %v1775
        %v1778 = vlaneseq
        %v1779 = vshrl.u32 %v1778, 7
        %v1780 = vsub.s32 0, %v1779
        %v1781 = vrot.slane %v1760, %v1780
        %v1783 = vmul.f32 %v1776, %v1781
        %v1785 = vlaneseq
        %v1786 = vshrl.u32 %v1785, 7
        %v1787 = vsub.s32 0, %v1786
        %v1788 = vrot.slane %v1761, %v1787
        %v1790 = vadd.f32 %v1783, %v1788
        %v1791 = vld [vmem:[%s1649] sm:$0xff]
        %v1792 = vld [vmem:[%s1649 + $0x8] sm:$0xff]
        %v1793 = vld [vmem:[%s1649 + $0x10] sm:$0xff]
        %v1794 = vld [vmem:[%s1649 + $0x18] sm:$0xff]
        %v1795 = vld [vmem:[%s1649 + $0x20] sm:$0xff]
        %v1796 = vld [vmem:[%s1649 + $0x28] sm:$0xff]
        %v1797 = vld [vmem:[%s1649 + $0x30] sm:$0xff]
        %v1798 = vld [vmem:[%s1649 + $0x38] sm:$0xff]
        %v1799 = vpack.c.bf16 %v1790, %v1790
        %v1800 = vld [vmem:[%s1411] sm:$0x3]
        %v1802 = vlaneseq
        %v1803 = vshrl.u32 %v1802, 7
        %v1804 = vsub.s32 0, %v1803
        %v1805 = vrot.slane %v1800, %v1804
        %v1806 = vlaneseq
        %v1807 = vshrl.u32 %v1806, 7
        %v1808 = vsub.s32 1, %v1807
        %v1809 = vrot.slane %v1800, %v1808
        %v1820 = vunpack.c.l.b16 %v1791
        %v1821 = vunpack.c.h.b16 %v1791
        %v1822 = vunpack.c.l.b16 %v1792
        %v1823 = vunpack.c.h.b16 %v1792
        %v1824 = vunpack.c.l.b16 %v1793
        %v1825 = vunpack.c.h.b16 %v1793
        %v1826 = vunpack.c.l.b16 %v1794
        %v1827 = vunpack.c.h.b16 %v1794
        %v1828 = vunpack.c.l.b16 %v1795
        %v1829 = vunpack.c.h.b16 %v1795
        %v1830 = vunpack.c.l.b16 %v1796
        %v1831 = vunpack.c.h.b16 %v1796
        %v1832 = vunpack.c.l.b16 %v1797
        %v1833 = vunpack.c.h.b16 %v1797
        %v1834 = vunpack.c.l.b16 %v1798
        %v1835 = vunpack.c.h.b16 %v1798
        %v1836 = vpack.c.b16 %v1822, %v1820
        %v1837 = vpack.c.b16 %v1823, %v1821
        %v1838 = vpack.c.b16 %v1826, %v1824
        %v1839 = vpack.c.b16 %v1827, %v1825
        %v1840 = vpack.c.b16 %v1830, %v1828
        %v1841 = vpack.c.b16 %v1831, %v1829
        %v1842 = vpack.c.b16 %v1834, %v1832
        %v1843 = vpack.c.b16 %v1835, %v1833
        %v1853 = vsel %vm1762, %v1799, 0
        %1855 = vmatprep.subr.bf16.mxu0 0
        %1856 = vmatpush1.bf16.msra.mxu0 0
        %1857 = vmatprep.subr.bf16.mxu0 0
        %1858 = vmatpush1.bf16.msra.mxu0 0
        %1859 = vmatprep.subr.bf16.mxu0 0
        %1860 = vmatpush1.bf16.msra.mxu0 0
        %1861 = vmatprep.subr.bf16.mxu0 0
        %1862 = vmatpush1.bf16.msra.mxu0 0
        %1863 = vmatprep.subr.bf16.mxu0 %v1843
        %1864 = vmatpush1.bf16.msra.mxu0 %v1842
        %1865 = vmatprep.subr.bf16.mxu0 %v1841
        %1866 = vmatpush1.bf16.msra.mxu0 %v1840
        %1867 = vmatprep.subr.bf16.mxu0 %v1839
        %1868 = vmatpush1.bf16.msra.mxu0 %v1838
        %1869 = vmatprep.subr.bf16.mxu0 %v1837
        %1870 = vmatpush1.bf16.msra.mxu0 %v1836
        %1871 = vmatprep.subr.bf16.mxu0 0
        %1872 = vmatpush2.bf16.msra.mxu0 0
        %1873 = vmatprep.subr.bf16.mxu0 0
        %1874 = vmatpush2.bf16.msra.mxu0 0
        %1875 = vmatprep.subr.bf16.mxu0 0
        %1876 = vmatpush2.bf16.msra.mxu0 0
        %1877 = vmatprep.subr.bf16.mxu0 0
        %1878 = vmatpush2.bf16.msra.mxu0 0
        %1879 = vmatprep.subr.bf16.mxu0 0
        %1880 = vmatpush2.bf16.msra.mxu0 0
        %1881 = vmatprep.subr.bf16.mxu0 0
        %1882 = vmatpush2.bf16.msra.mxu0 0
        %1883 = vmatprep.subr.bf16.mxu0 0
        %1884 = vmatpush2.bf16.msra.mxu0 0
        %1885 = vmatprep.subr.bf16.mxu0 0
        %1886 = vmatpush2.bf16.msra.mxu0 0
        %1887 = vmatprep.mubr.bf16.mxu0 0
        %1888 = vmatmul.mubr.bf16.gmra.mxu0 %v1853
        %v1889 = vpop.f32.mrf.mxu0
        %v1890 = vadd.f32 %v1805, %v1889
        %v1891 = vpop.f32.mrf.mxu0
        %v1892 = vadd.f32 %v1809, %v1891
        %v1893 = vpop.f32.mrf.mxu0
        %v1894 = vpop.f32.mrf.mxu0
        %1895 = vdwg.mxu0
        %v1896 = vld [vmem:[%s1654] sm:$0xff]
        %v1897 = vld [vmem:[%s1654 + $0x8] sm:$0xff]
        %v1898 = vld [vmem:[%s1654 + $0x10] sm:$0xff]
        %v1899 = vld [vmem:[%s1654 + $0x18] sm:$0xff]
        %v1900 = vld [vmem:[%s1654 + $0x20] sm:$0xff]
        %v1901 = vld [vmem:[%s1654 + $0x28] sm:$0xff]
        %v1902 = vld [vmem:[%s1654 + $0x30] sm:$0xff]
        %v1903 = vld [vmem:[%s1654 + $0x38] sm:$0xff]
        %v1904 = vld [vmem:[%s1420] sm:$0x3]
        %v1906 = vlaneseq
        %v1907 = vshrl.u32 %v1906, 7
        %v1908 = vsub.s32 0, %v1907
        %v1909 = vrot.slane %v1904, %v1908
        %v1910 = vlaneseq
        %v1911 = vshrl.u32 %v1910, 7
        %v1912 = vsub.s32 1, %v1911
        %v1913 = vrot.slane %v1904, %v1912
        %v1924 = vunpack.c.l.b16 %v1896
        %v1925 = vunpack.c.h.b16 %v1896
        %v1926 = vunpack.c.l.b16 %v1897
        %v1927 = vunpack.c.h.b16 %v1897
        %v1928 = vunpack.c.l.b16 %v1898
        %v1929 = vunpack.c.h.b16 %v1898
        %v1930 = vunpack.c.l.b16 %v1899
        %v1931 = vunpack.c.h.b16 %v1899
        %v1932 = vunpack.c.l.b16 %v1900
        %v1933 = vunpack.c.h.b16 %v1900
        %v1934 = vunpack.c.l.b16 %v1901
        %v1935 = vunpack.c.h.b16 %v1901
        %v1936 = vunpack.c.l.b16 %v1902
        %v1937 = vunpack.c.h.b16 %v1902
        %v1938 = vunpack.c.l.b16 %v1903
        %v1939 = vunpack.c.h.b16 %v1903
        %v1940 = vpack.c.b16 %v1926, %v1924
        %v1941 = vpack.c.b16 %v1927, %v1925
        %v1942 = vpack.c.b16 %v1930, %v1928
        %v1943 = vpack.c.b16 %v1931, %v1929
        %v1944 = vpack.c.b16 %v1934, %v1932
        %v1945 = vpack.c.b16 %v1935, %v1933
        %v1946 = vpack.c.b16 %v1938, %v1936
        %v1947 = vpack.c.b16 %v1939, %v1937
        %1956 = vmatprep.subr.bf16.mxu0 0
        %1957 = vmatpush1.bf16.msra.mxu0 0
        %1958 = vmatprep.subr.bf16.mxu0 0
        %1959 = vmatpush1.bf16.msra.mxu0 0
        %1960 = vmatprep.subr.bf16.mxu0 0
        %1961 = vmatpush1.bf16.msra.mxu0 0
        %1962 = vmatprep.subr.bf16.mxu0 0
        %1963 = vmatpush1.bf16.msra.mxu0 0
        %1964 = vmatprep.subr.bf16.mxu0 %v1947
        %1965 = vmatpush1.bf16.msra.mxu0 %v1946
        %1966 = vmatprep.subr.bf16.mxu0 %v1945
        %1967 = vmatpush1.bf16.msra.mxu0 %v1944
        %1968 = vmatprep.subr.bf16.mxu0 %v1943
        %1969 = vmatpush1.bf16.msra.mxu0 %v1942
        %1970 = vmatprep.subr.bf16.mxu0 %v1941
        %1971 = vmatpush1.bf16.msra.mxu0 %v1940
        %1972 = vmatprep.subr.bf16.mxu0 0
        %1973 = vmatpush2.bf16.msra.mxu0 0
        %1974 = vmatprep.subr.bf16.mxu0 0
        %1975 = vmatpush2.bf16.msra.mxu0 0
        %1976 = vmatprep.subr.bf16.mxu0 0
        %1977 = vmatpush2.bf16.msra.mxu0 0
        %1978 = vmatprep.subr.bf16.mxu0 0
        %1979 = vmatpush2.bf16.msra.mxu0 0
        %1980 = vmatprep.subr.bf16.mxu0 0
        %1981 = vmatpush2.bf16.msra.mxu0 0
        %1982 = vmatprep.subr.bf16.mxu0 0
        %1983 = vmatpush2.bf16.msra.mxu0 0
        %1984 = vmatprep.subr.bf16.mxu0 0
        %1985 = vmatpush2.bf16.msra.mxu0 0
        %1986 = vmatprep.subr.bf16.mxu0 0
        %1987 = vmatpush2.bf16.msra.mxu0 0
        %1988 = vmatprep.mubr.bf16.mxu0 0
        %1989 = vmatmul.mubr.bf16.gmra.mxu0 %v1853
        %v1990 = vpop.f32.mrf.mxu0
        %v1991 = vadd.f32 %v1909, %v1990
        %v1992 = vpop.f32.mrf.mxu0
        %v1993 = vadd.f32 %v1913, %v1992
        %v1994 = vpop.f32.mrf.mxu0
        %v1995 = vpop.f32.mrf.mxu0
        %1996 = vdwg.mxu0
        %v1997 = vld [vmem:[%s1659] sm:$0xff]
        %v1998 = vld [vmem:[%s1659 + $0x8] sm:$0xff]
        %v1999 = vld [vmem:[%s1659 + $0x10] sm:$0xff]
        %v2000 = vld [vmem:[%s1659 + $0x18] sm:$0xff]
        %v2001 = vld [vmem:[%s1659 + $0x20] sm:$0xff]
        %v2002 = vld [vmem:[%s1659 + $0x28] sm:$0xff]
        %v2003 = vld [vmem:[%s1659 + $0x30] sm:$0xff]
        %v2004 = vld [vmem:[%s1659 + $0x38] sm:$0xff]
        %v2005 = vld [vmem:[%s1429] sm:$0x3]
        %v2007 = vlaneseq
        %v2008 = vshrl.u32 %v2007, 7
        %v2009 = vsub.s32 0, %v2008
        %v2010 = vrot.slane %v2005, %v2009
        %v2011 = vlaneseq
        %v2012 = vshrl.u32 %v2011, 7
        %v2013 = vsub.s32 1, %v2012
        %v2014 = vrot.slane %v2005, %v2013
        %v2025 = vunpack.c.l.b16 %v1997
        %v2026 = vunpack.c.h.b16 %v1997
        %v2027 = vunpack.c.l.b16 %v1998
        %v2028 = vunpack.c.h.b16 %v1998
        %v2029 = vunpack.c.l.b16 %v1999
        %v2030 = vunpack.c.h.b16 %v1999
        %v2031 = vunpack.c.l.b16 %v2000
        %v2032 = vunpack.c.h.b16 %v2000
        %v2033 = vunpack.c.l.b16 %v2001
        %v2034 = vunpack.c.h.b16 %v2001
        %v2035 = vunpack.c.l.b16 %v2002
        %v2036 = vunpack.c.h.b16 %v2002
        %v2037 = vunpack.c.l.b16 %v2003
        %v2038 = vunpack.c.h.b16 %v2003
        %v2039 = vunpack.c.l.b16 %v2004
        %v2040 = vunpack.c.h.b16 %v2004
        %v2041 = vpack.c.b16 %v2027, %v2025
        %v2042 = vpack.c.b16 %v2028, %v2026
        %v2043 = vpack.c.b16 %v2031, %v2029
        %v2044 = vpack.c.b16 %v2032, %v2030
        %v2045 = vpack.c.b16 %v2035, %v2033
        %v2046 = vpack.c.b16 %v2036, %v2034
        %v2047 = vpack.c.b16 %v2039, %v2037
        %v2048 = vpack.c.b16 %v2040, %v2038
        %2057 = vmatprep.subr.bf16.mxu0 0
        %2058 = vmatpush1.bf16.msra.mxu0 0
        %2059 = vmatprep.subr.bf16.mxu0 0
        %2060 = vmatpush1.bf16.msra.mxu0 0
        %2061 = vmatprep.subr.bf16.mxu0 0
        %2062 = vmatpush1.bf16.msra.mxu0 0
        %2063 = vmatprep.subr.bf16.mxu0 0
        %2064 = vmatpush1.bf16.msra.mxu0 0
        %2065 = vmatprep.subr.bf16.mxu0 %v2048
        %2066 = vmatpush1.bf16.msra.mxu0 %v2047
        %2067 = vmatprep.subr.bf16.mxu0 %v2046
        %2068 = vmatpush1.bf16.msra.mxu0 %v2045
        %2069 = vmatprep.subr.bf16.mxu0 %v2044
        %2070 = vmatpush1.bf16.msra.mxu0 %v2043
        %2071 = vmatprep.subr.bf16.mxu0 %v2042
        %2072 = vmatpush1.bf16.msra.mxu0 %v2041
        %2073 = vmatprep.subr.bf16.mxu0 0
        %2074 = vmatpush2.bf16.msra.mxu0 0
        %2075 = vmatprep.subr.bf16.mxu0 0
        %2076 = vmatpush2.bf16.msra.mxu0 0
        %2077 = vmatprep.subr.bf16.mxu0 0
        %2078 = vmatpush2.bf16.msra.mxu0 0
        %2079 = vmatprep.subr.bf16.mxu0 0
        %2080 = vmatpush2.bf16.msra.mxu0 0
        %2081 = vmatprep.subr.bf16.mxu0 0
        %2082 = vmatpush2.bf16.msra.mxu0 0
        %2083 = vmatprep.subr.bf16.mxu0 0
        %2084 = vmatpush2.bf16.msra.mxu0 0
        %2085 = vmatprep.subr.bf16.mxu0 0
        %2086 = vmatpush2.bf16.msra.mxu0 0
        %2087 = vmatprep.subr.bf16.mxu0 0
        %2088 = vmatpush2.bf16.msra.mxu0 0
        %2089 = vmatprep.mubr.bf16.mxu0 0
        %2090 = vmatmul.mubr.bf16.gmra.mxu0 %v1853
        %v2091 = vpop.f32.mrf.mxu0
        %v2092 = vadd.f32 %v2010, %v2091
        %v2093 = vpop.f32.mrf.mxu0
        %v2094 = vadd.f32 %v2014, %v2093
        %v2095 = vpop.f32.mrf.mxu0
        %v2096 = vpop.f32.mrf.mxu0
        %2097 = vdwg.mxu0
        %v2098 = vld [vmem:[%s1664] sm:$0xf]
        %v2099 = vld [vmem:[%s1664 + $0x4] sm:$0xf]
        %v2100 = vld [vmem:[%s1664 + $0x8] sm:$0xf]
        %v2101 = vld [vmem:[%s1664 + $0xc] sm:$0xf]
        %v2102 = vld [vmem:[%s1664 + $0x10] sm:$0xf]
        %v2103 = vld [vmem:[%s1664 + $0x14] sm:$0xf]
        %v2104 = vld [vmem:[%s1664 + $0x18] sm:$0xf]
        %v2105 = vld [vmem:[%s1664 + $0x1c] sm:$0xf]
        %v2106 = vld [vmem:[%s1664 + $0x20] sm:$0xf]
        %v2107 = vld [vmem:[%s1664 + $0x24] sm:$0xf]
        %v2108 = vld [vmem:[%s1664 + $0x28] sm:$0xf]
        %v2109 = vld [vmem:[%s1664 + $0x2c] sm:$0xf]
        %v2110 = vld [vmem:[%s1664 + $0x30] sm:$0xf]
        %v2111 = vld [vmem:[%s1664 + $0x34] sm:$0xf]
        %v2112 = vld [vmem:[%s1664 + $0x38] sm:$0xf]
        %v2113 = vld [vmem:[%s1664 + $0x3c] sm:$0xf]
        %v2114 = vld [vmem:[%s1664 + $0x40] sm:$0xf]
        %v2115 = vld [vmem:[%s1664 + $0x44] sm:$0xf]
        %v2116 = vld [vmem:[%s1664 + $0x48] sm:$0xf]
        %v2117 = vld [vmem:[%s1664 + $0x4c] sm:$0xf]
        %v2118 = vld [vmem:[%s1664 + $0x50] sm:$0xf]
        %v2119 = vld [vmem:[%s1664 + $0x54] sm:$0xf]
        %v2120 = vld [vmem:[%s1664 + $0x58] sm:$0xf]
        %v2121 = vld [vmem:[%s1664 + $0x5c] sm:$0xf]
        %v2122 = vld [vmem:[%s1664 + $0x60] sm:$0xf]
        %v2123 = vld [vmem:[%s1664 + $0x64] sm:$0xf]
        %v2124 = vld [vmem:[%s1664 + $0x68] sm:$0xf]
        %v2125 = vld [vmem:[%s1664 + $0x6c] sm:$0xf]
        %v2126 = vld [vmem:[%s1664 + $0x70] sm:$0xf]
        %v2127 = vld [vmem:[%s1664 + $0x74] sm:$0xf]
        %v2128 = vld [vmem:[%s1664 + $0x78] sm:$0xf]
        %v2129 = vld [vmem:[%s1664 + $0x7c] sm:$0xf]
        %v2130 = vld [vmem:[%s1374] sm:$0x1]
        %v2131 = vpack.c.bf16 %v1890, %v1890
        %v2132 = vpack.c.bf16 %v1892, %v1892
        %v2133 = vpack.c.bf16 %v1991, %v1991
        %v2134 = vpack.c.bf16 %v1993, %v1993
        %v2135 = vpack.c.bf16 %v2092, %v2092
        %v2136 = vpack.c.bf16 %v2094, %v2094
        %v2138 = vlaneseq
        %v2139 = vshrl.u32 %v2138, 7
        %v2140 = vsub.s32 0, %v2139
        %v2141 = vrot.slane %v2130, %v2140
        %2143 = vmatprep.subr.bf16.mxu0 0
        %2144 = vmatpush1.bf16.xpose.msra.mxu0 0
        %2145 = vmatprep.subr.bf16.mxu0 0
        %2146 = vmatpush1.bf16.xpose.msra.mxu0 0
        %2147 = vmatprep.subr.bf16.mxu0 0
        %2148 = vmatpush1.bf16.xpose.msra.mxu0 0
        %2149 = vmatprep.subr.bf16.mxu0 0
        %2150 = vmatpush1.bf16.xpose.msra.mxu0 0
        %2151 = vmatprep.subr.bf16.mxu0 0
        %2152 = vmatpush1.bf16.xpose.msra.mxu0 0
        %2153 = vmatprep.subr.bf16.mxu0 0
        %2154 = vmatpush1.bf16.xpose.msra.mxu0 0
        %2155 = vmatprep.subr.bf16.mxu0 0
        %2156 = vmatpush1.bf16.xpose.msra.mxu0 0
        %2157 = vmatprep.subr.bf16.mxu0 0
        %2158 = vmatpush1.bf16.xpose.msra.mxu0 %v2133
        %2159 = vmatprep.subr.bf16.mxu0 0
        %2160 = vmatpush2.bf16.xpose.msra.mxu0 0
        %2161 = vmatprep.subr.bf16.mxu0 0
        %2162 = vmatpush2.bf16.xpose.msra.mxu0 0
        %2163 = vmatprep.subr.bf16.mxu0 0
        %2164 = vmatpush2.bf16.xpose.msra.mxu0 0
        %2165 = vmatprep.subr.bf16.mxu0 0
        %2166 = vmatpush2.bf16.xpose.msra.mxu0 0
        %2167 = vmatprep.subr.bf16.mxu0 0
        %2168 = vmatpush2.bf16.xpose.msra.mxu0 0
        %2169 = vmatprep.subr.bf16.mxu0 0
        %2170 = vmatpush2.bf16.xpose.msra.mxu0 0
        %2171 = vmatprep.subr.bf16.mxu0 0
        %2172 = vmatpush2.bf16.xpose.msra.mxu0 0
        %2173 = vmatprep.subr.bf16.mxu0 0
        %2174 = vmatpush2.bf16.xpose.msra.mxu0 0
        %2175 = vmatprep.mubr.bf16.mxu0 0
        %2176 = vmatmul.mubr.bf16.gmra.mxu0 %v2131
        %v2177 = vpop.f32.mrf.mxu0
        %v2178 = vadd.f32 %v2141, %v2177
        %v2179 = vpop.f32.mrf.mxu0
        %v2180 = vpop.f32.mrf.mxu0
        %v2181 = vpop.f32.mrf.mxu0
        %2182 = vdwg.mxu0
        %vm2183 = vcmask 64512
        %v2184 = vsel %vm2183, %v2178, -inf
        %2185 = vmax.xlane.f32.xlu0 %v2184
        %v2186 = vpop.xlane.xlu0 %2185
        %v2187 = vsub.f32 %v2178, %v2186
        %v2188 = vmul.f32 %v2187, 1.442695
        %v2189 = vpow.pop %v2188
        %v2190 = vsel %vm2183, %v2189, 0.0
        %2191 = vadd.xlane.f32.xlu0 %v2190
        %v2192 = vpop.xlane.xlu0 %2191
        %v2193 = vrcp.pop %v2192
        %v2194 = vmul.f32 %v2189, %v2193
        %v2195 = vpack.c.bf16 %v2194, %v2194
        %v2197 = vsel %vm2183, %v2195, 0
        %vm2199 = vcmask 1043456
        %v2201 = vsel %vm2199, %v2135, 0
        %2203 = vmatprep.subr.bf16.mxu0 0
        %2204 = vmatpush1.bf16.msra.mxu0 0
        %2205 = vmatprep.subr.bf16.mxu0 0
        %2206 = vmatpush1.bf16.msra.mxu0 0
        %2207 = vmatprep.subr.bf16.mxu0 0
        %2208 = vmatpush1.bf16.msra.mxu0 0
        %2209 = vmatprep.subr.bf16.mxu0 0
        %2210 = vmatpush1.bf16.msra.mxu0 0
        %2211 = vmatprep.subr.bf16.mxu0 0
        %2212 = vmatpush1.bf16.msra.mxu0 0
        %2213 = vmatprep.subr.bf16.mxu0 0
        %2214 = vmatpush1.bf16.msra.mxu0 0
        %2215 = vmatprep.subr.bf16.mxu0 0
        %2216 = vmatpush1.bf16.msra.mxu0 0
        %2217 = vmatprep.subr.bf16.mxu0 0
        %2218 = vmatpush1.bf16.msra.mxu0 %v2201
        %2219 = vmatprep.subr.bf16.mxu0 0
        %2220 = vmatpush2.bf16.msra.mxu0 0
        %2221 = vmatprep.subr.bf16.mxu0 0
        %2222 = vmatpush2.bf16.msra.mxu0 0
        %2223 = vmatprep.subr.bf16.mxu0 0
        %2224 = vmatpush2.bf16.msra.mxu0 0
        %2225 = vmatprep.subr.bf16.mxu0 0
        %2226 = vmatpush2.bf16.msra.mxu0 0
        %2227 = vmatprep.subr.bf16.mxu0 0
        %2228 = vmatpush2.bf16.msra.mxu0 0
        %2229 = vmatprep.subr.bf16.mxu0 0
        %2230 = vmatpush2.bf16.msra.mxu0 0
        %2231 = vmatprep.subr.bf16.mxu0 0
        %2232 = vmatpush2.bf16.msra.mxu0 0
        %2233 = vmatprep.subr.bf16.mxu0 0
        %2234 = vmatpush2.bf16.msra.mxu0 0
        %2235 = vmatprep.mubr.bf16.mxu0 0
        %2236 = vmatmul.mubr.bf16.gmra.mxu0 %v2197
        %v2237 = vpop.f32.mrf.mxu0
        %v2238 = vadd.f32 0.0, %v2237
        %v2239 = vpop.f32.mrf.mxu0
        %v2240 = vpop.f32.mrf.mxu0
        %v2241 = vpop.f32.mrf.mxu0
        %2242 = vdwg.mxu0
        %v2243 = vpack.c.bf16 %v2238, %v2238
        %2244 = vmatprep.subr.bf16.mxu0 0
        %2245 = vmatpush1.bf16.xpose.msra.mxu0 0
        %2246 = vmatprep.subr.bf16.mxu0 0
        %2247 = vmatpush1.bf16.xpose.msra.mxu0 0
        %2248 = vmatprep.subr.bf16.mxu0 0
        %2249 = vmatpush1.bf16.xpose.msra.mxu0 0
        %2250 = vmatprep.subr.bf16.mxu0 0
        %2251 = vmatpush1.bf16.xpose.msra.mxu0 0
        %2252 = vmatprep.subr.bf16.mxu0 0
        %2253 = vmatpush1.bf16.xpose.msra.mxu0 0
        %2254 = vmatprep.subr.bf16.mxu0 0
        %2255 = vmatpush1.bf16.xpose.msra.mxu0 0
        %2256 = vmatprep.subr.bf16.mxu0 0
        %2257 = vmatpush1.bf16.xpose.msra.mxu0 0
        %2258 = vmatprep.subr.bf16.mxu0 0
        %2259 = vmatpush1.bf16.xpose.msra.mxu0 %v2134
        %2260 = vmatprep.subr.bf16.mxu0 0
        %2261 = vmatpush2.bf16.xpose.msra.mxu0 0
        %2262 = vmatprep.subr.bf16.mxu0 0
        %2263 = vmatpush2.bf16.xpose.msra.mxu0 0
        %2264 = vmatprep.subr.bf16.mxu0 0
        %2265 = vmatpush2.bf16.xpose.msra.mxu0 0
        %2266 = vmatprep.subr.bf16.mxu0 0
        %2267 = vmatpush2.bf16.xpose.msra.mxu0 0
        %2268 = vmatprep.subr.bf16.mxu0 0
        %2269 = vmatpush2.bf16.xpose.msra.mxu0 0
        %2270 = vmatprep.subr.bf16.mxu0 0
        %2271 = vmatpush2.bf16.xpose.msra.mxu0 0
        %2272 = vmatprep.subr.bf16.mxu0 0
        %2273 = vmatpush2.bf16.xpose.msra.mxu0 0
        %2274 = vmatprep.subr.bf16.mxu0 0
        %2275 = vmatpush2.bf16.xpose.msra.mxu0 0
        %2276 = vmatprep.mubr.bf16.mxu0 0
        %2277 = vmatmul.mubr.bf16.gmra.mxu0 %v2132
        %v2278 = vpop.f32.mrf.mxu0
        %v2279 = vadd.f32 %v2141, %v2278
        %v2280 = vpop.f32.mrf.mxu0
        %v2281 = vpop.f32.mrf.mxu0
        %v2282 = vpop.f32.mrf.mxu0
        %2283 = vdwg.mxu0
        %v2284 = vsel %vm2183, %v2279, -inf
        %2285 = vmax.xlane.f32.xlu0 %v2284
        %v2286 = vpop.xlane.xlu0 %2285
        %v2287 = vsub.f32 %v2279, %v2286
        %v2288 = vmul.f32 %v2287, 1.442695
        %v2289 = vpow.pop %v2288
        %v2290 = vsel %vm2183, %v2289, 0.0
        %2291 = vadd.xlane.f32.xlu0 %v2290
        %v2292 = vpop.xlane.xlu0 %2291
        %v2293 = vrcp.pop %v2292
        %v2294 = vmul.f32 %v2289, %v2293
        %v2295 = vpack.c.bf16 %v2294, %v2294
        %v2297 = vsel %vm2183, %v2295, 0
        %v2300 = vsel %vm2199, %v2136, 0
        %2302 = vmatprep.subr.bf16.mxu0 0
        %2303 = vmatpush1.bf16.msra.mxu0 0
        %2304 = vmatprep.subr.bf16.mxu0 0
        %2305 = vmatpush1.bf16.msra.mxu0 0
        %2306 = vmatprep.subr.bf16.mxu0 0
        %2307 = vmatpush1.bf16.msra.mxu0 0
        %2308 = vmatprep.subr.bf16.mxu0 0
        %2309 = vmatpush1.bf16.msra.mxu0 0
        %2310 = vmatprep.subr.bf16.mxu0 0
        %2311 = vmatpush1.bf16.msra.mxu0 0
        %2312 = vmatprep.subr.bf16.mxu0 0
        %2313 = vmatpush1.bf16.msra.mxu0 0
        %2314 = vmatprep.subr.bf16.mxu0 0
        %2315 = vmatpush1.bf16.msra.mxu0 0
        %2316 = vmatprep.subr.bf16.mxu0 0
        %2317 = vmatpush1.bf16.msra.mxu0 %v2300
        %2318 = vmatprep.subr.bf16.mxu0 0
        %2319 = vmatpush2.bf16.msra.mxu0 0
        %2320 = vmatprep.subr.bf16.mxu0 0
        %2321 = vmatpush2.bf16.msra.mxu0 0
        %2322 = vmatprep.subr.bf16.mxu0 0
        %2323 = vmatpush2.bf16.msra.mxu0 0
        %2324 = vmatprep.subr.bf16.mxu0 0
        %2325 = vmatpush2.bf16.msra.mxu0 0
        %2326 = vmatprep.subr.bf16.mxu0 0
        %2327 = vmatpush2.bf16.msra.mxu0 0
        %2328 = vmatprep.subr.bf16.mxu0 0
        %2329 = vmatpush2.bf16.msra.mxu0 0
        %2330 = vmatprep.subr.bf16.mxu0 0
        %2331 = vmatpush2.bf16.msra.mxu0 0
        %2332 = vmatprep.subr.bf16.mxu0 0
        %2333 = vmatpush2.bf16.msra.mxu0 0
        %2334 = vmatprep.mubr.bf16.mxu0 0
        %2335 = vmatmul.mubr.bf16.gmra.mxu0 %v2297
        %v2336 = vpop.f32.mrf.mxu0
        %v2337 = vadd.f32 0.0, %v2336
        %v2338 = vpop.f32.mrf.mxu0
        %v2339 = vpop.f32.mrf.mxu0
        %v2340 = vpop.f32.mrf.mxu0
        %2341 = vdwg.mxu0
        %v2342 = vpack.c.bf16 %v2337, %v2337
        %v2359 = vunpack.c.l.b16 %v2114
        %v2360 = vunpack.c.l.b16 %v2115
        %v2361 = vunpack.c.l.b16 %v2116
        %v2362 = vunpack.c.l.b16 %v2117
        %v2363 = vunpack.c.l.b16 %v2118
        %v2364 = vunpack.c.l.b16 %v2119
        %v2365 = vunpack.c.l.b16 %v2120
        %v2366 = vunpack.c.l.b16 %v2121
        %v2367 = vunpack.c.l.b16 %v2122
        %v2368 = vunpack.c.l.b16 %v2123
        %v2369 = vunpack.c.l.b16 %v2124
        %v2370 = vunpack.c.l.b16 %v2125
        %v2371 = vunpack.c.l.b16 %v2126
        %v2372 = vunpack.c.l.b16 %v2127
        %v2373 = vunpack.c.l.b16 %v2128
        %v2374 = vunpack.c.l.b16 %v2129
        %v2375 = vpack.c.b16 %v2360, %v2359
        %v2376 = vpack.c.b16 %v2362, %v2361
        %v2377 = vpack.c.b16 %v2364, %v2363
        %v2378 = vpack.c.b16 %v2366, %v2365
        %v2379 = vpack.c.b16 %v2368, %v2367
        %v2380 = vpack.c.b16 %v2370, %v2369
        %v2381 = vpack.c.b16 %v2372, %v2371
        %v2382 = vpack.c.b16 %v2374, %v2373
        %2391 = vmatprep.subr.bf16.mxu0 0
        %2392 = vmatpush1.bf16.msra.mxu0 %v2382
        %2393 = vmatprep.subr.bf16.mxu0 0
        %2394 = vmatpush1.bf16.msra.mxu0 %v2381
        %2395 = vmatprep.subr.bf16.mxu0 0
        %2396 = vmatpush1.bf16.msra.mxu0 %v2380
        %2397 = vmatprep.subr.bf16.mxu0 0
        %2398 = vmatpush1.bf16.msra.mxu0 %v2379
        %2399 = vmatprep.subr.bf16.mxu0 0
        %2400 = vmatpush1.bf16.msra.mxu0 %v2378
        %2401 = vmatprep.subr.bf16.mxu0 0
        %2402 = vmatpush1.bf16.msra.mxu0 %v2377
        %2403 = vmatprep.subr.bf16.mxu0 0
        %2404 = vmatpush1.bf16.msra.mxu0 %v2376
        %2405 = vmatprep.subr.bf16.mxu0 0
        %2406 = vmatpush1.bf16.msra.mxu0 %v2375
        %2407 = vmatprep.subr.bf16.mxu0 0
        %2408 = vmatpush2.bf16.msra.mxu0 0
        %2409 = vmatprep.subr.bf16.mxu0 0
        %2410 = vmatpush2.bf16.msra.mxu0 0
        %2411 = vmatprep.subr.bf16.mxu0 0
        %2412 = vmatpush2.bf16.msra.mxu0 0
        %2413 = vmatprep.subr.bf16.mxu0 0
        %2414 = vmatpush2.bf16.msra.mxu0 0
        %2415 = vmatprep.subr.bf16.mxu0 0
        %2416 = vmatpush2.bf16.msra.mxu0 0
        %2417 = vmatprep.subr.bf16.mxu0 0
        %2418 = vmatpush2.bf16.msra.mxu0 0
        %2419 = vmatprep.subr.bf16.mxu0 0
        %2420 = vmatpush2.bf16.msra.mxu0 0
        %2421 = vmatprep.subr.bf16.mxu0 0
        %2422 = vmatpush2.bf16.msra.mxu0 0
        %2423 = vmatprep.mubr.bf16.mxu0 0
        %2424 = vmatmul.mubr.bf16.gmra.mxu0 %v2342
        %v2425 = vpop.f32.mrf.mxu0
        %v2426 = vadd.f32 0.0, %v2425
        %v2427 = vpop.f32.mrf.mxu0
        %v2428 = vpop.f32.mrf.mxu0
        %v2429 = vpop.f32.mrf.mxu0
        %2430 = vdwg.mxu0
        %v2447 = vunpack.c.l.b16 %v2098
        %v2448 = vunpack.c.l.b16 %v2099
        %v2449 = vunpack.c.l.b16 %v2100
        %v2450 = vunpack.c.l.b16 %v2101
        %v2451 = vunpack.c.l.b16 %v2102
        %v2452 = vunpack.c.l.b16 %v2103
        %v2453 = vunpack.c.l.b16 %v2104
        %v2454 = vunpack.c.l.b16 %v2105
        %v2455 = vunpack.c.l.b16 %v2106
        %v2456 = vunpack.c.l.b16 %v2107
        %v2457 = vunpack.c.l.b16 %v2108
        %v2458 = vunpack.c.l.b16 %v2109
        %v2459 = vunpack.c.l.b16 %v2110
        %v2460 = vunpack.c.l.b16 %v2111
        %v2461 = vunpack.c.l.b16 %v2112
        %v2462 = vunpack.c.l.b16 %v2113
        %v2463 = vpack.c.b16 %v2448, %v2447
        %v2464 = vpack.c.b16 %v2450, %v2449
        %v2465 = vpack.c.b16 %v2452, %v2451
        %v2466 = vpack.c.b16 %v2454, %v2453
        %v2467 = vpack.c.b16 %v2456, %v2455
        %v2468 = vpack.c.b16 %v2458, %v2457
        %v2469 = vpack.c.b16 %v2460, %v2459
        %v2470 = vpack.c.b16 %v2462, %v2461
        %2479 = vmatprep.subr.bf16.mxu0 0
        %2480 = vmatpush1.bf16.msra.mxu0 %v2470
        %2481 = vmatprep.subr.bf16.mxu0 0
        %2482 = vmatpush1.bf16.msra.mxu0 %v2469
        %2483 = vmatprep.subr.bf16.mxu0 0
        %2484 = vmatpush1.bf16.msra.mxu0 %v2468
        %2485 = vmatprep.subr.bf16.mxu0 0
        %2486 = vmatpush1.bf16.msra.mxu0 %v2467
        %2487 = vmatprep.subr.bf16.mxu0 0
        %2488 = vmatpush1.bf16.msra.mxu0 %v2466
        %2489 = vmatprep.subr.bf16.mxu0 0
        %2490 = vmatpush1.bf16.msra.mxu0 %v2465
        %2491 = vmatprep.subr.bf16.mxu0 0
        %2492 = vmatpush1.bf16.msra.mxu0 %v2464
        %2493 = vmatprep.subr.bf16.mxu0 0
        %2494 = vmatpush1.bf16.msra.mxu0 %v2463
        %2495 = vmatprep.subr.bf16.mxu0 0
        %2496 = vmatpush2.bf16.msra.mxu0 0
        %2497 = vmatprep.subr.bf16.mxu0 0
        %2498 = vmatpush2.bf16.msra.mxu0 0
        %2499 = vmatprep.subr.bf16.mxu0 0
        %2500 = vmatpush2.bf16.msra.mxu0 0
        %2501 = vmatprep.subr.bf16.mxu0 0
        %2502 = vmatpush2.bf16.msra.mxu0 0
        %2503 = vmatprep.subr.bf16.mxu0 0
        %2504 = vmatpush2.bf16.msra.mxu0 0
        %2505 = vmatprep.subr.bf16.mxu0 0
        %2506 = vmatpush2.bf16.msra.mxu0 0
        %2507 = vmatprep.subr.bf16.mxu0 0
        %2508 = vmatpush2.bf16.msra.mxu0 0
        %2509 = vmatprep.subr.bf16.mxu0 0
        %2510 = vmatpush2.bf16.msra.mxu0 0
        %2511 = vmatprep.mubr.bf16.mxu0 0
        %2512 = vmatmul.mubr.bf16.gmra.mxu0 %v2243
        %v2513 = vpop.f32.mrf.mxu0
        %v2514 = vadd.f32 %v2426, %v2513
        %v2515 = vpop.f32.mrf.mxu0
        %v2516 = vpop.f32.mrf.mxu0
        %v2517 = vpop.f32.mrf.mxu0
        %2518 = vdwg.mxu0
        %v2519 = vadd.f32 %v1759, %v2514
        %v2520 = vld [vmem:[%s1437] sm:$0x1]
        %v2522 = vlaneseq
        %v2523 = vshrl.u32 %v2522, 7
        %v2524 = vsub.s32 0, %v2523
        %v2525 = vrot.slane %v2520, %v2524
        %v2527 = vadd.f32 %v2519, %v2525
        %v2528 = vld [vmem:[%s1445] sm:$0x1]
        %v2529 = vld [vmem:[%s1453] sm:$0x1]
        %v2530 = vsel %vm1762, %v2527, 0.0
        %2531 = vadd.xlane.f32.xlu0 %v2530
        %v2532 = vpop.xlane.xlu0 %2531
        %v2533 = vmul.f32 %v2532, %v1766
        %v2534 = vsub.f32 %v2527, %v2533
        %v2535 = vmul.f32 %v2534, %v2534
        %v2536 = vsel %vm1762, %v2535, 0.0
        %2537 = vadd.xlane.f32.xlu0 %v2536
        %v2538 = vpop.xlane.xlu0 %2537
        %v2539 = vmul.f32 %v2538, %v1766
        %v2540 = vadd.f32 %v2539, 1e-05
        %v2541 = vrsqrt.pop %v2540
        %v2542 = vmul.f32 %v2534, %v2541
        %v2544 = vlaneseq
        %v2545 = vshrl.u32 %v2544, 7
        %v2546 = vsub.s32 0, %v2545
        %v2547 = vrot.slane %v2528, %v2546
        %v2549 = vmul.f32 %v2542, %v2547
        %v2551 = vlaneseq
        %v2552 = vshrl.u32 %v2551, 7
        %v2553 = vsub.s32 0, %v2552
        %v2554 = vrot.slane %v2529, %v2553
        %v2556 = vadd.f32 %v2549, %v2554
        %v2558 = vrot.slane %v2556, 6
        %vm2560 = vcmask 523266
        %2561 = vst.msk [vmem:[#allocation3] sm:$0xfc] %vm2560, %v2558
        %v2562 = vrot.slane %v2556, 7
        %2563 = vrot.lane.b32.xlu0 %v2562, 64
        %v2564 = vpop.permute.xlu0 %2563
        %vm2566 = vcmask 1048065
        %2567 = vst.msk [vmem:[#allocation3] sm:$0xfe] %vm2566, %v2564
        %2568 = vst.msk [vmem:[#allocation3 + $0x8] sm:$0xff] %vm1762, %v2556
        %v2569 = vrot.slane %v2556, 1
        %2570 = vrot.lane.b32.xlu0 %v2569, 64
        %v2571 = vpop.permute.xlu0 %2570
        %vm2573 = vcmask 1047040
        %2574 = vst.msk [vmem:[#allocation3 + $0x8] sm:$0x7f] %vm2573, %v2571
        %v2575 = vrot.slane %v2556, 2
        %vm2577 = vcmask 521216
        %2578 = vst.msk [vmem:[#allocation3 + $0x10] sm:$0x3f] %vm2577, %v2575
        %v2579 = vld [vmem:[#allocation3] sm:$0xff]
        %v2580 = vld [vmem:[#allocation3 + $0x8] sm:$0xff]
        %v2581 = vld [vmem:[#allocation3 + $0x10] sm:$0xff]
        %v2582 = vld [vmem:[%s1669] sm:$0xf]
        %v2583 = vld [vmem:[%s1669 + $0x4] sm:$0xf]
        %v2584 = vld [vmem:[%s1669 + $0x8] sm:$0xf]
        %v2585 = vld [vmem:[%s1669 + $0xc] sm:$0xf]
        %v2586 = vld [vmem:[%s1669 + $0x10] sm:$0xf]
        %v2587 = vld [vmem:[%s1669 + $0x14] sm:$0xf]
        %v2588 = vld [vmem:[%s1669 + $0x18] sm:$0xf]
        %v2589 = vld [vmem:[%s1669 + $0x1c] sm:$0xf]
        %v2590 = vld [vmem:[%s1669 + $0x20] sm:$0xf]
        %v2591 = vld [vmem:[%s1669 + $0x24] sm:$0xf]
        %v2592 = vld [vmem:[%s1669 + $0x28] sm:$0xf]
        %v2593 = vld [vmem:[%s1669 + $0x2c] sm:$0xf]
        %v2594 = vld [vmem:[%s1669 + $0x30] sm:$0xf]
        %v2595 = vld [vmem:[%s1669 + $0x34] sm:$0xf]
        %v2596 = vld [vmem:[%s1669 + $0x38] sm:$0xf]
        %v2597 = vld [vmem:[%s1669 + $0x3c] sm:$0xf]
        %v2598 = vld [vmem:[%s1669 + $0x40] sm:$0xf]
        %v2599 = vld [vmem:[%s1669 + $0x44] sm:$0xf]
        %v2600 = vld [vmem:[%s1669 + $0x48] sm:$0xf]
        %v2601 = vld [vmem:[%s1669 + $0x4c] sm:$0xf]
        %v2602 = vld [vmem:[%s1669 + $0x50] sm:$0xf]
        %v2603 = vld [vmem:[%s1669 + $0x54] sm:$0xf]
        %v2604 = vld [vmem:[%s1669 + $0x58] sm:$0xf]
        %v2605 = vld [vmem:[%s1669 + $0x5c] sm:$0xf]
        %v2606 = vld [vmem:[%s1669 + $0x60] sm:$0xf]
        %v2607 = vld [vmem:[%s1669 + $0x64] sm:$0xf]
        %v2608 = vld [vmem:[%s1669 + $0x68] sm:$0xf]
        %v2609 = vld [vmem:[%s1669 + $0x6c] sm:$0xf]
        %v2610 = vld [vmem:[%s1669 + $0x70] sm:$0xf]
        %v2611 = vld [vmem:[%s1669 + $0x74] sm:$0xf]
        %v2612 = vld [vmem:[%s1669 + $0x78] sm:$0xf]
        %v2613 = vld [vmem:[%s1669 + $0x7c] sm:$0xf]
        %v2614 = vld [vmem:[%s1669 + $0x80] sm:$0xf]
        %v2615 = vld [vmem:[%s1669 + $0x84] sm:$0xf]
        %v2616 = vld [vmem:[%s1669 + $0x88] sm:$0xf]
        %v2617 = vld [vmem:[%s1669 + $0x8c] sm:$0xf]
        %v2618 = vld [vmem:[%s1669 + $0x90] sm:$0xf]
        %v2619 = vld [vmem:[%s1669 + $0x94] sm:$0xf]
        %v2620 = vld [vmem:[%s1669 + $0x98] sm:$0xf]
        %v2621 = vld [vmem:[%s1669 + $0x9c] sm:$0xf]
        %v2622 = vpack.c.bf16 %v2579, %v2579
        %v2623 = vpack.c.bf16 %v2580, %v2580
        %v2624 = vpack.c.bf16 %v2581, %v2581
        %v2625 = vld [vmem:[%s1461] sm:$0x1]
        %v2627 = vlaneseq
        %v2628 = vshrl.u32 %v2627, 7
        %v2629 = vsub.s32 0, %v2628
        %v2630 = vrot.slane %v2625, %v2629
        %v2672 = vunpack.c.l.b16 %v2582
        %v2673 = vunpack.c.l.b16 %v2583
        %v2674 = vunpack.c.l.b16 %v2584
        %v2675 = vunpack.c.l.b16 %v2585
        %v2676 = vunpack.c.l.b16 %v2586
        %v2677 = vunpack.c.l.b16 %v2587
        %v2678 = vunpack.c.l.b16 %v2588
        %v2679 = vunpack.c.l.b16 %v2589
        %v2680 = vunpack.c.l.b16 %v2590
        %v2681 = vunpack.c.l.b16 %v2591
        %v2682 = vunpack.c.l.b16 %v2592
        %v2683 = vunpack.c.l.b16 %v2593
        %v2684 = vunpack.c.l.b16 %v2594
        %v2685 = vunpack.c.l.b16 %v2595
        %v2686 = vunpack.c.l.b16 %v2596
        %v2687 = vunpack.c.l.b16 %v2597
        %v2688 = vunpack.c.l.b16 %v2598
        %v2689 = vunpack.c.l.b16 %v2599
        %v2690 = vunpack.c.l.b16 %v2600
        %v2691 = vunpack.c.l.b16 %v2601
        %v2692 = vunpack.c.l.b16 %v2602
        %v2693 = vunpack.c.l.b16 %v2603
        %v2694 = vunpack.c.l.b16 %v2604
        %v2695 = vunpack.c.l.b16 %v2605
        %v2696 = vunpack.c.l.b16 %v2606
        %v2697 = vunpack.c.l.b16 %v2607
        %v2698 = vunpack.c.l.b16 %v2608
        %v2699 = vunpack.c.l.b16 %v2609
        %v2700 = vunpack.c.l.b16 %v2610
        %v2701 = vunpack.c.l.b16 %v2611
        %v2702 = vunpack.c.l.b16 %v2612
        %v2703 = vunpack.c.l.b16 %v2613
        %v2704 = vunpack.c.l.b16 %v2614
        %v2705 = vunpack.c.l.b16 %v2615
        %v2706 = vunpack.c.l.b16 %v2616
        %v2707 = vunpack.c.l.b16 %v2617
        %v2708 = vunpack.c.l.b16 %v2618
        %v2709 = vunpack.c.l.b16 %v2619
        %v2710 = vunpack.c.l.b16 %v2620
        %v2711 = vunpack.c.l.b16 %v2621
        %v2712 = vpack.c.b16 %v2673, %v2672
        %v2713 = vpack.c.b16 %v2675, %v2674
        %v2714 = vpack.c.b16 %v2677, %v2676
        %v2715 = vpack.c.b16 %v2679, %v2678
        %v2716 = vpack.c.b16 %v2681, %v2680
        %v2717 = vpack.c.b16 %v2683, %v2682
        %v2718 = vpack.c.b16 %v2685, %v2684
        %v2719 = vpack.c.b16 %v2687, %v2686
        %v2720 = vpack.c.b16 %v2689, %v2688
        %v2721 = vpack.c.b16 %v2691, %v2690
        %v2722 = vpack.c.b16 %v2693, %v2692
        %v2723 = vpack.c.b16 %v2695, %v2694
        %v2724 = vpack.c.b16 %v2697, %v2696
        %v2725 = vpack.c.b16 %v2699, %v2698
        %v2726 = vpack.c.b16 %v2701, %v2700
        %v2727 = vpack.c.b16 %v2703, %v2702
        %v2728 = vpack.c.b16 %v2705, %v2704
        %v2729 = vpack.c.b16 %v2707, %v2706
        %v2730 = vpack.c.b16 %v2709, %v2708
        %v2731 = vpack.c.b16 %v2711, %v2710
        %v2753 = vsel %vm1762, %v2624, 0
        %2755 = vmatprep.subr.bf16.mxu0 0
        %2756 = vmatpush1.bf16.msra.mxu0 %v2719
        %2757 = vmatprep.subr.bf16.mxu0 0
        %2758 = vmatpush1.bf16.msra.mxu0 %v2718
        %2759 = vmatprep.subr.bf16.mxu0 0
        %2760 = vmatpush1.bf16.msra.mxu0 %v2717
        %2761 = vmatprep.subr.bf16.mxu0 0
        %2762 = vmatpush1.bf16.msra.mxu0 %v2716
        %2763 = vmatprep.subr.bf16.mxu0 0
        %2764 = vmatpush1.bf16.msra.mxu0 %v2715
        %2765 = vmatprep.subr.bf16.mxu0 0
        %2766 = vmatpush1.bf16.msra.mxu0 %v2714
        %2767 = vmatprep.subr.bf16.mxu0 0
        %2768 = vmatpush1.bf16.msra.mxu0 %v2713
        %2769 = vmatprep.subr.bf16.mxu0 0
        %2770 = vmatpush1.bf16.msra.mxu0 %v2712
        %2771 = vmatprep.subr.bf16.mxu0 0
        %2772 = vmatpush2.bf16.msra.mxu0 %v2727
        %2773 = vmatprep.subr.bf16.mxu0 0
        %2774 = vmatpush2.bf16.msra.mxu0 %v2726
        %2775 = vmatprep.subr.bf16.mxu0 0
        %2776 = vmatpush2.bf16.msra.mxu0 %v2725
        %2777 = vmatprep.subr.bf16.mxu0 0
        %2778 = vmatpush2.bf16.msra.mxu0 %v2724
        %2779 = vmatprep.subr.bf16.mxu0 0
        %2780 = vmatpush2.bf16.msra.mxu0 %v2723
        %2781 = vmatprep.subr.bf16.mxu0 0
        %2782 = vmatpush2.bf16.msra.mxu0 %v2722
        %2783 = vmatprep.subr.bf16.mxu0 0
        %2784 = vmatpush2.bf16.msra.mxu0 %v2721
        %2785 = vmatprep.subr.bf16.mxu0 0
        %2786 = vmatpush2.bf16.msra.mxu0 %v2720
        %2787 = vmatprep.mubr.bf16.mxu0 %v2623
        %2788 = vmatmul.mubr.bf16.gmra.mxu0 %v2622
        %v2789 = vpop.f32.mrf.mxu0
        %v2790 = vadd.f32 %v2630, %v2789
        %v2791 = vpop.f32.mrf.mxu0
        %v2792 = vpop.f32.mrf.mxu0
        %v2793 = vpop.f32.mrf.mxu0
        %2794 = vdwg.mxu0
        %2795 = vmatprep.subr.bf16.mxu0 0
        %2796 = vmatpush1.bf16.msra.mxu0 0
        %2797 = vmatprep.subr.bf16.mxu0 0
        %2798 = vmatpush1.bf16.msra.mxu0 0
        %2799 = vmatprep.subr.bf16.mxu0 0
        %2800 = vmatpush1.bf16.msra.mxu0 0
        %2801 = vmatprep.subr.bf16.mxu0 0
        %2802 = vmatpush1.bf16.msra.mxu0 0
        %2803 = vmatprep.subr.bf16.mxu0 0
        %2804 = vmatpush1.bf16.msra.mxu0 %v2731
        %2805 = vmatprep.subr.bf16.mxu0 0
        %2806 = vmatpush1.bf16.msra.mxu0 %v2730
        %2807 = vmatprep.subr.bf16.mxu0 0
        %2808 = vmatpush1.bf16.msra.mxu0 %v2729
        %2809 = vmatprep.subr.bf16.mxu0 0
        %2810 = vmatpush1.bf16.msra.mxu0 %v2728
        %2811 = vmatprep.subr.bf16.mxu0 0
        %2812 = vmatpush2.bf16.msra.mxu0 0
        %2813 = vmatprep.subr.bf16.mxu0 0
        %2814 = vmatpush2.bf16.msra.mxu0 0
        %2815 = vmatprep.subr.bf16.mxu0 0
        %2816 = vmatpush2.bf16.msra.mxu0 0
        %2817 = vmatprep.subr.bf16.mxu0 0
        %2818 = vmatpush2.bf16.msra.mxu0 0
        %2819 = vmatprep.subr.bf16.mxu0 0
        %2820 = vmatpush2.bf16.msra.mxu0 0
        %2821 = vmatprep.subr.bf16.mxu0 0
        %2822 = vmatpush2.bf16.msra.mxu0 0
        %2823 = vmatprep.subr.bf16.mxu0 0
        %2824 = vmatpush2.bf16.msra.mxu0 0
        %2825 = vmatprep.subr.bf16.mxu0 0
        %2826 = vmatpush2.bf16.msra.mxu0 0
        %2827 = vmatprep.mubr.bf16.mxu0 0
        %2828 = vmatmul.mubr.bf16.gmra.mxu0 %v2753
        %v2829 = vpop.f32.mrf.mxu0
        %v2830 = vadd.f32 %v2790, %v2829
        %v2831 = vpop.f32.mrf.mxu0
        %v2832 = vpop.f32.mrf.mxu0
        %v2833 = vpop.f32.mrf.mxu0
        %2834 = vdwg.mxu0
        %v2835 = vxor.u32 %v2830, 2147483648
        %v2836 = vmul.f32 %v2835, 1.442695
        %v2837 = vpow.pop %v2836
        %v2838 = vadd.f32 %v2837, 1.0
        %v2839 = vrcp.pop %v2838
        %v2840 = vmul.f32 1.0, %v2839
        %v2841 = vmul.f32 %v2830, %v2840
        %v2842 = vld [vmem:[%s1674] sm:$0xf]
        %v2843 = vld [vmem:[%s1674 + $0x4] sm:$0xf]
        %v2844 = vld [vmem:[%s1674 + $0x8] sm:$0xf]
        %v2845 = vld [vmem:[%s1674 + $0xc] sm:$0xf]
        %v2846 = vld [vmem:[%s1674 + $0x10] sm:$0xf]
        %v2847 = vld [vmem:[%s1674 + $0x14] sm:$0xf]
        %v2848 = vld [vmem:[%s1674 + $0x18] sm:$0xf]
        %v2849 = vld [vmem:[%s1674 + $0x1c] sm:$0xf]
        %v2850 = vld [vmem:[%s1674 + $0x20] sm:$0xf]
        %v2851 = vld [vmem:[%s1674 + $0x24] sm:$0xf]
        %v2852 = vld [vmem:[%s1674 + $0x28] sm:$0xf]
        %v2853 = vld [vmem:[%s1674 + $0x2c] sm:$0xf]
        %v2854 = vld [vmem:[%s1674 + $0x30] sm:$0xf]
        %v2855 = vld [vmem:[%s1674 + $0x34] sm:$0xf]
        %v2856 = vld [vmem:[%s1674 + $0x38] sm:$0xf]
        %v2857 = vld [vmem:[%s1674 + $0x3c] sm:$0xf]
        %v2858 = vpack.c.bf16 %v2841, %v2841
        %v2875 = vunpack.c.l.b16 %v2842
        %v2876 = vunpack.c.l.b16 %v2843
        %v2877 = vunpack.c.l.b16 %v2844
        %v2878 = vunpack.c.l.b16 %v2845
        %v2879 = vunpack.c.l.b16 %v2846
        %v2880 = vunpack.c.l.b16 %v2847
        %v2881 = vunpack.c.l.b16 %v2848
        %v2882 = vunpack.c.l.b16 %v2849
        %v2883 = vunpack.c.l.b16 %v2850
        %v2884 = vunpack.c.l.b16 %v2851
        %v2885 = vunpack.c.l.b16 %v2852
        %v2886 = vunpack.c.l.b16 %v2853
        %v2887 = vunpack.c.l.b16 %v2854
        %v2888 = vunpack.c.l.b16 %v2855
        %v2889 = vunpack.c.l.b16 %v2856
        %v2890 = vunpack.c.l.b16 %v2857
        %v2891 = vpack.c.b16 %v2876, %v2875
        %v2892 = vpack.c.b16 %v2878, %v2877
        %v2893 = vpack.c.b16 %v2880, %v2879
        %v2894 = vpack.c.b16 %v2882, %v2881
        %v2895 = vpack.c.b16 %v2884, %v2883
        %v2896 = vpack.c.b16 %v2886, %v2885
        %v2897 = vpack.c.b16 %v2888, %v2887
        %v2898 = vpack.c.b16 %v2890, %v2889
        %2907 = vmatprep.subr.bf16.mxu0 0
        %2908 = vmatpush1.bf16.msra.mxu0 %v2898
        %2909 = vmatprep.subr.bf16.mxu0 0
        %2910 = vmatpush1.bf16.msra.mxu0 %v2897
        %2911 = vmatprep.subr.bf16.mxu0 0
        %2912 = vmatpush1.bf16.msra.mxu0 %v2896
        %2913 = vmatprep.subr.bf16.mxu0 0
        %2914 = vmatpush1.bf16.msra.mxu0 %v2895
        %2915 = vmatprep.subr.bf16.mxu0 0
        %2916 = vmatpush1.bf16.msra.mxu0 %v2894
        %2917 = vmatprep.subr.bf16.mxu0 0
        %2918 = vmatpush1.bf16.msra.mxu0 %v2893
        %2919 = vmatprep.subr.bf16.mxu0 0
        %2920 = vmatpush1.bf16.msra.mxu0 %v2892
        %2921 = vmatprep.subr.bf16.mxu0 0
        %2922 = vmatpush1.bf16.msra.mxu0 %v2891
        %2923 = vmatprep.subr.bf16.mxu0 0
        %2924 = vmatpush2.bf16.msra.mxu0 0
        %2925 = vmatprep.subr.bf16.mxu0 0
        %2926 = vmatpush2.bf16.msra.mxu0 0
        %2927 = vmatprep.subr.bf16.mxu0 0
        %2928 = vmatpush2.bf16.msra.mxu0 0
        %2929 = vmatprep.subr.bf16.mxu0 0
        %2930 = vmatpush2.bf16.msra.mxu0 0
        %2931 = vmatprep.subr.bf16.mxu0 0
        %2932 = vmatpush2.bf16.msra.mxu0 0
        %2933 = vmatprep.subr.bf16.mxu0 0
        %2934 = vmatpush2.bf16.msra.mxu0 0
        %2935 = vmatprep.subr.bf16.mxu0 0
        %2936 = vmatpush2.bf16.msra.mxu0 0
        %2937 = vmatprep.subr.bf16.mxu0 0
        %2938 = vmatpush2.bf16.msra.mxu0 0
        %2939 = vmatprep.mubr.bf16.mxu0 0
        %2940 = vmatmul.mubr.bf16.gmra.mxu0 %v2858
        %v2941 = vpop.f32.mrf.mxu0
        %v2942 = vadd.f32 0.0, %v2941
        %v2943 = vpop.f32.mrf.mxu0
        %v2944 = vpop.f32.mrf.mxu0
        %v2945 = vpop.f32.mrf.mxu0
        %2946 = vdwg.mxu0
        %v2947 = vadd.f32 %v2527, %v2942
        %v2948 = vld [vmem:[%s1677] sm:$0x1]
        %v2950 = vlaneseq
        %v2951 = vshrl.u32 %v2950, 7
        %v2952 = vsub.s32 0, %v2951
        %v2953 = vrot.slane %v2948, %v2952
        %v2955 = vadd.f32 %v2947, %v2953
        %2956 = vst.msk [vmem:[#allocation2] sm:$0xff] %vm1762, %v2955
        %p2957 = scmp.eq.s32.totalorder %s118, 1
        // Predicated region
        $region233: #{tpu_custom_call.1} parent=155 // pred_check
          %p2958 = pneg %p2957
        $region234: #{tpu_custom_call.1} parent=155 // pred_check_branch
          %2960 = sbr.rel (%p2958) target = $region236
        $region235: #{tpu_custom_call.1} parent=155 // pred_region
          %v2961 = vld [vmem:[%s43] sm:$0x1]
          %v2962 = vld [vmem:[%s45] sm:$0x1]
          %v2963 = vsel %vm1762, %v2955, 0.0
          %2964 = vadd.xlane.f32.xlu0 %v2963
          %v2965 = vpop.xlane.xlu0 %2964
          %v2966 = vmul.f32 %v2965, %v1766
          %v2967 = vsub.f32 %v2955, %v2966
          %v2968 = vmul.f32 %v2967, %v2967
          %v2969 = vsel %vm1762, %v2968, 0.0
          %2970 = vadd.xlane.f32.xlu0 %v2969
          %v2971 = vpop.xlane.xlu0 %2970
          %v2972 = vmul.f32 %v2971, %v1766
          %v2973 = vadd.f32 %v2972, 1e-05
          %v2974 = vrsqrt.pop %v2973
          %v2975 = vmul.f32 %v2967, %v2974
          %v2977 = vlaneseq
          %v2978 = vshrl.u32 %v2977, 7
          %v2979 = vsub.s32 0, %v2978
          %v2980 = vrot.slane %v2961, %v2979
          %v2982 = vmul.f32 %v2975, %v2980
          %v2984 = vlaneseq
          %v2985 = vshrl.u32 %v2984, 7
          %v2986 = vsub.s32 0, %v2985
          %v2987 = vrot.slane %v2962, %v2986
          %v2989 = vadd.f32 %v2982, %v2987
          %2990 = vst.msk [vmem:[%s1644] sm:$0xff] %vm1762, %v2989
          %v2991 = vld [vmem:[#allocation27] sm:$0xff]
          %v2992 = vld [vmem:[#allocation28] sm:$0xf]
          %v2993 = vld [vmem:[#allocation28 + $0x4] sm:$0xf]
          %v2994 = vld [vmem:[#allocation28 + $0x8] sm:$0xf]
          %v2995 = vld [vmem:[#allocation28 + $0xc] sm:$0xf]
          %v2996 = vld [vmem:[#allocation28 + $0x10] sm:$0xf]
          %v2997 = vld [vmem:[#allocation28 + $0x14] sm:$0xf]
          %v2998 = vld [vmem:[#allocation28 + $0x18] sm:$0xf]
          %v2999 = vld [vmem:[#allocation28 + $0x1c] sm:$0xf]
          %v3000 = vpack.c.bf16 %v2991, %v2991
          %v3001 = vld [vmem:[%s51] sm:$0x1]
          %v3003 = vlaneseq
          %v3004 = vshrl.u32 %v3003, 7
          %v3005 = vsub.s32 0, %v3004
          %v3006 = vrot.slane %v3001, %v3005
          %v3016 = vunpack.c.l.b16 %v2992
          %v3017 = vunpack.c.l.b16 %v2993
          %v3018 = vunpack.c.l.b16 %v2994
          %v3019 = vunpack.c.l.b16 %v2995
          %v3020 = vunpack.c.l.b16 %v2996
          %v3021 = vunpack.c.l.b16 %v2997
          %v3022 = vunpack.c.l.b16 %v2998
          %v3023 = vunpack.c.l.b16 %v2999
          %v3024 = vpack.c.b16 %v3017, %v3016
          %v3025 = vpack.c.b16 %v3019, %v3018
          %v3026 = vpack.c.b16 %v3021, %v3020
          %v3027 = vpack.c.b16 %v3023, %v3022
          %v3033 = vsel %vm1762, %v3000, 0
          %3035 = vmatprep.subr.bf16.mxu0 0
          %3036 = vmatpush1.bf16.msra.mxu0 0
          %3037 = vmatprep.subr.bf16.mxu0 0
          %3038 = vmatpush1.bf16.msra.mxu0 0
          %3039 = vmatprep.subr.bf16.mxu0 0
          %3040 = vmatpush1.bf16.msra.mxu0 0
          %3041 = vmatprep.subr.bf16.mxu0 0
          %3042 = vmatpush1.bf16.msra.mxu0 0
          %3043 = vmatprep.subr.bf16.mxu0 0
          %3044 = vmatpush1.bf16.msra.mxu0 %v3027
          %3045 = vmatprep.subr.bf16.mxu0 0
          %3046 = vmatpush1.bf16.msra.mxu0 %v3026
          %3047 = vmatprep.subr.bf16.mxu0 0
          %3048 = vmatpush1.bf16.msra.mxu0 %v3025
          %3049 = vmatprep.subr.bf16.mxu0 0
          %3050 = vmatpush1.bf16.msra.mxu0 %v3024
          %3051 = vmatprep.subr.bf16.mxu0 0
          %3052 = vmatpush2.bf16.msra.mxu0 0
          %3053 = vmatprep.subr.bf16.mxu0 0
          %3054 = vmatpush2.bf16.msra.mxu0 0
          %3055 = vmatprep.subr.bf16.mxu0 0
          %3056 = vmatpush2.bf16.msra.mxu0 0
          %3057 = vmatprep.subr.bf16.mxu0 0
          %3058 = vmatpush2.bf16.msra.mxu0 0
          %3059 = vmatprep.subr.bf16.mxu0 0
          %3060 = vmatpush2.bf16.msra.mxu0 0
          %3061 = vmatprep.subr.bf16.mxu0 0
          %3062 = vmatpush2.bf16.msra.mxu0 0
          %3063 = vmatprep.subr.bf16.mxu0 0
          %3064 = vmatpush2.bf16.msra.mxu0 0
          %3065 = vmatprep.subr.bf16.mxu0 0
          %3066 = vmatpush2.bf16.msra.mxu0 0
          %3067 = vmatprep.mubr.bf16.mxu0 0
          %3068 = vmatmul.mubr.bf16.gmra.mxu0 %v3033
          %v3069 = vpop.f32.mrf.mxu0
          %v3070 = vadd.f32 %v3006, %v3069
          %v3071 = vpop.f32.mrf.mxu0
          %v3072 = vpop.f32.mrf.mxu0
          %v3073 = vpop.f32.mrf.mxu0
          %3074 = vdwg.mxu0
          %v3075 = vld [vmem:[#allocation30] sm:$0xf]
          %v3076 = vld [vmem:[#allocation30 + $0x4] sm:$0xf]
          %v3077 = vld [vmem:[#allocation30 + $0x8] sm:$0xf]
          %v3078 = vld [vmem:[#allocation30 + $0xc] sm:$0xf]
          %v3079 = vld [vmem:[#allocation30 + $0x10] sm:$0xf]
          %v3080 = vld [vmem:[#allocation30 + $0x14] sm:$0xf]
          %v3081 = vld [vmem:[#allocation30 + $0x18] sm:$0xf]
          %v3082 = vld [vmem:[#allocation30 + $0x1c] sm:$0xf]
          %v3083 = vpack.c.bf16 %v2989, %v2989
          %v3084 = vld [vmem:[%s55] sm:$0x1]
          %v3086 = vlaneseq
          %v3087 = vshrl.u32 %v3086, 7
          %v3088 = vsub.s32 0, %v3087
          %v3089 = vrot.slane %v3084, %v3088
          %v3099 = vunpack.c.l.b16 %v3075
          %v3100 = vunpack.c.l.b16 %v3076
          %v3101 = vunpack.c.l.b16 %v3077
          %v3102 = vunpack.c.l.b16 %v3078
          %v3103 = vunpack.c.l.b16 %v3079
          %v3104 = vunpack.c.l.b16 %v3080
          %v3105 = vunpack.c.l.b16 %v3081
          %v3106 = vunpack.c.l.b16 %v3082
          %v3107 = vpack.c.b16 %v3100, %v3099
          %v3108 = vpack.c.b16 %v3102, %v3101
          %v3109 = vpack.c.b16 %v3104, %v3103
          %v3110 = vpack.c.b16 %v3106, %v3105
          %v3116 = vsel %vm1762, %v3083, 0
          %3118 = vmatprep.subr.bf16.mxu0 0
          %3119 = vmatpush1.bf16.msra.mxu0 0
          %3120 = vmatprep.subr.bf16.mxu0 0
          %3121 = vmatpush1.bf16.msra.mxu0 0
          %3122 = vmatprep.subr.bf16.mxu0 0
          %3123 = vmatpush1.bf16.msra.mxu0 0
          %3124 = vmatprep.subr.bf16.mxu0 0
          %3125 = vmatpush1.bf16.msra.mxu0 0
          %3126 = vmatprep.subr.bf16.mxu0 0
          %3127 = vmatpush1.bf16.msra.mxu0 %v3110
          %3128 = vmatprep.subr.bf16.mxu0 0
          %3129 = vmatpush1.bf16.msra.mxu0 %v3109
          %3130 = vmatprep.subr.bf16.mxu0 0
          %3131 = vmatpush1.bf16.msra.mxu0 %v3108
          %3132 = vmatprep.subr.bf16.mxu0 0
          %3133 = vmatpush1.bf16.msra.mxu0 %v3107
          %3134 = vmatprep.subr.bf16.mxu0 0
          %3135 = vmatpush2.bf16.msra.mxu0 0
          %3136 = vmatprep.subr.bf16.mxu0 0
          %3137 = vmatpush2.bf16.msra.mxu0 0
          %3138 = vmatprep.subr.bf16.mxu0 0
          %3139 = vmatpush2.bf16.msra.mxu0 0
          %3140 = vmatprep.subr.bf16.mxu0 0
          %3141 = vmatpush2.bf16.msra.mxu0 0
          %3142 = vmatprep.subr.bf16.mxu0 0
          %3143 = vmatpush2.bf16.msra.mxu0 0
          %3144 = vmatprep.subr.bf16.mxu0 0
          %3145 = vmatpush2.bf16.msra.mxu0 0
          %3146 = vmatprep.subr.bf16.mxu0 0
          %3147 = vmatpush2.bf16.msra.mxu0 0
          %3148 = vmatprep.subr.bf16.mxu0 0
          %3149 = vmatpush2.bf16.msra.mxu0 0
          %3150 = vmatprep.mubr.bf16.mxu0 0
          %3151 = vmatmul.mubr.bf16.gmra.mxu0 %v3116
          %v3152 = vpop.f32.mrf.mxu0
          %v3153 = vadd.f32 %v3089, %v3152
          %v3154 = vpop.f32.mrf.mxu0
          %v3155 = vpop.f32.mrf.mxu0
          %v3156 = vpop.f32.mrf.mxu0
          %3157 = vdwg.mxu0
          %v3158 = vld [vmem:[#allocation31] sm:$0xf]
          %v3159 = vld [vmem:[#allocation31 + $0x4] sm:$0xf]
          %v3160 = vld [vmem:[#allocation31 + $0x8] sm:$0xf]
          %v3161 = vld [vmem:[#allocation31 + $0xc] sm:$0xf]
          %v3162 = vld [vmem:[#allocation31 + $0x10] sm:$0xf]
          %v3163 = vld [vmem:[#allocation31 + $0x14] sm:$0xf]
          %v3164 = vld [vmem:[#allocation31 + $0x18] sm:$0xf]
          %v3165 = vld [vmem:[#allocation31 + $0x1c] sm:$0xf]
          %v3166 = vld [vmem:[%s59] sm:$0x1]
          %v3168 = vlaneseq
          %v3169 = vshrl.u32 %v3168, 7
          %v3170 = vsub.s32 0, %v3169
          %v3171 = vrot.slane %v3166, %v3170
          %v3181 = vunpack.c.l.b16 %v3158
          %v3182 = vunpack.c.l.b16 %v3159
          %v3183 = vunpack.c.l.b16 %v3160
          %v3184 = vunpack.c.l.b16 %v3161
          %v3185 = vunpack.c.l.b16 %v3162
          %v3186 = vunpack.c.l.b16 %v3163
          %v3187 = vunpack.c.l.b16 %v3164
          %v3188 = vunpack.c.l.b16 %v3165
          %v3189 = vpack.c.b16 %v3182, %v3181
          %v3190 = vpack.c.b16 %v3184, %v3183
          %v3191 = vpack.c.b16 %v3186, %v3185
          %v3192 = vpack.c.b16 %v3188, %v3187
          %3197 = vmatprep.subr.bf16.mxu0 0
          %3198 = vmatpush1.bf16.msra.mxu0 0
          %3199 = vmatprep.subr.bf16.mxu0 0
          %3200 = vmatpush1.bf16.msra.mxu0 0
          %3201 = vmatprep.subr.bf16.mxu0 0
          %3202 = vmatpush1.bf16.msra.mxu0 0
          %3203 = vmatprep.subr.bf16.mxu0 0
          %3204 = vmatpush1.bf16.msra.mxu0 0
          %3205 = vmatprep.subr.bf16.mxu0 0
          %3206 = vmatpush1.bf16.msra.mxu0 %v3192
          %3207 = vmatprep.subr.bf16.mxu0 0
          %3208 = vmatpush1.bf16.msra.mxu0 %v3191
          %3209 = vmatprep.subr.bf16.mxu0 0
          %3210 = vmatpush1.bf16.msra.mxu0 %v3190
          %3211 = vmatprep.subr.bf16.mxu0 0
          %3212 = vmatpush1.bf16.msra.mxu0 %v3189
          %3213 = vmatprep.subr.bf16.mxu0 0
          %3214 = vmatpush2.bf16.msra.mxu0 0
          %3215 = vmatprep.subr.bf16.mxu0 0
          %3216 = vmatpush2.bf16.msra.mxu0 0
          %3217 = vmatprep.subr.bf16.mxu0 0
          %3218 = vmatpush2.bf16.msra.mxu0 0
          %3219 = vmatprep.subr.bf16.mxu0 0
          %3220 = vmatpush2.bf16.msra.mxu0 0
          %3221 = vmatprep.subr.bf16.mxu0 0
          %3222 = vmatpush2.bf16.msra.mxu0 0
          %3223 = vmatprep.subr.bf16.mxu0 0
          %3224 = vmatpush2.bf16.msra.mxu0 0
          %3225 = vmatprep.subr.bf16.mxu0 0
          %3226 = vmatpush2.bf16.msra.mxu0 0
          %3227 = vmatprep.subr.bf16.mxu0 0
          %3228 = vmatpush2.bf16.msra.mxu0 0
          %3229 = vmatprep.mubr.bf16.mxu0 0
          %3230 = vmatmul.mubr.bf16.gmra.mxu0 %v3116
          %v3231 = vpop.f32.mrf.mxu0
          %v3232 = vadd.f32 %v3171, %v3231
          %v3233 = vpop.f32.mrf.mxu0
          %v3234 = vpop.f32.mrf.mxu0
          %v3235 = vpop.f32.mrf.mxu0
          %3236 = vdwg.mxu0
          %v3237 = vld [vmem:[%s61] sm:$0xf]
          %v3238 = vld [vmem:[%s61 + $0x4] sm:$0xf]
          %v3239 = vld [vmem:[%s61 + $0x8] sm:$0xf]
          %v3240 = vld [vmem:[%s61 + $0xc] sm:$0xf]
          %v3241 = vld [vmem:[%s61 + $0x10] sm:$0xf]
          %v3242 = vld [vmem:[%s61 + $0x14] sm:$0xf]
          %v3243 = vld [vmem:[%s61 + $0x18] sm:$0xf]
          %v3244 = vld [vmem:[%s61 + $0x1c] sm:$0xf]
          %v3245 = vld [vmem:[%s61 + $0x20] sm:$0xf]
          %v3246 = vld [vmem:[%s61 + $0x24] sm:$0xf]
          %v3247 = vld [vmem:[%s61 + $0x28] sm:$0xf]
          %v3248 = vld [vmem:[%s61 + $0x2c] sm:$0xf]
          %v3249 = vld [vmem:[%s61 + $0x30] sm:$0xf]
          %v3250 = vld [vmem:[%s61 + $0x34] sm:$0xf]
          %v3251 = vld [vmem:[%s61 + $0x38] sm:$0xf]
          %v3252 = vld [vmem:[%s61 + $0x3c] sm:$0xf]
          %v3253 = vld [vmem:[%s1374] sm:$0x1]
          %v3254 = vpack.c.bf16 %v3070, %v3070
          %v3255 = vpack.c.bf16 %v3153, %v3153
          %v3256 = vpack.c.bf16 %v3232, %v3232
          %v3258 = vlaneseq
          %v3259 = vshrl.u32 %v3258, 7
          %v3260 = vsub.s32 0, %v3259
          %v3261 = vrot.slane %v3253, %v3260
          %3263 = vmatprep.subr.bf16.mxu0 0
          %3264 = vmatpush1.bf16.xpose.msra.mxu0 0
          %3265 = vmatprep.subr.bf16.mxu0 0
          %3266 = vmatpush1.bf16.xpose.msra.mxu0 0
          %3267 = vmatprep.subr.bf16.mxu0 0
          %3268 = vmatpush1.bf16.xpose.msra.mxu0 0
          %3269 = vmatprep.subr.bf16.mxu0 0
          %3270 = vmatpush1.bf16.xpose.msra.mxu0 0
          %3271 = vmatprep.subr.bf16.mxu0 0
          %3272 = vmatpush1.bf16.xpose.msra.mxu0 0
          %3273 = vmatprep.subr.bf16.mxu0 0
          %3274 = vmatpush1.bf16.xpose.msra.mxu0 0
          %3275 = vmatprep.subr.bf16.mxu0 0
          %3276 = vmatpush1.bf16.xpose.msra.mxu0 0
          %3277 = vmatprep.subr.bf16.mxu0 0
          %3278 = vmatpush1.bf16.xpose.msra.mxu0 %v3255
          %3279 = vmatprep.subr.bf16.mxu0 0
          %3280 = vmatpush2.bf16.xpose.msra.mxu0 0
          %3281 = vmatprep.subr.bf16.mxu0 0
          %3282 = vmatpush2.bf16.xpose.msra.mxu0 0
          %3283 = vmatprep.subr.bf16.mxu0 0
          %3284 = vmatpush2.bf16.xpose.msra.mxu0 0
          %3285 = vmatprep.subr.bf16.mxu0 0
          %3286 = vmatpush2.bf16.xpose.msra.mxu0 0
          %3287 = vmatprep.subr.bf16.mxu0 0
          %3288 = vmatpush2.bf16.xpose.msra.mxu0 0
          %3289 = vmatprep.subr.bf16.mxu0 0
          %3290 = vmatpush2.bf16.xpose.msra.mxu0 0
          %3291 = vmatprep.subr.bf16.mxu0 0
          %3292 = vmatpush2.bf16.xpose.msra.mxu0 0
          %3293 = vmatprep.subr.bf16.mxu0 0
          %3294 = vmatpush2.bf16.xpose.msra.mxu0 0
          %3295 = vmatprep.mubr.bf16.mxu0 0
          %3296 = vmatmul.mubr.bf16.gmra.mxu0 %v3254
          %v3297 = vpop.f32.mrf.mxu0
          %v3298 = vadd.f32 %v3261, %v3297
          %v3299 = vpop.f32.mrf.mxu0
          %v3300 = vpop.f32.mrf.mxu0
          %v3301 = vpop.f32.mrf.mxu0
          %3302 = vdwg.mxu0
          %v3303 = vsel %vm2183, %v3298, -inf
          %3304 = vmax.xlane.f32.xlu0 %v3303
          %v3305 = vpop.xlane.xlu0 %3304
          %v3306 = vsub.f32 %v3298, %v3305
          %v3307 = vmul.f32 %v3306, 1.442695
          %v3308 = vpow.pop %v3307
          %v3309 = vsel %vm2183, %v3308, 0.0
          %3310 = vadd.xlane.f32.xlu0 %v3309
          %v3311 = vpop.xlane.xlu0 %3310
          %v3312 = vrcp.pop %v3311
          %v3313 = vmul.f32 %v3308, %v3312
          %v3314 = vpack.c.bf16 %v3313, %v3313
          %v3316 = vsel %vm2183, %v3314, 0
          %v3319 = vsel %vm2199, %v3256, 0
          %3321 = vmatprep.subr.bf16.mxu0 0
          %3322 = vmatpush1.bf16.msra.mxu0 0
          %3323 = vmatprep.subr.bf16.mxu0 0
          %3324 = vmatpush1.bf16.msra.mxu0 0
          %3325 = vmatprep.subr.bf16.mxu0 0
          %3326 = vmatpush1.bf16.msra.mxu0 0
          %3327 = vmatprep.subr.bf16.mxu0 0
          %3328 = vmatpush1.bf16.msra.mxu0 0
          %3329 = vmatprep.subr.bf16.mxu0 0
          %3330 = vmatpush1.bf16.msra.mxu0 0
          %3331 = vmatprep.subr.bf16.mxu0 0
          %3332 = vmatpush1.bf16.msra.mxu0 0
          %3333 = vmatprep.subr.bf16.mxu0 0
          %3334 = vmatpush1.bf16.msra.mxu0 0
          %3335 = vmatprep.subr.bf16.mxu0 0
          %3336 = vmatpush1.bf16.msra.mxu0 %v3319
          %3337 = vmatprep.subr.bf16.mxu0 0
          %3338 = vmatpush2.bf16.msra.mxu0 0
          %3339 = vmatprep.subr.bf16.mxu0 0
          %3340 = vmatpush2.bf16.msra.mxu0 0
          %3341 = vmatprep.subr.bf16.mxu0 0
          %3342 = vmatpush2.bf16.msra.mxu0 0
          %3343 = vmatprep.subr.bf16.mxu0 0
          %3344 = vmatpush2.bf16.msra.mxu0 0
          %3345 = vmatprep.subr.bf16.mxu0 0
          %3346 = vmatpush2.bf16.msra.mxu0 0
          %3347 = vmatprep.subr.bf16.mxu0 0
          %3348 = vmatpush2.bf16.msra.mxu0 0
          %3349 = vmatprep.subr.bf16.mxu0 0
          %3350 = vmatpush2.bf16.msra.mxu0 0
          %3351 = vmatprep.subr.bf16.mxu0 0
          %3352 = vmatpush2.bf16.msra.mxu0 0
          %3353 = vmatprep.mubr.bf16.mxu0 0
          %3354 = vmatmul.mubr.bf16.gmra.mxu0 %v3316
          %v3355 = vpop.f32.mrf.mxu0
          %v3356 = vadd.f32 0.0, %v3355
          %v3357 = vpop.f32.mrf.mxu0
          %v3358 = vpop.f32.mrf.mxu0
          %v3359 = vpop.f32.mrf.mxu0
          %3360 = vdwg.mxu0
          %v3361 = vpack.c.bf16 %v3356, %v3356
          %v3362 = vld [vmem:[%s63] sm:$0x1]
          %v3364 = vlaneseq
          %v3365 = vshrl.u32 %v3364, 7
          %v3366 = vsub.s32 0, %v3365
          %v3367 = vrot.slane %v3362, %v3366
          %v3385 = vunpack.c.l.b16 %v3237
          %v3386 = vunpack.c.l.b16 %v3238
          %v3387 = vunpack.c.l.b16 %v3239
          %v3388 = vunpack.c.l.b16 %v3240
          %v3389 = vunpack.c.l.b16 %v3241
          %v3390 = vunpack.c.l.b16 %v3242
          %v3391 = vunpack.c.l.b16 %v3243
          %v3392 = vunpack.c.l.b16 %v3244
          %v3393 = vunpack.c.l.b16 %v3245
          %v3394 = vunpack.c.l.b16 %v3246
          %v3395 = vunpack.c.l.b16 %v3247
          %v3396 = vunpack.c.l.b16 %v3248
          %v3397 = vunpack.c.l.b16 %v3249
          %v3398 = vunpack.c.l.b16 %v3250
          %v3399 = vunpack.c.l.b16 %v3251
          %v3400 = vunpack.c.l.b16 %v3252
          %v3401 = vpack.c.b16 %v3386, %v3385
          %v3402 = vpack.c.b16 %v3388, %v3387
          %v3403 = vpack.c.b16 %v3390, %v3389
          %v3404 = vpack.c.b16 %v3392, %v3391
          %v3405 = vpack.c.b16 %v3394, %v3393
          %v3406 = vpack.c.b16 %v3396, %v3395
          %v3407 = vpack.c.b16 %v3398, %v3397
          %v3408 = vpack.c.b16 %v3400, %v3399
          %3417 = vmatprep.subr.bf16.mxu0 0
          %3418 = vmatpush1.bf16.msra.mxu0 %v3408
          %3419 = vmatprep.subr.bf16.mxu0 0
          %3420 = vmatpush1.bf16.msra.mxu0 %v3407
          %3421 = vmatprep.subr.bf16.mxu0 0
          %3422 = vmatpush1.bf16.msra.mxu0 %v3406
          %3423 = vmatprep.subr.bf16.mxu0 0
          %3424 = vmatpush1.bf16.msra.mxu0 %v3405
          %3425 = vmatprep.subr.bf16.mxu0 0
          %3426 = vmatpush1.bf16.msra.mxu0 %v3404
          %3427 = vmatprep.subr.bf16.mxu0 0
          %3428 = vmatpush1.bf16.msra.mxu0 %v3403
          %3429 = vmatprep.subr.bf16.mxu0 0
          %3430 = vmatpush1.bf16.msra.mxu0 %v3402
          %3431 = vmatprep.subr.bf16.mxu0 0
          %3432 = vmatpush1.bf16.msra.mxu0 %v3401
          %3433 = vmatprep.subr.bf16.mxu0 0
          %3434 = vmatpush2.bf16.msra.mxu0 0
          %3435 = vmatprep.subr.bf16.mxu0 0
          %3436 = vmatpush2.bf16.msra.mxu0 0
          %3437 = vmatprep.subr.bf16.mxu0 0
          %3438 = vmatpush2.bf16.msra.mxu0 0
          %3439 = vmatprep.subr.bf16.mxu0 0
          %3440 = vmatpush2.bf16.msra.mxu0 0
          %3441 = vmatprep.subr.bf16.mxu0 0
          %3442 = vmatpush2.bf16.msra.mxu0 0
          %3443 = vmatprep.subr.bf16.mxu0 0
          %3444 = vmatpush2.bf16.msra.mxu0 0
          %3445 = vmatprep.subr.bf16.mxu0 0
          %3446 = vmatpush2.bf16.msra.mxu0 0
          %3447 = vmatprep.subr.bf16.mxu0 0
          %3448 = vmatpush2.bf16.msra.mxu0 0
          %3449 = vmatprep.mubr.bf16.mxu0 0
          %3450 = vmatmul.mubr.bf16.gmra.mxu0 %v3361
          %v3451 = vpop.f32.mrf.mxu0
          %v3452 = vadd.f32 %v3367, %v3451
          %v3453 = vpop.f32.mrf.mxu0
          %v3454 = vpop.f32.mrf.mxu0
          %v3455 = vpop.f32.mrf.mxu0
          %3456 = vdwg.mxu0
          %v3457 = vld [vmem:[%s65] sm:$0xf]
          %v3458 = vld [vmem:[%s65 + $0x4] sm:$0xf]
          %v3459 = vld [vmem:[%s65 + $0x8] sm:$0xf]
          %v3460 = vld [vmem:[%s65 + $0xc] sm:$0xf]
          %v3461 = vld [vmem:[%s65 + $0x10] sm:$0xf]
          %v3462 = vld [vmem:[%s65 + $0x14] sm:$0xf]
          %v3463 = vld [vmem:[%s65 + $0x18] sm:$0xf]
          %v3464 = vld [vmem:[%s65 + $0x1c] sm:$0xf]
          %v3465 = vpack.c.bf16 %v3452, %v3452
          %v3466 = vld [vmem:[%s67] sm:$0x1]
          %v3468 = vlaneseq
          %v3469 = vshrl.u32 %v3468, 7
          %v3470 = vsub.s32 0, %v3469
          %v3471 = vrot.slane %v3466, %v3470
          %v3481 = vunpack.c.l.b16 %v3457
          %v3482 = vunpack.c.l.b16 %v3458
          %v3483 = vunpack.c.l.b16 %v3459
          %v3484 = vunpack.c.l.b16 %v3460
          %v3485 = vunpack.c.l.b16 %v3461
          %v3486 = vunpack.c.l.b16 %v3462
          %v3487 = vunpack.c.l.b16 %v3463
          %v3488 = vunpack.c.l.b16 %v3464
          %v3489 = vpack.c.b16 %v3482, %v3481
          %v3490 = vpack.c.b16 %v3484, %v3483
          %v3491 = vpack.c.b16 %v3486, %v3485
          %v3492 = vpack.c.b16 %v3488, %v3487
          %v3498 = vsel %vm1762, %v3465, 0
          %3500 = vmatprep.subr.bf16.mxu0 0
          %3501 = vmatpush1.bf16.msra.mxu0 0
          %3502 = vmatprep.subr.bf16.mxu0 0
          %3503 = vmatpush1.bf16.msra.mxu0 0
          %3504 = vmatprep.subr.bf16.mxu0 0
          %3505 = vmatpush1.bf16.msra.mxu0 0
          %3506 = vmatprep.subr.bf16.mxu0 0
          %3507 = vmatpush1.bf16.msra.mxu0 0
          %3508 = vmatprep.subr.bf16.mxu0 0
          %3509 = vmatpush1.bf16.msra.mxu0 %v3492
          %3510 = vmatprep.subr.bf16.mxu0 0
          %3511 = vmatpush1.bf16.msra.mxu0 %v3491
          %3512 = vmatprep.subr.bf16.mxu0 0
          %3513 = vmatpush1.bf16.msra.mxu0 %v3490
          %3514 = vmatprep.subr.bf16.mxu0 0
          %3515 = vmatpush1.bf16.msra.mxu0 %v3489
          %3516 = vmatprep.subr.bf16.mxu0 0
          %3517 = vmatpush2.bf16.msra.mxu0 0
          %3518 = vmatprep.subr.bf16.mxu0 0
          %3519 = vmatpush2.bf16.msra.mxu0 0
          %3520 = vmatprep.subr.bf16.mxu0 0
          %3521 = vmatpush2.bf16.msra.mxu0 0
          %3522 = vmatprep.subr.bf16.mxu0 0
          %3523 = vmatpush2.bf16.msra.mxu0 0
          %3524 = vmatprep.subr.bf16.mxu0 0
          %3525 = vmatpush2.bf16.msra.mxu0 0
          %3526 = vmatprep.subr.bf16.mxu0 0
          %3527 = vmatpush2.bf16.msra.mxu0 0
          %3528 = vmatprep.subr.bf16.mxu0 0
          %3529 = vmatpush2.bf16.msra.mxu0 0
          %3530 = vmatprep.subr.bf16.mxu0 0
          %3531 = vmatpush2.bf16.msra.mxu0 0
          %3532 = vmatprep.mubr.bf16.mxu0 0
          %3533 = vmatmul.mubr.bf16.gmra.mxu0 %v3498
          %v3534 = vpop.f32.mrf.mxu0
          %v3535 = vadd.f32 %v3471, %v3534
          %v3536 = vpop.f32.mrf.mxu0
          %v3537 = vpop.f32.mrf.mxu0
          %v3538 = vpop.f32.mrf.mxu0
          %3539 = vdwg.mxu0
          %vm3540 = vcmask 261120
          %3541 = vst.msk [vmem:[%s1637] sm:$0xff] %vm3540, %v3535
        $region236: #{tpu_custom_call.1} parent=155 // pred_fallthru
          _
        %s3542 = sand.u32 %s937, 1
        %s3543 = scalar_lea.sflag [#allocation6], %s3542
        %s3544 = sand.u32 %s937, 1
        %s3545 = smul.addr %s3544, 8
        %s3546 = scalar_lea.vmem [#allocation33], %s3545
        %s3547 = sand.u32 %s963, 1
        %s3548 = scalar_lea.sflag [#allocation35], %s3547
        %s3549 = sand.u32 %s963, 1
        %s3550 = smul.addr %s3549, 8
        %s3551 = scalar_lea.vmem [#allocation34], %s3550
        // Predicated region
        $region237: #{tpu_custom_call.1} parent=155 // pred_check
          %p3552 = pneg %p947
        $region238: #{tpu_custom_call.1} parent=155 // pred_check_branch
          %3554 = sbr.rel (%p3552) target = $region240
        $region239: #{tpu_custom_call.1} parent=155 // pred_region
          %s3556 = ssub.s32 128, 128
          %3557 = vsyncadd %s3543, %s3556
          %s3558 = smul.addr %s117, 128
          %s3559 = scalar_lea.hbm %s69, %s3558
          %s3561 = sshll.u32 %s3546, 4
          %s3562 = int_to_ptr.vmem [resolvable:$true] %s3561
          %3564 = dma.vmem_to_hbm [thread:$0]  %s3562, 128, %s3559, %s3543
        $region240: #{tpu_custom_call.1} parent=155 // pred_fallthru
          _
        // Predicated region
        $region241: #{tpu_custom_call.1} parent=155 // pred_check
          %p3565 = pneg %p973
        $region242: #{tpu_custom_call.1} parent=155 // pred_check_branch
          %3567 = sbr.rel (%p3565) target = $region244
        $region243: #{tpu_custom_call.1} parent=155 // pred_region
          %s3569 = ssub.s32 128, 128
          %3570 = vsyncadd %s3548, %s3569
          %s3571 = smul.addr %s117, 128
          %s3572 = scalar_lea.hbm %s71, %s3571
          %s3574 = sshll.u32 %s3551, 4
          %s3575 = int_to_ptr.vmem [resolvable:$true] %s3574
          %3577 = dma.vmem_to_hbm [thread:$0]  %s3575, 128, %s3572, %s3548
        $region244: #{tpu_custom_call.1} parent=155 // pred_fallthru
          _
      $region156: #{tpu_custom_call.1} parent=5 // pred_fallthru
        _
      %p3578 = scmp.le.s32.totalorder 2, %s108
      // Predicated region
      $region245: #{tpu_custom_call.1} parent=5 // pred_check
        %p3579 = pneg %p3578
      $region246: #{tpu_custom_call.1} parent=5 // pred_check_branch
        %3581 = sbr.rel (%p3579) target = $region248
      $region247: #{tpu_custom_call.1} parent=5 // pred_region
        %s3582 = ssub.s32 %s108, 2
        // Predicated region
        $region249: #{tpu_custom_call.1} parent=247 // pred_check
          %p3583 = pneg %p953
        $region250: #{tpu_custom_call.1} parent=247 // pred_check_branch
          %3585 = sbr.rel (%p3583) target = $region252
        $region251: #{tpu_custom_call.1} parent=247 // pred_region
          %s3586 = sand.u32 %s938, 1
          %s3587 = scalar_lea.sflag [#allocation6], %s3586
          %s3588 = sand.u32 %s938, 1
          %s3589 = smul.addr %s3588, 8
          %s3590 = scalar_lea.vmem [#allocation33], %s3589
          %3591 = dma.done %s3587, 128
        $region252: #{tpu_custom_call.1} parent=247 // pred_fallthru
          _
        // Predicated region
        $region253: #{tpu_custom_call.1} parent=247 // pred_check
          %p3592 = pneg %p979
        $region254: #{tpu_custom_call.1} parent=247 // pred_check_branch
          %3594 = sbr.rel (%p3592) target = $region256
        $region255: #{tpu_custom_call.1} parent=247 // pred_region
          %s3595 = sand.u32 %s964, 1
          %s3596 = scalar_lea.sflag [#allocation35], %s3595
          %s3597 = sand.u32 %s964, 1
          %s3598 = smul.addr %s3597, 8
          %s3599 = scalar_lea.vmem [#allocation34], %s3598
          %3600 = dma.done %s3596, 128
        $region256: #{tpu_custom_call.1} parent=247 // pred_fallthru
          _
      $region248: #{tpu_custom_call.1} parent=5 // pred_fallthru
        _
    $region6: #{tpu_custom_call.1} parent=1 // loop_footer
      %s112 = sadd.s32 1, %s108
    $region7: #{tpu_custom_call.1} parent=1 // loop_footer_branch
      %107 = sbr.rel target = $region3
    $region8: #{tpu_custom_call.1} parent=1 // loop_exit
      _
    %3601 = vsyncpa [#allocation5], 1
    %s3602 = scalar_lea.sflag [#allocation5], 1
    %3603 = vsyncpa %s3602, 1
    %3604 = vsyncpa [#allocation8], 1
    %s3605 = scalar_lea.sflag [#allocation8], 1
    %3606 = vsyncpa %s3605, 1
    %3607 = vsyncpa [#allocation11], 1
    %3608 = vsyncpa [#allocation14], 1
    %s3609 = scalar_lea.sflag [#allocation14], 1
    %3610 = vsyncpa %s3609, 1
    %3611 = vsyncpa [#allocation17], 1
    %s3612 = scalar_lea.sflag [#allocation17], 1
    %3613 = vsyncpa %s3612, 1
    %3614 = vsyncpa [#allocation20], 1
    %s3615 = scalar_lea.sflag [#allocation20], 1
    %3616 = vsyncpa %s3615, 1
    %3617 = vsyncpa [#allocation23], 1
    %s3618 = scalar_lea.sflag [#allocation23], 1
    %3619 = vsyncpa %s3618, 1
    %3620 = vsyncpa [#allocation26], 1
    %s3621 = scalar_lea.sflag [#allocation26], 1
    %3622 = vsyncpa %s3621, 1
    %3623 = vsyncpa [#allocation29], 1
    %3624 = vsyncpa [#allocation32], 1
    %3625 = vsyncpa [#allocation6], 1
    %s3626 = scalar_lea.sflag [#allocation6], 1
    %3627 = vsyncpa %s3626, 1
    %3628 = vsyncpa [#allocation35], 1
    %s3629 = scalar_lea.sflag [#allocation35], 1
    %3630 = vsyncpa %s3629, 1

</llo_original>
